<compile_context>
chip_gen: v6e
topology: v6e:2x2x1
jax: 0.10.0
libtpu: 0.0.40
codegen_flags: <defaults>
</compile_context>

<pallas_src>
import functools

import jax
import jax.numpy as jnp
from jax import lax
from jax.experimental import pallas as pl
from jax.experimental.pallas import tpu as pltpu


def _residual_block_kernel(x_ref, w1_ref, b1_ref, w2_ref, b2_ref, o_ref,
                           pad_ref, col_ref, *, H, W, C, Cm, use_residual):
    """One (batch element, repeat) grid step.

    x_ref  : (1, H*W, C)     input activations (f32), read only at repeat 0
    w1_ref : (R, C, Cm)      bf16 1x1-conv weights (BN1 scale folded in)
    b1_ref : (R, 1, Cm)      folded BN1 bias (f32)
    w2_ref : (R, 9*Cm, C)    bf16 3x3-conv weights (BN2 scale folded in),
                             row index = (kh*3+kw)*Cm + ci
    b2_ref : (R, 1, C)       folded BN2 bias (f32)
    o_ref  : (1, H*W, C)     output block; constant index over the repeat
                             axis -> stays resident in VMEM = the accumulator
    pad_ref: (H+2, W+2, Cm)  bf16 zero-padded mid activations (border stays 0)
    col_ref: (H, W, 9*Cm)    bf16 im2col buffer for the single 3x3 matmul
    """
    r = pl.program_id(1)

    @pl.when(r == 0)
    def _init():
        # Seed the resident output block with the input, once per batch elem.
        o_ref[...] = x_ref[...]
        # Zero only the 1-pixel border of the padded scratch (interior is
        # fully overwritten every repeat; the border is never written).
        zrow = jnp.zeros((1, W + 2, Cm), jnp.bfloat16)
        zcol = jnp.zeros((H + 2, 1, Cm), jnp.bfloat16)
        pad_ref[0:1, :, :] = zrow
        pad_ref[H + 1:H + 2, :, :] = zrow
        pad_ref[:, 0:1, :] = zcol
        pad_ref[:, W + 1:W + 2, :] = zcol

    x = o_ref[0]                                               # (H*W, C) f32

    # ---- 1x1 conv: channel matmul on the MXU (bf16 operands, f32 acc) ----
    h1 = jnp.dot(x.astype(jnp.bfloat16), w1_ref[r],
                 preferred_element_type=jnp.float32)           # (H*W, Cm)
    h1 = h1 + b1_ref[r]                                        # folded BN1 bias
    h1 = jnp.maximum(h1, 0.1 * h1)                             # LeakyReLU(0.1)
    h1b = h1.astype(jnp.bfloat16)                              # single cast

    # ---- pad=1 in VMEM (bf16), im2col, ONE K = 9*Cm matmul for the 3x3 ----
    pad_ref[1:H + 1, 1:W + 1, :] = h1b.reshape(H, W, Cm)
    for kh in range(3):
        for kw in range(3):
            t = kh * 3 + kw
            col_ref[:, :, t * Cm:(t + 1) * Cm] = pad_ref[kh:kh + H, kw:kw + W, :]
    col = col_ref[...].reshape(H * W, 9 * Cm)                  # bf16
    y = jnp.dot(col, w2_ref[r],
                preferred_element_type=jnp.float32)            # (H*W, C)
    y = y + b2_ref[r]                                          # folded BN2 bias
    y = jnp.maximum(y, 0.1 * y)                                # LeakyReLU(0.1)

    # ---- residual add (static flag) + write back into the resident block ----
    o_ref[0] = x + y if use_residual else y


def _vmem_budget_bytes():
    """Generation-aware VMEM budget with ~20% headroom."""
    try:
        cap = getattr(pltpu.get_tpu_info(), "vmem_capacity_bytes", None)
        if cap:
            return int(cap * 0.8)
    except Exception:
        pass
    return 48 * 1024 * 1024  # conservative fallback (fits all generations)


def residual_block_forward(x_nchw, params, use_residual=True):
    """ResidualBlock.forward. x_nchw: (N, C, H, W) like PyTorch."""
    w1, b1, w2, b2 = params                    # stacked per-repeat parameters
    num_repeats = w1.shape[0]
    N, C, H, W = x_nchw.shape
    Cm = w1.shape[2]
    HW = H * W
    # NCHW -> NHWC -> (N, H*W, C): lane dim = C, trivial leading-dim merges.
    x = jnp.transpose(x_nchw, (0, 2, 3, 1)).reshape(N, HW, C)

    kernel = functools.partial(_residual_block_kernel,
                               H=H, W=W, C=C, Cm=Cm, use_residual=use_residual)

    # VMEM estimate: double-buffered act in/out blocks + resident weights
    # (conservatively x2) + the two bf16 scratches.
    act_block = HW * C * x.dtype.itemsize
    weight_bytes = (C * Cm + 9 * Cm * C) * num_repeats * 2           # bf16
    bias_bytes = (Cm + C) * num_repeats * 4                          # f32
    scratch = ((H + 2) * (W + 2) * Cm + HW * 9 * Cm) * 2             # bf16
    est = 4 * act_block + 2 * (weight_bytes + bias_bytes) + scratch

    budget = _vmem_budget_bytes()
    assert est <= budget, (
        f"VMEM estimate {est} B exceeds budget {budget} B; add spatial tiling")
    vmem_limit = int(min(budget, max(32 * 1024 * 1024, 2 * est)))

    out = pl.pallas_call(
        kernel,
        out_shape=jax.ShapeDtypeStruct((N, HW, C), x.dtype),
        grid_spec=pltpu.PrefetchScalarGridSpec(
            num_scalar_prefetch=0,
            grid=(N, num_repeats),                 # repeats fused in-kernel
            in_specs=[
                pl.BlockSpec((1, HW, C), lambda n, r: (n, 0, 0)),          # x
                # Weights/biases: constant index_map -> DMA'd once, resident.
                pl.BlockSpec((num_repeats, C, Cm), lambda n, r: (0, 0, 0)),      # w1
                pl.BlockSpec((num_repeats, 1, Cm), lambda n, r: (0, 0, 0)),      # b1
                pl.BlockSpec((num_repeats, 9 * Cm, C), lambda n, r: (0, 0, 0)),  # w2
                pl.BlockSpec((num_repeats, 1, C), lambda n, r: (0, 0, 0)),       # b2
            ],
            # Constant block index over r -> output block is the resident
            # accumulator; written back to HBM once per batch element.
            out_specs=pl.BlockSpec((1, HW, C), lambda n, r: (n, 0, 0)),
            scratch_shapes=[
                pltpu.VMEM((H + 2, W + 2, Cm), jnp.bfloat16),   # padded mid
                pltpu.VMEM((H, W, 9 * Cm), jnp.bfloat16),       # im2col
            ],
        ),
        compiler_params=pltpu.CompilerParams(
            dimension_semantics=("parallel", "arbitrary"),
            vmem_limit_bytes=vmem_limit,
        ),
    )(x, w1, b1, w2, b2)
    return jnp.transpose(out.reshape(N, H, W, C), (0, 3, 1, 2))   # -> NCHW


# ----------------------------- parameter setup -----------------------------

def _fold_bn(gamma, beta, mean, var, eps=1e-5):
    s = gamma / jnp.sqrt(var + eps)
    b = beta - mean * s
    return s, b


def make_params(key, channels, num_repeats):
    """Deterministic synthetic parameters, BN scale folded into the weights
    (in f32, before the bf16 cast), stacked along the repeat axis."""
    C, Cm = channels, channels // 2
    w1s, b1s, w2s, b2s = [], [], [], []
    for _ in range(num_repeats):
        key, *ks = jax.random.split(key, 11)
        # conv1: torch weight (Cm, C, 1, 1) -> kernel layout (C, Cm)
        w1_t = jax.random.normal(ks[0], (Cm, C, 1, 1), jnp.float32) * 0.2
        w1 = jnp.transpose(w1_t[:, :, 0, 0], (1, 0))
        g1 = 1.0 + 0.1 * jax.random.normal(ks[1], (Cm,), jnp.float32)
        be1 = 0.1 * jax.random.normal(ks[2], (Cm,), jnp.float32)
        m1 = 0.1 * jax.random.normal(ks[3], (Cm,), jnp.float32)
        v1 = 1.0 + 0.1 * jax.random.uniform(ks[4], (Cm,), jnp.float32)
        s1, b1 = _fold_bn(g1, be1, m1, v1)
        # conv2: torch weight (C, Cm, 3, 3) -> (9*Cm, C), tap-major
        w2_t = jax.random.normal(ks[5], (C, Cm, 3, 3), jnp.float32) * 0.2
        w2 = jnp.transpose(w2_t, (2, 3, 1, 0)).reshape(9 * Cm, C)
        g2 = 1.0 + 0.1 * jax.random.normal(ks[6], (C,), jnp.float32)
        be2 = 0.1 * jax.random.normal(ks[7], (C,), jnp.float32)
        m2 = 0.1 * jax.random.normal(ks[8], (C,), jnp.float32)
        v2 = 1.0 + 0.1 * jax.random.uniform(ks[9], (C,), jnp.float32)
        s2, b2 = _fold_bn(g2, be2, m2, v2)
        # Fold BN scale into weights in f32, THEN cast to bf16.
        w1s.append((w1 * s1[None, :]).astype(jnp.bfloat16))
        w2s.append((w2 * s2[None, :]).astype(jnp.bfloat16))
        b1s.append(b1.reshape(1, Cm))
        b2s.append(b2.reshape(1, C))
    return (jnp.stack(w1s), jnp.stack(b1s), jnp.stack(w2s), jnp.stack(b2s))


# --------------------------- pure-JAX reference ---------------------------

def reference_forward(x_nchw, params, use_residual=True):
    w1_all, b1_all, w2_all, b2_all = params
    R = w1_all.shape[0]
    Cm, C = w1_all.shape[2], w2_all.shape[2]
    x = jnp.transpose(x_nchw, (0, 2, 3, 1)).astype(jnp.float32)   # NHWC
    for r in range(R):
        h = jnp.einsum("nhwc,co->nhwo", x.astype(jnp.bfloat16), w1_all[r],
                       preferred_element_type=jnp.float32)
        h = h + b1_all[r, 0]
        h = jnp.maximum(h, 0.1 * h)
        w2_hwio = w2_all[r].reshape(3, 3, Cm, C)
        h = lax.conv_general_dilated(
            h.astype(jnp.bfloat16), w2_hwio, window_strides=(1, 1),
            padding="SAME", dimension_numbers=("NHWC", "HWIO", "NHWC"),
            preferred_element_type=jnp.float32)
        h = h + b2_all[r, 0]
        h = jnp.maximum(h, 0.1 * h)
        x = x + h if use_residual else h
    return jnp.transpose(x, (0, 3, 1, 2))


if __name__ == "__main__":
    N, C, H, W = 2, 4, 16, 16
    num_repeats = 2

    key = jax.random.PRNGKey(0)
    kx, kp = jax.random.split(key)
    x = jax.random.normal(kx, (N, C, H, W), jnp.float32)
    params = make_params(kp, C, num_repeats)

    # use_residual=True (the ResidualBlock default)
    out = jax.block_until_ready(residual_block_forward(x, params, True))
    ref = jax.block_until_ready(reference_forward(x, params, True))
    assert out.shape == (N, C, H, W)
    assert jnp.allclose(out, ref, rtol=1e-2, atol=1e-2), (
        float(jnp.max(jnp.abs(out - ref))))

    # use_residual=False path (static flag inside the kernel)
    out_nr = jax.block_until_ready(residual_block_forward(x, params, False))
    ref_nr = jax.block_until_ready(reference_forward(x, params, False))
    assert jnp.allclose(out_nr, ref_nr, rtol=1e-2, atol=1e-2), (
        float(jnp.max(jnp.abs(out_nr - ref_nr))))

    print("KERNEL_OK")
</pallas_src>

<mosaic_0001>
module attributes {stable_mosaic.version = 11 : i64} {
  func.func @_residual_block_kernel(%arg0: i32, %arg1: i32, %arg2: memref<1x256x4xf32, #tpu.memory_space<vmem>>, %arg3: memref<2x4x2xbf16, #tpu.memory_space<vmem>>, %arg4: memref<2x1x2xf32, #tpu.memory_space<vmem>>, %arg5: memref<2x18x4xbf16, #tpu.memory_space<vmem>>, %arg6: memref<2x1x4xf32, #tpu.memory_space<vmem>>, %arg7: memref<1x256x4xf32, #tpu.memory_space<vmem>>, %arg8: memref<18x18x2xbf16, #tpu.memory_space<vmem>>, %arg9: memref<16x16x18xbf16, #tpu.memory_space<vmem>>) attributes {dimension_semantics = [#tpu.dimension_semantics<parallel>, #tpu.dimension_semantics<arbitrary>], iteration_bounds = array<i64: 2, 2>, scalar_prefetch = 0 : i64, scratch_operands = 2 : i64, tpu.core_type = #tpu.core_type<tc>, window_params = [{transform_indices = @transform_0, window_bounds = array<i64: 1, 256, 4>}, {pipeline_mode = #tpu.pipeline_mode<synchronous>, transform_indices = @transform_1, window_bounds = array<i64: 2, 4, 2>}, {pipeline_mode = #tpu.pipeline_mode<synchronous>, transform_indices = @transform_2, window_bounds = array<i64: 2, 1, 2>}, {pipeline_mode = #tpu.pipeline_mode<synchronous>, transform_indices = @transform_3, window_bounds = array<i64: 2, 18, 4>}, {pipeline_mode = #tpu.pipeline_mode<synchronous>, transform_indices = @transform_4, window_bounds = array<i64: 2, 1, 4>}, {transform_indices = @transform_5, window_bounds = array<i64: 1, 256, 4>}]} {
    %c0_i32 = arith.constant 0 : i32
    %0 = arith.cmpi eq, %arg1, %c0_i32 : i32
    %1 = arith.extui %0 : i1 to i32
    %c0_i32_0 = arith.constant 0 : i32
    %2 = arith.cmpi ne, %1, %c0_i32_0 : i32
    scf.if %2 {
      %c0_68 = arith.constant 0 : index
      %c0_69 = arith.constant 0 : index
      %c0_70 = arith.constant 0 : index
      %57 = vector.load %arg2[%c0_68, %c0_69, %c0_70] : memref<1x256x4xf32, #tpu.memory_space<vmem>>, vector<1x256x4xf32>
      %c0_71 = arith.constant 0 : index
      %c0_72 = arith.constant 0 : index
      %c0_73 = arith.constant 0 : index
      %58 = vector.load %arg7[%c0_71, %c0_72, %c0_73] : memref<1x256x4xf32, #tpu.memory_space<vmem>>, vector<1x256x4xf32>
      tpu.vector_store %arg7[%c0_71, %c0_72, %c0_73], %57 {strides = array<i32>} : memref<1x256x4xf32, #tpu.memory_space<vmem>>, vector<1x256x4xf32>,
      %cst_74 = arith.constant 0.000000e+00 : bf16
      %59 = vector.broadcast %cst_74 : bf16 to vector<1x18x2xbf16>
      %cst_75 = arith.constant 0.000000e+00 : bf16
      %60 = vector.broadcast %cst_75 : bf16 to vector<18x1x2xbf16>
      %c0_76 = arith.constant 0 : index
      %c0_77 = arith.constant 0 : index
      %c0_78 = arith.constant 0 : index
      %61 = vector.load %arg8[%c0_76, %c0_77, %c0_78] : memref<18x18x2xbf16, #tpu.memory_space<vmem>>, vector<1x18x2xbf16>
      tpu.vector_store %arg8[%c0_76, %c0_77, %c0_78], %59 {strides = array<i32>} : memref<18x18x2xbf16, #tpu.memory_space<vmem>>, vector<1x18x2xbf16>,
      %c17 = arith.constant 17 : index
      %c0_79 = arith.constant 0 : index
      %c0_80 = arith.constant 0 : index
      %62 = vector.load %arg8[%c17, %c0_79, %c0_80] : memref<18x18x2xbf16, #tpu.memory_space<vmem>>, vector<1x18x2xbf16>
      tpu.vector_store %arg8[%c17, %c0_79, %c0_80], %59 {strides = array<i32>} : memref<18x18x2xbf16, #tpu.memory_space<vmem>>, vector<1x18x2xbf16>,
      %c0_81 = arith.constant 0 : index
      %c0_82 = arith.constant 0 : index
      %c0_83 = arith.constant 0 : index
      %63 = vector.load %arg8[%c0_81, %c0_82, %c0_83] : memref<18x18x2xbf16, #tpu.memory_space<vmem>>, vector<18x1x2xbf16>
      tpu.vector_store %arg8[%c0_81, %c0_82, %c0_83], %60 {strides = array<i32>} : memref<18x18x2xbf16, #tpu.memory_space<vmem>>, vector<18x1x2xbf16>,
      %c0_84 = arith.constant 0 : index
      %c17_85 = arith.constant 17 : index
      %c0_86 = arith.constant 0 : index
      %64 = vector.load %arg8[%c0_84, %c17_85, %c0_86] : memref<18x18x2xbf16, #tpu.memory_space<vmem>>, vector<18x1x2xbf16>
      tpu.vector_store %arg8[%c0_84, %c17_85, %c0_86], %60 {strides = array<i32>} : memref<18x18x2xbf16, #tpu.memory_space<vmem>>, vector<18x1x2xbf16>,
    } else {
    }
    %c0 = arith.constant 0 : index
    %c0_1 = arith.constant 0 : index
    %c0_2 = arith.constant 0 : index
    %3 = vector.load %arg7[%c0, %c0_1, %c0_2] : memref<1x256x4xf32, #tpu.memory_space<vmem>>, vector<1x256x4xf32>
    %4 = vector.shape_cast %3 : vector<1x256x4xf32> to vector<256x4xf32>
    %5 = arith.truncf %4 : vector<256x4xf32> to vector<256x4xbf16>
    %6 = arith.index_cast %arg1 : i32 to index
    %c0_3 = arith.constant 0 : index
    %c0_4 = arith.constant 0 : index
    %7 = vector.load %arg3[%6, %c0_3, %c0_4] : memref<2x4x2xbf16, #tpu.memory_space<vmem>>, vector<1x4x2xbf16>
    %8 = vector.shape_cast %7 : vector<1x4x2xbf16> to vector<4x2xbf16>
    %cst = arith.constant dense<0.000000e+00> : vector<256x2xf32>
    %9 = tpu.matmul %5, %8, %cst {dimension_numbers = #tpu.dot_dimension_numbers<[1], [0], [0], [1], [0, 0, 1, 1], [], []>} : vector<256x4xbf16>, vector<4x2xbf16>, vector<256x2xf32> -> vector<256x2xf32>
    %10 = arith.index_cast %arg1 : i32 to index
    %c0_5 = arith.constant 0 : index
    %c0_6 = arith.constant 0 : index
    %11 = vector.load %arg4[%10, %c0_5, %c0_6] : memref<2x1x2xf32, #tpu.memory_space<vmem>>, vector<1x1x2xf32>
    %12 = vector.shape_cast %11 : vector<1x1x2xf32> to vector<1x2xf32>
    %13 = vector.broadcast %12 : vector<1x2xf32> to vector<256x2xf32>
    %14 = arith.addf %9, %13 : vector<256x2xf32>
    %cst_7 = arith.constant 1.000000e-01 : f32
    %15 = vector.broadcast %cst_7 : f32 to vector<256x2xf32>
    %16 = arith.mulf %15, %14 : vector<256x2xf32>
    %17 = arith.maximumf %14, %16 : vector<256x2xf32>
    %18 = arith.truncf %17 : vector<256x2xf32> to vector<256x2xbf16>
    %19 = vector.shape_cast %18 : vector<256x2xbf16> to vector<16x16x2xbf16>
    %c1 = arith.constant 1 : index
    %c1_8 = arith.constant 1 : index
    %c0_9 = arith.constant 0 : index
    %20 = vector.load %arg8[%c1, %c1_8, %c0_9] : memref<18x18x2xbf16, #tpu.memory_space<vmem>>, vector<16x16x2xbf16>
    tpu.vector_store %arg8[%c1, %c1_8, %c0_9], %19 {strides = array<i32>} : memref<18x18x2xbf16, #tpu.memory_space<vmem>>, vector<16x16x2xbf16>,
    %c0_10 = arith.constant 0 : index
    %c0_11 = arith.constant 0 : index
    %c0_12 = arith.constant 0 : index
    %21 = vector.load %arg8[%c0_10, %c0_11, %c0_12] : memref<18x18x2xbf16, #tpu.memory_space<vmem>>, vector<16x16x2xbf16>
    %c0_13 = arith.constant 0 : index
    %c0_14 = arith.constant 0 : index
    %c0_15 = arith.constant 0 : index
    %22 = vector.load %arg9[%c0_13, %c0_14, %c0_15] : memref<16x16x18xbf16, #tpu.memory_space<vmem>>, vector<16x16x2xbf16>
    tpu.vector_store %arg9[%c0_13, %c0_14, %c0_15], %21 {strides = array<i32>} : memref<16x16x18xbf16, #tpu.memory_space<vmem>>, vector<16x16x2xbf16>,
    %c0_16 = arith.constant 0 : index
    %c1_17 = arith.constant 1 : index
    %c0_18 = arith.constant 0 : index
    %23 = vector.load %arg8[%c0_16, %c1_17, %c0_18] : memref<18x18x2xbf16, #tpu.memory_space<vmem>>, vector<16x16x2xbf16>
    %c0_19 = arith.constant 0 : index
    %c0_20 = arith.constant 0 : index
    %c2 = arith.constant 2 : index
    %24 = vector.load %arg9[%c0_19, %c0_20, %c2] : memref<16x16x18xbf16, #tpu.memory_space<vmem>>, vector<16x16x2xbf16>
    tpu.vector_store %arg9[%c0_19, %c0_20, %c2], %23 {strides = array<i32>} : memref<16x16x18xbf16, #tpu.memory_space<vmem>>, vector<16x16x2xbf16>,
    %c0_21 = arith.constant 0 : index
    %c2_22 = arith.constant 2 : index
    %c0_23 = arith.constant 0 : index
    %25 = vector.load %arg8[%c0_21, %c2_22, %c0_23] : memref<18x18x2xbf16, #tpu.memory_space<vmem>>, vector<16x16x2xbf16>
    %c0_24 = arith.constant 0 : index
    %c0_25 = arith.constant 0 : index
    %c4 = arith.constant 4 : index
    %26 = vector.load %arg9[%c0_24, %c0_25, %c4] : memref<16x16x18xbf16, #tpu.memory_space<vmem>>, vector<16x16x2xbf16>
    tpu.vector_store %arg9[%c0_24, %c0_25, %c4], %25 {strides = array<i32>} : memref<16x16x18xbf16, #tpu.memory_space<vmem>>, vector<16x16x2xbf16>,
    %c1_26 = arith.constant 1 : index
    %c0_27 = arith.constant 0 : index
    %c0_28 = arith.constant 0 : index
    %27 = vector.load %arg8[%c1_26, %c0_27, %c0_28] : memref<18x18x2xbf16, #tpu.memory_space<vmem>>, vector<16x16x2xbf16>
    %c0_29 = arith.constant 0 : index
    %c0_30 = arith.constant 0 : index
    %c6 = arith.constant 6 : index
    %28 = vector.load %arg9[%c0_29, %c0_30, %c6] : memref<16x16x18xbf16, #tpu.memory_space<vmem>>, vector<16x16x2xbf16>
    tpu.vector_store %arg9[%c0_29, %c0_30, %c6], %27 {strides = array<i32>} : memref<16x16x18xbf16, #tpu.memory_space<vmem>>, vector<16x16x2xbf16>,
    %c1_31 = arith.constant 1 : index
    %c1_32 = arith.constant 1 : index
    %c0_33 = arith.constant 0 : index
    %29 = vector.load %arg8[%c1_31, %c1_32, %c0_33] : memref<18x18x2xbf16, #tpu.memory_space<vmem>>, vector<16x16x2xbf16>
    %c0_34 = arith.constant 0 : index
    %c0_35 = arith.constant 0 : index
    %c8 = arith.constant 8 : index
    %30 = vector.load %arg9[%c0_34, %c0_35, %c8] : memref<16x16x18xbf16, #tpu.memory_space<vmem>>, vector<16x16x2xbf16>
    tpu.vector_store %arg9[%c0_34, %c0_35, %c8], %29 {strides = array<i32>} : memref<16x16x18xbf16, #tpu.memory_space<vmem>>, vector<16x16x2xbf16>,
    %c1_36 = arith.constant 1 : index
    %c2_37 = arith.constant 2 : index
    %c0_38 = arith.constant 0 : index
    %31 = vector.load %arg8[%c1_36, %c2_37, %c0_38] : memref<18x18x2xbf16, #tpu.memory_space<vmem>>, vector<16x16x2xbf16>
    %c0_39 = arith.constant 0 : index
    %c0_40 = arith.constant 0 : index
    %c10 = arith.constant 10 : index
    %32 = vector.load %arg9[%c0_39, %c0_40, %c10] : memref<16x16x18xbf16, #tpu.memory_space<vmem>>, vector<16x16x2xbf16>
    tpu.vector_store %arg9[%c0_39, %c0_40, %c10], %31 {strides = array<i32>} : memref<16x16x18xbf16, #tpu.memory_space<vmem>>, vector<16x16x2xbf16>,
    %c2_41 = arith.constant 2 : index
    %c0_42 = arith.constant 0 : index
    %c0_43 = arith.constant 0 : index
    %33 = vector.load %arg8[%c2_41, %c0_42, %c0_43] : memref<18x18x2xbf16, #tpu.memory_space<vmem>>, vector<16x16x2xbf16>
    %c0_44 = arith.constant 0 : index
    %c0_45 = arith.constant 0 : index
    %c12 = arith.constant 12 : index
    %34 = vector.load %arg9[%c0_44, %c0_45, %c12] : memref<16x16x18xbf16, #tpu.memory_space<vmem>>, vector<16x16x2xbf16>
    tpu.vector_store %arg9[%c0_44, %c0_45, %c12], %33 {strides = array<i32>} : memref<16x16x18xbf16, #tpu.memory_space<vmem>>, vector<16x16x2xbf16>,
    %c2_46 = arith.constant 2 : index
    %c1_47 = arith.constant 1 : index
    %c0_48 = arith.constant 0 : index
    %35 = vector.load %arg8[%c2_46, %c1_47, %c0_48] : memref<18x18x2xbf16, #tpu.memory_space<vmem>>, vector<16x16x2xbf16>
    %c0_49 = arith.constant 0 : index
    %c0_50 = arith.constant 0 : index
    %c14 = arith.constant 14 : index
    %36 = vector.load %arg9[%c0_49, %c0_50, %c14] : memref<16x16x18xbf16, #tpu.memory_space<vmem>>, vector<16x16x2xbf16>
    tpu.vector_store %arg9[%c0_49, %c0_50, %c14], %35 {strides = array<i32>} : memref<16x16x18xbf16, #tpu.memory_space<vmem>>, vector<16x16x2xbf16>,
    %c2_51 = arith.constant 2 : index
    %c2_52 = arith.constant 2 : index
    %c0_53 = arith.constant 0 : index
    %37 = vector.load %arg8[%c2_51, %c2_52, %c0_53] : memref<18x18x2xbf16, #tpu.memory_space<vmem>>, vector<16x16x2xbf16>
    %c0_54 = arith.constant 0 : index
    %c0_55 = arith.constant 0 : index
    %c16 = arith.constant 16 : index
    %38 = vector.load %arg9[%c0_54, %c0_55, %c16] : memref<16x16x18xbf16, #tpu.memory_space<vmem>>, vector<16x16x2xbf16>
    tpu.vector_store %arg9[%c0_54, %c0_55, %c16], %37 {strides = array<i32>} : memref<16x16x18xbf16, #tpu.memory_space<vmem>>, vector<16x16x2xbf16>,
    %c0_56 = arith.constant 0 : index
    %c0_57 = arith.constant 0 : index
    %c0_58 = arith.constant 0 : index
    %39 = vector.load %arg9[%c0_56, %c0_57, %c0_58] : memref<16x16x18xbf16, #tpu.memory_space<vmem>>, vector<16x16x18xbf16>
    %40 = vector.shape_cast %39 : vector<16x16x18xbf16> to vector<256x18xbf16>
    %41 = arith.index_cast %arg1 : i32 to index
    %c0_59 = arith.constant 0 : index
    %c0_60 = arith.constant 0 : index
    %42 = vector.load %arg5[%41, %c0_59, %c0_60] : memref<2x18x4xbf16, #tpu.memory_space<vmem>>, vector<1x18x4xbf16>
    %43 = vector.shape_cast %42 : vector<1x18x4xbf16> to vector<18x4xbf16>
    %cst_61 = arith.constant dense<0.000000e+00> : vector<256x4xf32>
    %44 = tpu.matmul %40, %43, %cst_61 {dimension_numbers = #tpu.dot_dimension_numbers<[1], [0], [0], [1], [0, 0, 1, 1], [], []>} : vector<256x18xbf16>, vector<18x4xbf16>, vector<256x4xf32> -> vector<256x4xf32>
    %45 = arith.index_cast %arg1 : i32 to index
    %c0_62 = arith.constant 0 : index
    %c0_63 = arith.constant 0 : index
    %46 = vector.load %arg6[%45, %c0_62, %c0_63] : memref<2x1x4xf32, #tpu.memory_space<vmem>>, vector<1x1x4xf32>
    %47 = vector.shape_cast %46 : vector<1x1x4xf32> to vector<1x4xf32>
    %48 = vector.broadcast %47 : vector<1x4xf32> to vector<256x4xf32>
    %49 = arith.addf %44, %48 : vector<256x4xf32>
    %cst_64 = arith.constant 1.000000e-01 : f32
    %50 = vector.broadcast %cst_64 : f32 to vector<256x4xf32>
    %51 = arith.mulf %50, %49 : vector<256x4xf32>
    %52 = arith.maximumf %49, %51 : vector<256x4xf32>
    %53 = arith.addf %4, %52 : vector<256x4xf32>
    %c0_65 = arith.constant 0 : index
    %c0_66 = arith.constant 0 : index
    %c0_67 = arith.constant 0 : index
    %54 = vector.load %arg7[%c0_65, %c0_66, %c0_67] : memref<1x256x4xf32, #tpu.memory_space<vmem>>, vector<1x256x4xf32>
    %55 = vector.shape_cast %54 : vector<1x256x4xf32> to vector<256x4xf32>
    %56 = vector.shape_cast %53 : vector<256x4xf32> to vector<1x256x4xf32>
    tpu.vector_store %arg7[%c0_65, %c0_66, %c0_67], %56 {strides = array<i32>} : memref<1x256x4xf32, #tpu.memory_space<vmem>>, vector<1x256x4xf32>,
    return
  }
  func.func @transform_0(%arg0: i32, %arg1: i32) -> (i32, i32, i32) {
    %c0_i32 = arith.constant 0 : i32
    %c0_i32_0 = arith.constant 0 : i32
    %c0_i32_1 = arith.constant 0 : i32
    return %arg0, %c0_i32, %c0_i32_0 : i32, i32, i32
  }
  func.func @transform_1(%arg0: i32, %arg1: i32) -> (i32, i32, i32) {
    %c0_i32 = arith.constant 0 : i32
    %c0_i32_0 = arith.constant 0 : i32
    %c0_i32_1 = arith.constant 0 : i32
    %c0_i32_2 = arith.constant 0 : i32
    return %c0_i32, %c0_i32_0, %c0_i32_1 : i32, i32, i32
  }
  func.func @transform_2(%arg0: i32, %arg1: i32) -> (i32, i32, i32) {
    %c0_i32 = arith.constant 0 : i32
    %c0_i32_0 = arith.constant 0 : i32
    %c0_i32_1 = arith.constant 0 : i32
    %c0_i32_2 = arith.constant 0 : i32
    return %c0_i32, %c0_i32_0, %c0_i32_1 : i32, i32, i32
  }
  func.func @transform_3(%arg0: i32, %arg1: i32) -> (i32, i32, i32) {
    %c0_i32 = arith.constant 0 : i32
    %c0_i32_0 = arith.constant 0 : i32
    %c0_i32_1 = arith.constant 0 : i32
    %c0_i32_2 = arith.constant 0 : i32
    return %c0_i32, %c0_i32_0, %c0_i32_1 : i32, i32, i32
  }
  func.func @transform_4(%arg0: i32, %arg1: i32) -> (i32, i32, i32) {
    %c0_i32 = arith.constant 0 : i32
    %c0_i32_0 = arith.constant 0 : i32
    %c0_i32_1 = arith.constant 0 : i32
    %c0_i32_2 = arith.constant 0 : i32
    return %c0_i32, %c0_i32_0, %c0_i32_1 : i32, i32, i32
  }
  func.func @transform_5(%arg0: i32, %arg1: i32) -> (i32, i32, i32) {
    %c0_i32 = arith.constant 0 : i32
    %c0_i32_0 = arith.constant 0 : i32
    %c0_i32_1 = arith.constant 0 : i32
    return %arg0, %c0_i32, %c0_i32_0 : i32, i32, i32
  }
}

</mosaic_0001>

<llo_original>
// kernel: tpu_custom_call.1
$region0: #{tpu_custom_call.1}
  #allocation0 [shape = 'u32[]', space=smem, size = 0x4, offset = 0x4, fixed_abs, tag = 'smem constant byte address 0x4 - core index']
  #allocation1 [shape = 'u32[144,128]{1,0:T(1,128)}', space=vmem, size = 0x12000, scoped, tag = 'internal scratch']
  #allocation2 [shape = 'bf16[18,18,2]{2,1,0:T(8,128)(2,1)}', space=vmem, size = 0x1b000, scoped, tag = 'scratch operand']
  #allocation3 [shape = 'bf16[16,16,18]{2,1,0:T(8,128)(2,1)}', space=vmem, size = 0x10000, scoped, tag = 'scratch operand']
  %s0 = inlined_call_operand.vmem [shape: f32[2,256,4], index: 0, kind: input, shape index: {}]
  %s1 = inlined_call_operand.vmem [shape: bf16[2,4,2], index: 1, kind: input, shape index: {}]
  %s2 = inlined_call_operand.vmem [shape: f32[2,1,2], index: 2, kind: input, shape index: {}]
  %s3 = inlined_call_operand.vmem [shape: bf16[2,18,4], index: 3, kind: input, shape index: {}]
  %s4 = inlined_call_operand.vmem [shape: f32[2,1,4], index: 4, kind: input, shape index: {}]
  %s5 = inlined_call_operand.vmem [shape: f32[2,256,4], index: 5, kind: output, shape index: {}]
  %s6 = sld [smem:[#allocation0]]
  $region57: #{tpu_custom_call.1} parent=0
    _
  %s8 = ssub.s32 1, %s6
  %s9 = scalar_select 0, %s8, %s6
  loop: start=0, step=1, limit=6
  $region2: #{tpu_custom_call.1} parent=0 // loop_pre_header
    _
  $region3: #{tpu_custom_call.1} parent=0 // loop_header
    %s11 = sphi 0, %s15
    %p12 = scmp.ge.s32.totalorder %s11, 6
    %s18 = sphi 0, %s30
    %s19 = sphi 0, %s26
    %s20 = sphi 0, %s18
    %s21 = sphi 0, %s19
    %s22 = sphi 0, %s20
    %s23 = sphi 0, %s21
    %s33 = sphi 0, %s35
    %s36 = sphi 0, %s33
    %s37 = sphi 0, %s36
    %s53 = sphi 0, %s37
    %s57 = sphi 0, %s57
    %s59 = sphi 0, %s57
    %s60 = sphi 0, %s59
    %s74 = sphi 0, %s60
    %s78 = sphi 0, %s78
    %s80 = sphi 0, %s78
    %s81 = sphi 0, %s80
    %s95 = sphi 0, %s81
    %s99 = sphi 0, %s99
    %s101 = sphi 0, %s99
    %s102 = sphi 0, %s101
    %s116 = sphi 0, %s102
    %s120 = sphi 0, %s120
    %s122 = sphi 0, %s120
    %s123 = sphi 0, %s122
    %s137 = sphi 0, %s123
    %s143 = sphi 0, %s145
    %s146 = sphi 0, %s143
    %s147 = sphi 0, %s146
    %s163 = sphi 0, %s147
  $region4: #{tpu_custom_call.1} parent=0 // loop_header_branch
    %14 = sbr.rel (%p12) target = $region8
  $region5: #{tpu_custom_call.1} parent=0 // loop_body
    %s16 = ssub.s32 %s11, 1
    %s17 = ssub.s32 %s11, 2
    %s24 = sadd.s32 1, %s19
    %p25 = scmp.ge.s32.totalorder %s24, 2
    %s26 = scalar_select %p25, 0, %s24
    %s27 = sadd.s32 1, %s18
    %s28 = scalar_select %p25, %s27, %s18
    %p29 = scmp.ge.s32.totalorder %s28, 2
    %s30 = scalar_select %p29, 0, %s28
    %s31 = ssub.s32 %s18, %s30
    %p32 = scmp.eq.s32.totalorder %s31, 0
    %s34 = sadd.s32 %s33, 1
    %s35 = scalar_select %p32, %s33, %s34
    %p38 = pneg %p32
    %p39 = scmp.eq.s32.totalorder %s11, 3
    %p40 = por %p38, %p39
    %p41 = scmp.ne.s32.totalorder %s33, %s36
    %p42 = scmp.eq.s32.totalorder %s11, 0
    %p43 = por %p41, %p42
    %p44 = scmp.ne.s32.totalorder %s33, %s36
    %p45 = scmp.eq.s32.totalorder %s16, 3
    %p46 = por %p44, %p45
    %p47 = scmp.ne.s32.totalorder %s36, %s37
    %p48 = scmp.eq.s32.totalorder %s16, 0
    %p49 = por %p47, %p48
    %p50 = scmp.ne.s32.totalorder %s36, %s37
    %p51 = scmp.eq.s32.totalorder %s17, 3
    %p52 = por %p50, %p51
    %p54 = scmp.ne.s32.totalorder %s37, %s53
    %p55 = scmp.eq.s32.totalorder %s17, 0
    %p56 = por %p54, %p55
    %s58 = sadd.s32 %s57, 1
    %p61 = scmp.eq.s32.totalorder %s11, 3
    %p62 = scmp.ne.s32.totalorder %s57, %s59
    %p63 = scmp.eq.s32.totalorder %s11, 0
    %p64 = por %p62, %p63
    %p65 = scmp.ne.s32.totalorder %s57, %s59
    %p66 = scmp.eq.s32.totalorder %s16, 3
    %p67 = por %p65, %p66
    %p68 = scmp.ne.s32.totalorder %s59, %s60
    %p69 = scmp.eq.s32.totalorder %s16, 0
    %p70 = por %p68, %p69
    %p71 = scmp.ne.s32.totalorder %s59, %s60
    %p72 = scmp.eq.s32.totalorder %s17, 3
    %p73 = por %p71, %p72
    %p75 = scmp.ne.s32.totalorder %s60, %s74
    %p76 = scmp.eq.s32.totalorder %s17, 0
    %p77 = por %p75, %p76
    %s79 = sadd.s32 %s78, 1
    %p82 = scmp.eq.s32.totalorder %s11, 3
    %p83 = scmp.ne.s32.totalorder %s78, %s80
    %p84 = scmp.eq.s32.totalorder %s11, 0
    %p85 = por %p83, %p84
    %p86 = scmp.ne.s32.totalorder %s78, %s80
    %p87 = scmp.eq.s32.totalorder %s16, 3
    %p88 = por %p86, %p87
    %p89 = scmp.ne.s32.totalorder %s80, %s81
    %p90 = scmp.eq.s32.totalorder %s16, 0
    %p91 = por %p89, %p90
    %p92 = scmp.ne.s32.totalorder %s80, %s81
    %p93 = scmp.eq.s32.totalorder %s17, 3
    %p94 = por %p92, %p93
    %p96 = scmp.ne.s32.totalorder %s81, %s95
    %p97 = scmp.eq.s32.totalorder %s17, 0
    %p98 = por %p96, %p97
    %s100 = sadd.s32 %s99, 1
    %p103 = scmp.eq.s32.totalorder %s11, 3
    %p104 = scmp.ne.s32.totalorder %s99, %s101
    %p105 = scmp.eq.s32.totalorder %s11, 0
    %p106 = por %p104, %p105
    %p107 = scmp.ne.s32.totalorder %s99, %s101
    %p108 = scmp.eq.s32.totalorder %s16, 3
    %p109 = por %p107, %p108
    %p110 = scmp.ne.s32.totalorder %s101, %s102
    %p111 = scmp.eq.s32.totalorder %s16, 0
    %p112 = por %p110, %p111
    %p113 = scmp.ne.s32.totalorder %s101, %s102
    %p114 = scmp.eq.s32.totalorder %s17, 3
    %p115 = por %p113, %p114
    %p117 = scmp.ne.s32.totalorder %s102, %s116
    %p118 = scmp.eq.s32.totalorder %s17, 0
    %p119 = por %p117, %p118
    %s121 = sadd.s32 %s120, 1
    %p124 = scmp.eq.s32.totalorder %s11, 3
    %p125 = scmp.ne.s32.totalorder %s120, %s122
    %p126 = scmp.eq.s32.totalorder %s11, 0
    %p127 = por %p125, %p126
    %p128 = scmp.ne.s32.totalorder %s120, %s122
    %p129 = scmp.eq.s32.totalorder %s16, 3
    %p130 = por %p128, %p129
    %p131 = scmp.ne.s32.totalorder %s122, %s123
    %p132 = scmp.eq.s32.totalorder %s16, 0
    %p133 = por %p131, %p132
    %p134 = scmp.ne.s32.totalorder %s122, %s123
    %p135 = scmp.eq.s32.totalorder %s17, 3
    %p136 = por %p134, %p135
    %p138 = scmp.ne.s32.totalorder %s123, %s137
    %p139 = scmp.eq.s32.totalorder %s17, 0
    %p140 = por %p138, %p139
    %s141 = ssub.s32 %s18, %s30
    %p142 = scmp.eq.s32.totalorder %s141, 0
    %s144 = sadd.s32 %s143, 1
    %s145 = scalar_select %p142, %s143, %s144
    %p148 = pneg %p142
    %p149 = scmp.eq.s32.totalorder %s11, 3
    %p150 = por %p148, %p149
    %p151 = scmp.ne.s32.totalorder %s143, %s146
    %p152 = scmp.eq.s32.totalorder %s11, 0
    %p153 = por %p151, %p152
    %p154 = scmp.ne.s32.totalorder %s143, %s146
    %p155 = scmp.eq.s32.totalorder %s16, 3
    %p156 = por %p154, %p155
    %p157 = scmp.ne.s32.totalorder %s146, %s147
    %p158 = scmp.eq.s32.totalorder %s16, 0
    %p159 = por %p157, %p158
    %p160 = scmp.ne.s32.totalorder %s146, %s147
    %p161 = scmp.eq.s32.totalorder %s17, 3
    %p162 = por %p160, %p161
    %p164 = scmp.ne.s32.totalorder %s147, %s163
    %p165 = scmp.eq.s32.totalorder %s17, 0
    %p166 = por %p164, %p165
    %p167 = scmp.le.s32.totalorder 1, %s11
    %p168 = scmp.lt.s32.totalorder %s11, 5
    %p169 = pnand %p167, %p168
    %p170 = pneg %p169
    // Predicated region
    $region9: #{tpu_custom_call.1} parent=5 // pred_check
      _
    $region10: #{tpu_custom_call.1} parent=5 // pred_check_branch
      %172 = sbr.rel (%p169) target = $region12
    $region11: #{tpu_custom_call.1} parent=5 // pred_region
      %s173 = ssub.s32 %s11, 1
      // Predicated region
      $region13: #{tpu_custom_call.1} parent=11 // pred_check
        %p174 = pneg %p70
      $region14: #{tpu_custom_call.1} parent=11 // pred_check_branch
        %176 = sbr.rel (%p174) target = $region16
      $region15: #{tpu_custom_call.1} parent=11 // pred_region
        _
      $region16: #{tpu_custom_call.1} parent=11 // pred_fallthru
        _
      // Predicated region
      $region17: #{tpu_custom_call.1} parent=11 // pred_check
        %p177 = pneg %p91
      $region18: #{tpu_custom_call.1} parent=11 // pred_check_branch
        %179 = sbr.rel (%p177) target = $region20
      $region19: #{tpu_custom_call.1} parent=11 // pred_region
        _
      $region20: #{tpu_custom_call.1} parent=11 // pred_fallthru
        _
      // Predicated region
      $region21: #{tpu_custom_call.1} parent=11 // pred_check
        %p180 = pneg %p112
      $region22: #{tpu_custom_call.1} parent=11 // pred_check_branch
        %182 = sbr.rel (%p180) target = $region24
      $region23: #{tpu_custom_call.1} parent=11 // pred_region
        _
      $region24: #{tpu_custom_call.1} parent=11 // pred_fallthru
        _
      // Predicated region
      $region25: #{tpu_custom_call.1} parent=11 // pred_check
        %p183 = pneg %p133
      $region26: #{tpu_custom_call.1} parent=11 // pred_check_branch
        %185 = sbr.rel (%p183) target = $region28
      $region27: #{tpu_custom_call.1} parent=11 // pred_region
        _
      $region28: #{tpu_custom_call.1} parent=11 // pred_fallthru
        _
    $region12: #{tpu_custom_call.1} parent=5 // pred_fallthru
      _
    %p186 = scmp.lt.s32.totalorder %s11, 4
    // Predicated region
    $region29: #{tpu_custom_call.1} parent=5 // pred_check
      %p187 = pneg %p186
    $region30: #{tpu_custom_call.1} parent=5 // pred_check_branch
      %189 = sbr.rel (%p187) target = $region32
    $region31: #{tpu_custom_call.1} parent=5 // pred_region
      // Predicated region
      $region33: #{tpu_custom_call.1} parent=31 // pred_check
        %p190 = pneg %p43
      $region34: #{tpu_custom_call.1} parent=31 // pred_check_branch
        %192 = sbr.rel (%p190) target = $region36
      $region35: #{tpu_custom_call.1} parent=31 // pred_region
        %p193 = scmp.lt.s32.totalorder %s18, 1
        %s194 = scalar_select %p193, %s18, 1
        %s195 = smul.addr %s194, 32
        %s196 = smul.addr %s195, 8
        %s197 = scalar_lea.vmem %s0, %s196
      $region36: #{tpu_custom_call.1} parent=31 // pred_fallthru
        _
    $region32: #{tpu_custom_call.1} parent=5 // pred_fallthru
      _
    %p198 = scmp.le.s32.totalorder 1, %s11
    %p199 = scmp.lt.s32.totalorder %s11, 5
    %p200 = pnand %p198, %p199
    %p201 = pneg %p200
    // Predicated region
    $region37: #{tpu_custom_call.1} parent=5 // pred_check
      _
    $region38: #{tpu_custom_call.1} parent=5 // pred_check_branch
      %203 = sbr.rel (%p200) target = $region40
    $region39: #{tpu_custom_call.1} parent=5 // pred_region
      %s204 = ssub.s32 %s11, 1
      %p205 = scmp.lt.s32.totalorder %s20, 1
      %s206 = scalar_select %p205, %s20, 1
      %s207 = smul.addr %s206, 32
      %s208 = smul.addr %s207, 8
      %s209 = scalar_lea.vmem %s0, %s208
      %p210 = pneg %p49
      %p211 = pneg %p46
      %p212 = pneg %p70
      %p213 = pneg %p67
      %p214 = pneg %p91
      %p215 = pneg %p88
      %p216 = pneg %p112
      %p217 = pneg %p109
      %p218 = pneg %p133
      %p219 = pneg %p130
      %p220 = pneg %p159
      %p221 = pneg %p156
      %p222 = scmp.lt.s32.totalorder %s20, 1
      %s223 = scalar_select %p222, %s20, 1
      %s224 = smul.addr %s223, 32
      %s225 = smul.addr %s224, 8
      %s226 = scalar_lea.vmem %s5, %s225
      %p227 = scmp.lt.s32.totalorder %s20, 1
      %s228 = scalar_select %p227, %s20, 1
      %s229 = smul.addr %s228, 32
      %s230 = smul.addr %s229, 8
      %s231 = scalar_lea.vmem %s0, %s230
      %p232 = scmp.lt.s32.totalorder %s20, 1
      %s233 = scalar_select %p232, %s20, 1
      %s234 = smul.addr %s233, 32
      %s235 = smul.addr %s234, 8
      %s236 = scalar_lea.vmem %s5, %s235
      %p238 = scmp.eq.s32.totalorder %s21, 0
      // Predicated region
      $region41: #{tpu_custom_call.1} parent=39 // pred_check
        %p239 = pneg %p238
      $region42: #{tpu_custom_call.1} parent=39 // pred_check_branch
        %241 = sbr.rel (%p239) target = $region44
      $region43: #{tpu_custom_call.1} parent=39 // pred_region
        %v242 = vld [vmem:[%s231] sm:$0xff]
        %v243 = vld [vmem:[%s231 + $0x8] sm:$0xff]
        %v244 = vld [vmem:[%s231 + $0x10] sm:$0xff]
        %v245 = vld [vmem:[%s231 + $0x18] sm:$0xff]
        %v246 = vld [vmem:[%s231 + $0x20] sm:$0xff]
        %v247 = vld [vmem:[%s231 + $0x28] sm:$0xff]
        %v248 = vld [vmem:[%s231 + $0x30] sm:$0xff]
        %v249 = vld [vmem:[%s231 + $0x38] sm:$0xff]
        %v250 = vld [vmem:[%s231 + $0x40] sm:$0xff]
        %v251 = vld [vmem:[%s231 + $0x48] sm:$0xff]
        %v252 = vld [vmem:[%s231 + $0x50] sm:$0xff]
        %v253 = vld [vmem:[%s231 + $0x58] sm:$0xff]
        %v254 = vld [vmem:[%s231 + $0x60] sm:$0xff]
        %v255 = vld [vmem:[%s231 + $0x68] sm:$0xff]
        %v256 = vld [vmem:[%s231 + $0x70] sm:$0xff]
        %v257 = vld [vmem:[%s231 + $0x78] sm:$0xff]
        %v258 = vld [vmem:[%s231 + $0x80] sm:$0xff]
        %v259 = vld [vmem:[%s231 + $0x88] sm:$0xff]
        %v260 = vld [vmem:[%s231 + $0x90] sm:$0xff]
        %v261 = vld [vmem:[%s231 + $0x98] sm:$0xff]
        %v262 = vld [vmem:[%s231 + $0xa0] sm:$0xff]
        %v263 = vld [vmem:[%s231 + $0xa8] sm:$0xff]
        %v264 = vld [vmem:[%s231 + $0xb0] sm:$0xff]
        %v265 = vld [vmem:[%s231 + $0xb8] sm:$0xff]
        %v266 = vld [vmem:[%s231 + $0xc0] sm:$0xff]
        %v267 = vld [vmem:[%s231 + $0xc8] sm:$0xff]
        %v268 = vld [vmem:[%s231 + $0xd0] sm:$0xff]
        %v269 = vld [vmem:[%s231 + $0xd8] sm:$0xff]
        %v270 = vld [vmem:[%s231 + $0xe0] sm:$0xff]
        %v271 = vld [vmem:[%s231 + $0xe8] sm:$0xff]
        %v272 = vld [vmem:[%s231 + $0xf0] sm:$0xff]
        %v273 = vld [vmem:[%s231 + $0xf8] sm:$0xff]
        %vm274 = vcmask 31744
        %275 = vst.msk [vmem:[%s236] sm:$0xff] %vm274, %v242
        %276 = vst.msk [vmem:[%s236 + $0x8] sm:$0xff] %vm274, %v243
        %277 = vst.msk [vmem:[%s236 + $0x10] sm:$0xff] %vm274, %v244
        %278 = vst.msk [vmem:[%s236 + $0x18] sm:$0xff] %vm274, %v245
        %279 = vst.msk [vmem:[%s236 + $0x20] sm:$0xff] %vm274, %v246
        %280 = vst.msk [vmem:[%s236 + $0x28] sm:$0xff] %vm274, %v247
        %281 = vst.msk [vmem:[%s236 + $0x30] sm:$0xff] %vm274, %v248
        %282 = vst.msk [vmem:[%s236 + $0x38] sm:$0xff] %vm274, %v249
        %283 = vst.msk [vmem:[%s236 + $0x40] sm:$0xff] %vm274, %v250
        %284 = vst.msk [vmem:[%s236 + $0x48] sm:$0xff] %vm274, %v251
        %285 = vst.msk [vmem:[%s236 + $0x50] sm:$0xff] %vm274, %v252
        %286 = vst.msk [vmem:[%s236 + $0x58] sm:$0xff] %vm274, %v253
        %287 = vst.msk [vmem:[%s236 + $0x60] sm:$0xff] %vm274, %v254
        %288 = vst.msk [vmem:[%s236 + $0x68] sm:$0xff] %vm274, %v255
        %289 = vst.msk [vmem:[%s236 + $0x70] sm:$0xff] %vm274, %v256
        %290 = vst.msk [vmem:[%s236 + $0x78] sm:$0xff] %vm274, %v257
        %291 = vst.msk [vmem:[%s236 + $0x80] sm:$0xff] %vm274, %v258
        %292 = vst.msk [vmem:[%s236 + $0x88] sm:$0xff] %vm274, %v259
        %293 = vst.msk [vmem:[%s236 + $0x90] sm:$0xff] %vm274, %v260
        %294 = vst.msk [vmem:[%s236 + $0x98] sm:$0xff] %vm274, %v261
        %295 = vst.msk [vmem:[%s236 + $0xa0] sm:$0xff] %vm274, %v262
        %296 = vst.msk [vmem:[%s236 + $0xa8] sm:$0xff] %vm274, %v263
        %297 = vst.msk [vmem:[%s236 + $0xb0] sm:$0xff] %vm274, %v264
        %298 = vst.msk [vmem:[%s236 + $0xb8] sm:$0xff] %vm274, %v265
        %299 = vst.msk [vmem:[%s236 + $0xc0] sm:$0xff] %vm274, %v266
        %300 = vst.msk [vmem:[%s236 + $0xc8] sm:$0xff] %vm274, %v267
        %301 = vst.msk [vmem:[%s236 + $0xd0] sm:$0xff] %vm274, %v268
        %302 = vst.msk [vmem:[%s236 + $0xd8] sm:$0xff] %vm274, %v269
        %303 = vst.msk [vmem:[%s236 + $0xe0] sm:$0xff] %vm274, %v270
        %304 = vst.msk [vmem:[%s236 + $0xe8] sm:$0xff] %vm274, %v271
        %305 = vst.msk [vmem:[%s236 + $0xf0] sm:$0xff] %vm274, %v272
        %306 = vst.msk [vmem:[%s236 + $0xf8] sm:$0xff] %vm274, %v273
        %vm307 = vcmask 11264
        %308 = vst.msk [vmem:[#allocation2] sm:$0xf] %vm307, 0
        %309 = vst.msk [vmem:[#allocation2 + $0x4] sm:$0xf] %vm307, 0
        %vm310 = vcmask 8192
        %311 = vst.msk [vmem:[#allocation2 + $0x8] sm:$0x1] %vm310, 0
        %s312 = scalar_lea.vmem [#allocation2], 204
        %313 = vst.msk [vmem:[%s312] sm:$0xf] %vm307, 0
        %314 = vst.msk [vmem:[%s312 + $0x4] sm:$0xf] %vm307, 0
        %315 = vst.msk [vmem:[%s312 + $0x8] sm:$0x1] %vm310, 0
        %vm316 = vcmask 8192
        %vm317 = vsmask.f32 256
        %vm318 = vmand %vm316, %vm317
        %v319 = vld [vmem:[#allocation2] sm:$0x1]
        %v320 = vsel %vm318, 0, %v319
        %321 = vst [vmem:[#allocation2] sm:$0x1] %v320
        %v322 = vld [vmem:[#allocation2 + $0xc] sm:$0x1]
        %v323 = vsel %vm318, 0, %v322
        %324 = vst [vmem:[#allocation2 + $0xc] sm:$0x1] %v323
        %v325 = vld [vmem:[#allocation2 + $0x18] sm:$0x1]
        %v326 = vsel %vm318, 0, %v325
        %327 = vst [vmem:[#allocation2 + $0x18] sm:$0x1] %v326
        %v328 = vld [vmem:[#allocation2 + $0x24] sm:$0x1]
        %v329 = vsel %vm318, 0, %v328
        %330 = vst [vmem:[#allocation2 + $0x24] sm:$0x1] %v329
        %v331 = vld [vmem:[#allocation2 + $0x30] sm:$0x1]
        %v332 = vsel %vm318, 0, %v331
        %333 = vst [vmem:[#allocation2 + $0x30] sm:$0x1] %v332
        %v334 = vld [vmem:[#allocation2 + $0x3c] sm:$0x1]
        %v335 = vsel %vm318, 0, %v334
        %336 = vst [vmem:[#allocation2 + $0x3c] sm:$0x1] %v335
        %v337 = vld [vmem:[#allocation2 + $0x48] sm:$0x1]
        %v338 = vsel %vm318, 0, %v337
        %339 = vst [vmem:[#allocation2 + $0x48] sm:$0x1] %v338
        %v340 = vld [vmem:[#allocation2 + $0x54] sm:$0x1]
        %v341 = vsel %vm318, 0, %v340
        %342 = vst [vmem:[#allocation2 + $0x54] sm:$0x1] %v341
        %v343 = vld [vmem:[#allocation2 + $0x60] sm:$0x1]
        %v344 = vsel %vm318, 0, %v343
        %345 = vst [vmem:[#allocation2 + $0x60] sm:$0x1] %v344
        %v346 = vld [vmem:[#allocation2 + $0x6c] sm:$0x1]
        %v347 = vsel %vm318, 0, %v346
        %348 = vst [vmem:[#allocation2 + $0x6c] sm:$0x1] %v347
        %v349 = vld [vmem:[#allocation2 + $0x78] sm:$0x1]
        %v350 = vsel %vm318, 0, %v349
        %351 = vst [vmem:[#allocation2 + $0x78] sm:$0x1] %v350
        %v352 = vld [vmem:[#allocation2 + $0x84] sm:$0x1]
        %v353 = vsel %vm318, 0, %v352
        %354 = vst [vmem:[#allocation2 + $0x84] sm:$0x1] %v353
        %v355 = vld [vmem:[#allocation2 + $0x90] sm:$0x1]
        %v356 = vsel %vm318, 0, %v355
        %357 = vst [vmem:[#allocation2 + $0x90] sm:$0x1] %v356
        %v358 = vld [vmem:[#allocation2 + $0x9c] sm:$0x1]
        %v359 = vsel %vm318, 0, %v358
        %360 = vst [vmem:[#allocation2 + $0x9c] sm:$0x1] %v359
        %v361 = vld [vmem:[#allocation2 + $0xa8] sm:$0x1]
        %v362 = vsel %vm318, 0, %v361
        %363 = vst [vmem:[#allocation2 + $0xa8] sm:$0x1] %v362
        %v364 = vld [vmem:[#allocation2 + $0xb4] sm:$0x1]
        %v365 = vsel %vm318, 0, %v364
        %366 = vst [vmem:[#allocation2 + $0xb4] sm:$0x1] %v365
        %v367 = vld [vmem:[#allocation2 + $0xc0] sm:$0x1]
        %v368 = vsel %vm318, 0, %v367
        %369 = vst [vmem:[#allocation2 + $0xc0] sm:$0x1] %v368
        %v370 = vld [vmem:[#allocation2 + $0xcc] sm:$0x1]
        %v371 = vsel %vm318, 0, %v370
        %372 = vst [vmem:[#allocation2 + $0xcc] sm:$0x1] %v371
        %vm373 = vsmask.f32 7938
        %vm374 = vmand %vm316, %vm373
        %v375 = vld [vmem:[#allocation2 + $0x8] sm:$0x1]
        %v376 = vsel %vm374, 0, %v375
        %377 = vst [vmem:[#allocation2 + $0x8] sm:$0x1] %v376
        %v378 = vld [vmem:[#allocation2 + $0x14] sm:$0x1]
        %v379 = vsel %vm374, 0, %v378
        %380 = vst [vmem:[#allocation2 + $0x14] sm:$0x1] %v379
        %v381 = vld [vmem:[#allocation2 + $0x20] sm:$0x1]
        %v382 = vsel %vm374, 0, %v381
        %383 = vst [vmem:[#allocation2 + $0x20] sm:$0x1] %v382
        %v384 = vld [vmem:[#allocation2 + $0x2c] sm:$0x1]
        %v385 = vsel %vm374, 0, %v384
        %386 = vst [vmem:[#allocation2 + $0x2c] sm:$0x1] %v385
        %v387 = vld [vmem:[#allocation2 + $0x38] sm:$0x1]
        %v388 = vsel %vm374, 0, %v387
        %389 = vst [vmem:[#allocation2 + $0x38] sm:$0x1] %v388
        %v390 = vld [vmem:[#allocation2 + $0x44] sm:$0x1]
        %v391 = vsel %vm374, 0, %v390
        %392 = vst [vmem:[#allocation2 + $0x44] sm:$0x1] %v391
        %v393 = vld [vmem:[#allocation2 + $0x50] sm:$0x1]
        %v394 = vsel %vm374, 0, %v393
        %395 = vst [vmem:[#allocation2 + $0x50] sm:$0x1] %v394
        %v396 = vld [vmem:[#allocation2 + $0x5c] sm:$0x1]
        %v397 = vsel %vm374, 0, %v396
        %398 = vst [vmem:[#allocation2 + $0x5c] sm:$0x1] %v397
        %v399 = vld [vmem:[#allocation2 + $0x68] sm:$0x1]
        %v400 = vsel %vm374, 0, %v399
        %401 = vst [vmem:[#allocation2 + $0x68] sm:$0x1] %v400
        %v402 = vld [vmem:[#allocation2 + $0x74] sm:$0x1]
        %v403 = vsel %vm374, 0, %v402
        %404 = vst [vmem:[#allocation2 + $0x74] sm:$0x1] %v403
        %v405 = vld [vmem:[#allocation2 + $0x80] sm:$0x1]
        %v406 = vsel %vm374, 0, %v405
        %407 = vst [vmem:[#allocation2 + $0x80] sm:$0x1] %v406
        %v408 = vld [vmem:[#allocation2 + $0x8c] sm:$0x1]
        %v409 = vsel %vm374, 0, %v408
        %410 = vst [vmem:[#allocation2 + $0x8c] sm:$0x1] %v409
        %v411 = vld [vmem:[#allocation2 + $0x98] sm:$0x1]
        %v412 = vsel %vm374, 0, %v411
        %413 = vst [vmem:[#allocation2 + $0x98] sm:$0x1] %v412
        %v414 = vld [vmem:[#allocation2 + $0xa4] sm:$0x1]
        %v415 = vsel %vm374, 0, %v414
        %416 = vst [vmem:[#allocation2 + $0xa4] sm:$0x1] %v415
        %v417 = vld [vmem:[#allocation2 + $0xb0] sm:$0x1]
        %v418 = vsel %vm374, 0, %v417
        %419 = vst [vmem:[#allocation2 + $0xb0] sm:$0x1] %v418
        %v420 = vld [vmem:[#allocation2 + $0xbc] sm:$0x1]
        %v421 = vsel %vm374, 0, %v420
        %422 = vst [vmem:[#allocation2 + $0xbc] sm:$0x1] %v421
        %v423 = vld [vmem:[#allocation2 + $0xc8] sm:$0x1]
        %v424 = vsel %vm374, 0, %v423
        %425 = vst [vmem:[#allocation2 + $0xc8] sm:$0x1] %v424
        %v426 = vld [vmem:[#allocation2 + $0xd4] sm:$0x1]
        %v427 = vsel %vm374, 0, %v426
        %428 = vst [vmem:[#allocation2 + $0xd4] sm:$0x1] %v427
      $region44: #{tpu_custom_call.1} parent=39 // pred_fallthru
        _
      %v429 = vld [vmem:[%s236] sm:$0xff]
      %v430 = vld [vmem:[%s236 + $0x8] sm:$0xff]
      %v431 = vld [vmem:[%s236 + $0x10] sm:$0xff]
      %v432 = vld [vmem:[%s236 + $0x18] sm:$0xff]
      %v433 = vld [vmem:[%s236 + $0x20] sm:$0xff]
      %v434 = vld [vmem:[%s236 + $0x28] sm:$0xff]
      %v435 = vld [vmem:[%s236 + $0x30] sm:$0xff]
      %v436 = vld [vmem:[%s236 + $0x38] sm:$0xff]
      %v437 = vld [vmem:[%s236 + $0x40] sm:$0xff]
      %v438 = vld [vmem:[%s236 + $0x48] sm:$0xff]
      %v439 = vld [vmem:[%s236 + $0x50] sm:$0xff]
      %v440 = vld [vmem:[%s236 + $0x58] sm:$0xff]
      %v441 = vld [vmem:[%s236 + $0x60] sm:$0xff]
      %v442 = vld [vmem:[%s236 + $0x68] sm:$0xff]
      %v443 = vld [vmem:[%s236 + $0x70] sm:$0xff]
      %v444 = vld [vmem:[%s236 + $0x78] sm:$0xff]
      %v445 = vld [vmem:[%s236 + $0x80] sm:$0xff]
      %v446 = vld [vmem:[%s236 + $0x88] sm:$0xff]
      %v447 = vld [vmem:[%s236 + $0x90] sm:$0xff]
      %v448 = vld [vmem:[%s236 + $0x98] sm:$0xff]
      %v449 = vld [vmem:[%s236 + $0xa0] sm:$0xff]
      %v450 = vld [vmem:[%s236 + $0xa8] sm:$0xff]
      %v451 = vld [vmem:[%s236 + $0xb0] sm:$0xff]
      %v452 = vld [vmem:[%s236 + $0xb8] sm:$0xff]
      %v453 = vld [vmem:[%s236 + $0xc0] sm:$0xff]
      %v454 = vld [vmem:[%s236 + $0xc8] sm:$0xff]
      %v455 = vld [vmem:[%s236 + $0xd0] sm:$0xff]
      %v456 = vld [vmem:[%s236 + $0xd8] sm:$0xff]
      %v457 = vld [vmem:[%s236 + $0xe0] sm:$0xff]
      %v458 = vld [vmem:[%s236 + $0xe8] sm:$0xff]
      %v459 = vld [vmem:[%s236 + $0xf0] sm:$0xff]
      %v460 = vld [vmem:[%s236 + $0xf8] sm:$0xff]
      %v461 = vpack.c.bf16 %v430, %v429
      %v462 = vpack.c.bf16 %v432, %v431
      %v463 = vpack.c.bf16 %v434, %v433
      %v464 = vpack.c.bf16 %v436, %v435
      %v465 = vpack.c.bf16 %v438, %v437
      %v466 = vpack.c.bf16 %v440, %v439
      %v467 = vpack.c.bf16 %v442, %v441
      %v468 = vpack.c.bf16 %v444, %v443
      %v469 = vpack.c.bf16 %v446, %v445
      %v470 = vpack.c.bf16 %v448, %v447
      %v471 = vpack.c.bf16 %v450, %v449
      %v472 = vpack.c.bf16 %v452, %v451
      %v473 = vpack.c.bf16 %v454, %v453
      %v474 = vpack.c.bf16 %v456, %v455
      %v475 = vpack.c.bf16 %v458, %v457
      %v476 = vpack.c.bf16 %v460, %v459
      %s477 = smul.addr %s21, 2
      %s478 = scalar_lea.vmem %s1, %s477
      %v479 = vld [vmem:[%s478] sm:$0x3]
      %s480 = scalar_lea.vmem %s2, %s21
      %v481 = vld [vmem:[%s480] sm:$0x1]
      %v483 = vlaneseq
      %v484 = vshrl.u32 %v483, 7
      %v485 = vsub.s32 0, %v484
      %v486 = vrot.slane %v481, %v485
      %vm488 = vcmask 31744
      %v490 = vsel %vm488, %v461, 0
      %v493 = vsel %vm488, %v462, 0
      %v496 = vsel %vm488, %v463, 0
      %v499 = vsel %vm488, %v464, 0
      %v502 = vsel %vm488, %v465, 0
      %v505 = vsel %vm488, %v466, 0
      %v508 = vsel %vm488, %v467, 0
      %v511 = vsel %vm488, %v468, 0
      %v514 = vsel %vm488, %v469, 0
      %v517 = vsel %vm488, %v470, 0
      %v520 = vsel %vm488, %v471, 0
      %v523 = vsel %vm488, %v472, 0
      %v526 = vsel %vm488, %v473, 0
      %v529 = vsel %vm488, %v474, 0
      %v532 = vsel %vm488, %v475, 0
      %v535 = vsel %vm488, %v476, 0
      %vm537 = vcmask 1041408
      %v539 = vsel %vm537, %v479, 0
      %541 = vmatprep.subr.bf16.mxu0 0
      %542 = vmatpush1.bf16.msra.mxu0 0
      %543 = vmatprep.subr.bf16.mxu0 0
      %544 = vmatpush1.bf16.msra.mxu0 0
      %545 = vmatprep.subr.bf16.mxu0 0
      %546 = vmatpush1.bf16.msra.mxu0 0
      %547 = vmatprep.subr.bf16.mxu0 0
      %548 = vmatpush1.bf16.msra.mxu0 0
      %549 = vmatprep.subr.bf16.mxu0 0
      %550 = vmatpush1.bf16.msra.mxu0 0
      %551 = vmatprep.subr.bf16.mxu0 0
      %552 = vmatpush1.bf16.msra.mxu0 0
      %553 = vmatprep.subr.bf16.mxu0 0
      %554 = vmatpush1.bf16.msra.mxu0 0
      %555 = vmatprep.subr.bf16.mxu0 0
      %556 = vmatpush1.bf16.msra.mxu0 %v539
      %557 = vmatprep.subr.bf16.mxu0 0
      %558 = vmatpush2.bf16.msra.mxu0 0
      %559 = vmatprep.subr.bf16.mxu0 0
      %560 = vmatpush2.bf16.msra.mxu0 0
      %561 = vmatprep.subr.bf16.mxu0 0
      %562 = vmatpush2.bf16.msra.mxu0 0
      %563 = vmatprep.subr.bf16.mxu0 0
      %564 = vmatpush2.bf16.msra.mxu0 0
      %565 = vmatprep.subr.bf16.mxu0 0
      %566 = vmatpush2.bf16.msra.mxu0 0
      %567 = vmatprep.subr.bf16.mxu0 0
      %568 = vmatpush2.bf16.msra.mxu0 0
      %569 = vmatprep.subr.bf16.mxu0 0
      %570 = vmatpush2.bf16.msra.mxu0 0
      %571 = vmatprep.subr.bf16.mxu0 0
      %572 = vmatpush2.bf16.msra.mxu0 0
      %573 = vmatprep.mubr.bf16.mxu0 0
      %574 = vmatmul.mubr.bf16.gmra.mxu0 %v490
      %v575 = vpop.f32.mrf.mxu0
      %v576 = vadd.f32 %v486, %v575
      %v577 = vpop.f32.mrf.mxu0
      %v578 = vpop.f32.mrf.mxu0
      %v579 = vadd.f32 %v486, %v578
      %v580 = vpop.f32.mrf.mxu0
      %581 = vmatprep.mubr.bf16.mxu0 0
      %582 = vmatmul.mubr.bf16.gmra.mxu0 %v493
      %v583 = vpop.f32.mrf.mxu0
      %v584 = vadd.f32 %v486, %v583
      %v585 = vpop.f32.mrf.mxu0
      %v586 = vpop.f32.mrf.mxu0
      %v587 = vadd.f32 %v486, %v586
      %v588 = vpop.f32.mrf.mxu0
      %589 = vmatprep.mubr.bf16.mxu0 0
      %590 = vmatmul.mubr.bf16.gmra.mxu0 %v496
      %v591 = vpop.f32.mrf.mxu0
      %v592 = vadd.f32 %v486, %v591
      %v593 = vpop.f32.mrf.mxu0
      %v594 = vpop.f32.mrf.mxu0
      %v595 = vadd.f32 %v486, %v594
      %v596 = vpop.f32.mrf.mxu0
      %597 = vmatprep.mubr.bf16.mxu0 0
      %598 = vmatmul.mubr.bf16.gmra.mxu0 %v499
      %v599 = vpop.f32.mrf.mxu0
      %v600 = vadd.f32 %v486, %v599
      %v601 = vpop.f32.mrf.mxu0
      %v602 = vpop.f32.mrf.mxu0
      %v603 = vadd.f32 %v486, %v602
      %v604 = vpop.f32.mrf.mxu0
      %605 = vmatprep.mubr.bf16.mxu0 0
      %606 = vmatmul.mubr.bf16.gmra.mxu0 %v502
      %v607 = vpop.f32.mrf.mxu0
      %v608 = vadd.f32 %v486, %v607
      %v609 = vpop.f32.mrf.mxu0
      %v610 = vpop.f32.mrf.mxu0
      %v611 = vadd.f32 %v486, %v610
      %v612 = vpop.f32.mrf.mxu0
      %613 = vmatprep.mubr.bf16.mxu0 0
      %614 = vmatmul.mubr.bf16.gmra.mxu0 %v505
      %v615 = vpop.f32.mrf.mxu0
      %v616 = vadd.f32 %v486, %v615
      %v617 = vpop.f32.mrf.mxu0
      %v618 = vpop.f32.mrf.mxu0
      %v619 = vadd.f32 %v486, %v618
      %v620 = vpop.f32.mrf.mxu0
      %621 = vmatprep.mubr.bf16.mxu0 0
      %622 = vmatmul.mubr.bf16.gmra.mxu0 %v508
      %v623 = vpop.f32.mrf.mxu0
      %v624 = vadd.f32 %v486, %v623
      %v625 = vpop.f32.mrf.mxu0
      %v626 = vpop.f32.mrf.mxu0
      %v627 = vadd.f32 %v486, %v626
      %v628 = vpop.f32.mrf.mxu0
      %629 = vmatprep.mubr.bf16.mxu0 0
      %630 = vmatmul.mubr.bf16.gmra.mxu0 %v511
      %v631 = vpop.f32.mrf.mxu0
      %v632 = vadd.f32 %v486, %v631
      %v633 = vpop.f32.mrf.mxu0
      %v634 = vpop.f32.mrf.mxu0
      %v635 = vadd.f32 %v486, %v634
      %v636 = vpop.f32.mrf.mxu0
      %637 = vmatprep.mubr.bf16.mxu0 0
      %638 = vmatmul.mubr.bf16.gmra.mxu0 %v514
      %v639 = vpop.f32.mrf.mxu0
      %v640 = vadd.f32 %v486, %v639
      %v641 = vpop.f32.mrf.mxu0
      %v642 = vpop.f32.mrf.mxu0
      %v643 = vadd.f32 %v486, %v642
      %v644 = vpop.f32.mrf.mxu0
      %645 = vmatprep.mubr.bf16.mxu0 0
      %646 = vmatmul.mubr.bf16.gmra.mxu0 %v517
      %v647 = vpop.f32.mrf.mxu0
      %v648 = vadd.f32 %v486, %v647
      %v649 = vpop.f32.mrf.mxu0
      %v650 = vpop.f32.mrf.mxu0
      %v651 = vadd.f32 %v486, %v650
      %v652 = vpop.f32.mrf.mxu0
      %653 = vmatprep.mubr.bf16.mxu0 0
      %654 = vmatmul.mubr.bf16.gmra.mxu0 %v520
      %v655 = vpop.f32.mrf.mxu0
      %v656 = vadd.f32 %v486, %v655
      %v657 = vpop.f32.mrf.mxu0
      %v658 = vpop.f32.mrf.mxu0
      %v659 = vadd.f32 %v486, %v658
      %v660 = vpop.f32.mrf.mxu0
      %661 = vmatprep.mubr.bf16.mxu0 0
      %662 = vmatmul.mubr.bf16.gmra.mxu0 %v523
      %v663 = vpop.f32.mrf.mxu0
      %v664 = vadd.f32 %v486, %v663
      %v665 = vpop.f32.mrf.mxu0
      %v666 = vpop.f32.mrf.mxu0
      %v667 = vadd.f32 %v486, %v666
      %v668 = vpop.f32.mrf.mxu0
      %669 = vmatprep.mubr.bf16.mxu0 0
      %670 = vmatmul.mubr.bf16.gmra.mxu0 %v526
      %v671 = vpop.f32.mrf.mxu0
      %v672 = vadd.f32 %v486, %v671
      %v673 = vpop.f32.mrf.mxu0
      %v674 = vpop.f32.mrf.mxu0
      %v675 = vadd.f32 %v486, %v674
      %v676 = vpop.f32.mrf.mxu0
      %677 = vmatprep.mubr.bf16.mxu0 0
      %678 = vmatmul.mubr.bf16.gmra.mxu0 %v529
      %v679 = vpop.f32.mrf.mxu0
      %v680 = vadd.f32 %v486, %v679
      %v681 = vpop.f32.mrf.mxu0
      %v682 = vpop.f32.mrf.mxu0
      %v683 = vadd.f32 %v486, %v682
      %v684 = vpop.f32.mrf.mxu0
      %685 = vmatprep.mubr.bf16.mxu0 0
      %686 = vmatmul.mubr.bf16.gmra.mxu0 %v532
      %v687 = vpop.f32.mrf.mxu0
      %v688 = vadd.f32 %v486, %v687
      %v689 = vpop.f32.mrf.mxu0
      %v690 = vpop.f32.mrf.mxu0
      %v691 = vadd.f32 %v486, %v690
      %v692 = vpop.f32.mrf.mxu0
      %693 = vmatprep.mubr.bf16.mxu0 0
      %694 = vmatmul.mubr.bf16.gmra.mxu0 %v535
      %v695 = vpop.f32.mrf.mxu0
      %v696 = vadd.f32 %v486, %v695
      %v697 = vpop.f32.mrf.mxu0
      %v698 = vpop.f32.mrf.mxu0
      %v699 = vadd.f32 %v486, %v698
      %v700 = vpop.f32.mrf.mxu0
      %701 = vdwg.mxu0
      %v702 = vmul.f32 %v576, 0.1
      %v703 = vmul.f32 %v579, 0.1
      %v704 = vmul.f32 %v584, 0.1
      %v705 = vmul.f32 %v587, 0.1
      %v706 = vmul.f32 %v592, 0.1
      %v707 = vmul.f32 %v595, 0.1
      %v708 = vmul.f32 %v600, 0.1
      %v709 = vmul.f32 %v603, 0.1
      %v710 = vmul.f32 %v608, 0.1
      %v711 = vmul.f32 %v611, 0.1
      %v712 = vmul.f32 %v616, 0.1
      %v713 = vmul.f32 %v619, 0.1
      %v714 = vmul.f32 %v624, 0.1
      %v715 = vmul.f32 %v627, 0.1
      %v716 = vmul.f32 %v632, 0.1
      %v717 = vmul.f32 %v635, 0.1
      %v718 = vmul.f32 %v640, 0.1
      %v719 = vmul.f32 %v643, 0.1
      %v720 = vmul.f32 %v648, 0.1
      %v721 = vmul.f32 %v651, 0.1
      %v722 = vmul.f32 %v656, 0.1
      %v723 = vmul.f32 %v659, 0.1
      %v724 = vmul.f32 %v664, 0.1
      %v725 = vmul.f32 %v667, 0.1
      %v726 = vmul.f32 %v672, 0.1
      %v727 = vmul.f32 %v675, 0.1
      %v728 = vmul.f32 %v680, 0.1
      %v729 = vmul.f32 %v683, 0.1
      %v730 = vmul.f32 %v688, 0.1
      %v731 = vmul.f32 %v691, 0.1
      %v732 = vmul.f32 %v696, 0.1
      %v733 = vmul.f32 %v699, 0.1
      %v734 = vmax.f32 %v576, %v702
      %v735 = vmax.f32 %v579, %v703
      %v736 = vmax.f32 %v584, %v704
      %v737 = vmax.f32 %v587, %v705
      %v738 = vmax.f32 %v592, %v706
      %v739 = vmax.f32 %v595, %v707
      %v740 = vmax.f32 %v600, %v708
      %v741 = vmax.f32 %v603, %v709
      %v742 = vmax.f32 %v608, %v710
      %v743 = vmax.f32 %v611, %v711
      %v744 = vmax.f32 %v616, %v712
      %v745 = vmax.f32 %v619, %v713
      %v746 = vmax.f32 %v624, %v714
      %v747 = vmax.f32 %v627, %v715
      %v748 = vmax.f32 %v632, %v716
      %v749 = vmax.f32 %v635, %v717
      %v750 = vmax.f32 %v640, %v718
      %v751 = vmax.f32 %v643, %v719
      %v752 = vmax.f32 %v648, %v720
      %v753 = vmax.f32 %v651, %v721
      %v754 = vmax.f32 %v656, %v722
      %v755 = vmax.f32 %v659, %v723
      %v756 = vmax.f32 %v664, %v724
      %v757 = vmax.f32 %v667, %v725
      %v758 = vmax.f32 %v672, %v726
      %v759 = vmax.f32 %v675, %v727
      %v760 = vmax.f32 %v680, %v728
      %v761 = vmax.f32 %v683, %v729
      %v762 = vmax.f32 %v688, %v730
      %v763 = vmax.f32 %v691, %v731
      %v764 = vmax.f32 %v696, %v732
      %v765 = vmax.f32 %v699, %v733
      %v766 = vpack.c.bf16 %v735, %v734
      %v767 = vpack.c.bf16 %v737, %v736
      %v768 = vpack.c.bf16 %v739, %v738
      %v769 = vpack.c.bf16 %v741, %v740
      %v770 = vpack.c.bf16 %v743, %v742
      %v771 = vpack.c.bf16 %v745, %v744
      %v772 = vpack.c.bf16 %v747, %v746
      %v773 = vpack.c.bf16 %v749, %v748
      %v774 = vpack.c.bf16 %v751, %v750
      %v775 = vpack.c.bf16 %v753, %v752
      %v776 = vpack.c.bf16 %v755, %v754
      %v777 = vpack.c.bf16 %v757, %v756
      %v778 = vpack.c.bf16 %v759, %v758
      %v779 = vpack.c.bf16 %v761, %v760
      %v780 = vpack.c.bf16 %v763, %v762
      %v781 = vpack.c.bf16 %v765, %v764
      %v798 = vunpack.c.l.b16 %v766
      %v799 = vunpack.c.h.b16 %v766
      %v800 = vunpack.c.l.b16 %v767
      %v801 = vunpack.c.h.b16 %v767
      %v802 = vunpack.c.l.b16 %v768
      %v803 = vunpack.c.h.b16 %v768
      %v804 = vunpack.c.l.b16 %v769
      %v805 = vunpack.c.h.b16 %v769
      %v806 = vunpack.c.l.b16 %v770
      %v807 = vunpack.c.h.b16 %v770
      %v808 = vunpack.c.l.b16 %v771
      %v809 = vunpack.c.h.b16 %v771
      %v810 = vunpack.c.l.b16 %v772
      %v811 = vunpack.c.h.b16 %v772
      %v812 = vunpack.c.l.b16 %v773
      %v813 = vunpack.c.h.b16 %v773
      %v814 = vunpack.c.l.b16 %v774
      %v815 = vunpack.c.h.b16 %v774
      %v816 = vunpack.c.l.b16 %v775
      %v817 = vunpack.c.h.b16 %v775
      %v818 = vunpack.c.l.b16 %v776
      %v819 = vunpack.c.h.b16 %v776
      %v820 = vunpack.c.l.b16 %v777
      %v821 = vunpack.c.h.b16 %v777
      %v822 = vunpack.c.l.b16 %v778
      %v823 = vunpack.c.h.b16 %v778
      %v824 = vunpack.c.l.b16 %v779
      %v825 = vunpack.c.h.b16 %v779
      %v826 = vunpack.c.l.b16 %v780
      %v827 = vunpack.c.h.b16 %v780
      %v828 = vunpack.c.l.b16 %v781
      %v829 = vunpack.c.h.b16 %v781
      %v830 = vpack.c.b16 %v798, %v798
      %v831 = vpack.c.b16 %v799, %v799
      %v832 = vpack.c.b16 %v800, %v800
      %v833 = vpack.c.b16 %v801, %v801
      %v834 = vpack.c.b16 %v802, %v802
      %v835 = vpack.c.b16 %v803, %v803
      %v836 = vpack.c.b16 %v804, %v804
      %v837 = vpack.c.b16 %v805, %v805
      %v838 = vpack.c.b16 %v806, %v806
      %v839 = vpack.c.b16 %v807, %v807
      %v840 = vpack.c.b16 %v808, %v808
      %v841 = vpack.c.b16 %v809, %v809
      %v842 = vpack.c.b16 %v810, %v810
      %v843 = vpack.c.b16 %v811, %v811
      %v844 = vpack.c.b16 %v812, %v812
      %v845 = vpack.c.b16 %v813, %v813
      %v846 = vpack.c.b16 %v814, %v814
      %v847 = vpack.c.b16 %v815, %v815
      %v848 = vpack.c.b16 %v816, %v816
      %v849 = vpack.c.b16 %v817, %v817
      %v850 = vpack.c.b16 %v818, %v818
      %v851 = vpack.c.b16 %v819, %v819
      %v852 = vpack.c.b16 %v820, %v820
      %v853 = vpack.c.b16 %v821, %v821
      %v854 = vpack.c.b16 %v822, %v822
      %v855 = vpack.c.b16 %v823, %v823
      %v856 = vpack.c.b16 %v824, %v824
      %v857 = vpack.c.b16 %v825, %v825
      %v858 = vpack.c.b16 %v826, %v826
      %v859 = vpack.c.b16 %v827, %v827
      %v860 = vpack.c.b16 %v828, %v828
      %v861 = vpack.c.b16 %v829, %v829
      %vm862 = vsmask.f32 256
      %vm863 = vsmask.f32 4368
      %vm864 = vmor %vm862, %vm863
      %v866 = vshrl.u32 %v830, 16
      %v868 = vrot.slane %v866, 7
      %v869 = vshll.u32 %v830, 16
      %v871 = vor.u32 %v868, %v869
      %v872 = vrot.slane %v868, 4
      %v874 = vshrl.u32 %v831, 16
      %v876 = vrot.slane %v874, 7
      %v877 = vshll.u32 %v831, 16
      %v879 = vor.u32 %v876, %v877
      %v880 = vsel %vm864, %v872, %v879
      %v881 = vrot.slane %v876, 4
      %v883 = vshrl.u32 %v832, 16
      %v885 = vrot.slane %v883, 7
      %v886 = vshll.u32 %v832, 16
      %v888 = vor.u32 %v885, %v886
      %v889 = vrot.slane %v885, 4
      %v891 = vshrl.u32 %v833, 16
      %v893 = vrot.slane %v891, 7
      %v894 = vshll.u32 %v833, 16
      %v896 = vor.u32 %v893, %v894
      %v897 = vsel %vm864, %v889, %v896
      %v898 = vrot.slane %v893, 4
      %v900 = vshrl.u32 %v834, 16
      %v902 = vrot.slane %v900, 7
      %v903 = vshll.u32 %v834, 16
      %v905 = vor.u32 %v902, %v903
      %v906 = vrot.slane %v902, 4
      %v908 = vshrl.u32 %v835, 16
      %v910 = vrot.slane %v908, 7
      %v911 = vshll.u32 %v835, 16
      %v913 = vor.u32 %v910, %v911
      %v914 = vsel %vm864, %v906, %v913
      %v915 = vrot.slane %v910, 4
      %v917 = vshrl.u32 %v836, 16
      %v919 = vrot.slane %v917, 7
      %v920 = vshll.u32 %v836, 16
      %v922 = vor.u32 %v919, %v920
      %v923 = vrot.slane %v919, 4
      %v925 = vshrl.u32 %v837, 16
      %v927 = vrot.slane %v925, 7
      %v928 = vshll.u32 %v837, 16
      %v930 = vor.u32 %v927, %v928
      %v931 = vsel %vm864, %v923, %v930
      %v932 = vrot.slane %v927, 4
      %v934 = vshrl.u32 %v838, 16
      %v936 = vrot.slane %v934, 7
      %v937 = vshll.u32 %v838, 16
      %v939 = vor.u32 %v936, %v937
      %v940 = vrot.slane %v936, 4
      %v942 = vshrl.u32 %v839, 16
      %v944 = vrot.slane %v942, 7
      %v945 = vshll.u32 %v839, 16
      %v947 = vor.u32 %v944, %v945
      %v948 = vsel %vm864, %v940, %v947
      %v949 = vrot.slane %v944, 4
      %v951 = vshrl.u32 %v840, 16
      %v953 = vrot.slane %v951, 7
      %v954 = vshll.u32 %v840, 16
      %v956 = vor.u32 %v953, %v954
      %v957 = vrot.slane %v953, 4
      %v959 = vshrl.u32 %v841, 16
      %v961 = vrot.slane %v959, 7
      %v962 = vshll.u32 %v841, 16
      %v964 = vor.u32 %v961, %v962
      %v965 = vsel %vm864, %v957, %v964
      %v966 = vrot.slane %v961, 4
      %v968 = vshrl.u32 %v842, 16
      %v970 = vrot.slane %v968, 7
      %v971 = vshll.u32 %v842, 16
      %v973 = vor.u32 %v970, %v971
      %v974 = vrot.slane %v970, 4
      %v976 = vshrl.u32 %v843, 16
      %v978 = vrot.slane %v976, 7
      %v979 = vshll.u32 %v843, 16
      %v981 = vor.u32 %v978, %v979
      %v982 = vsel %vm864, %v974, %v981
      %v983 = vrot.slane %v978, 4
      %v985 = vshrl.u32 %v844, 16
      %v987 = vrot.slane %v985, 7
      %v988 = vshll.u32 %v844, 16
      %v990 = vor.u32 %v987, %v988
      %v991 = vrot.slane %v987, 4
      %v993 = vshrl.u32 %v845, 16
      %v995 = vrot.slane %v993, 7
      %v996 = vshll.u32 %v845, 16
      %v998 = vor.u32 %v995, %v996
      %v999 = vsel %vm864, %v991, %v998
      %v1000 = vrot.slane %v995, 4
      %v1002 = vshrl.u32 %v846, 16
      %v1004 = vrot.slane %v1002, 7
      %v1005 = vshll.u32 %v846, 16
      %v1007 = vor.u32 %v1004, %v1005
      %v1008 = vrot.slane %v1004, 4
      %v1010 = vshrl.u32 %v847, 16
      %v1012 = vrot.slane %v1010, 7
      %v1013 = vshll.u32 %v847, 16
      %v1015 = vor.u32 %v1012, %v1013
      %v1016 = vsel %vm864, %v1008, %v1015
      %v1017 = vrot.slane %v1012, 4
      %v1019 = vshrl.u32 %v848, 16
      %v1021 = vrot.slane %v1019, 7
      %v1022 = vshll.u32 %v848, 16
      %v1024 = vor.u32 %v1021, %v1022
      %v1025 = vrot.slane %v1021, 4
      %v1027 = vshrl.u32 %v849, 16
      %v1029 = vrot.slane %v1027, 7
      %v1030 = vshll.u32 %v849, 16
      %v1032 = vor.u32 %v1029, %v1030
      %v1033 = vsel %vm864, %v1025, %v1032
      %v1034 = vrot.slane %v1029, 4
      %v1036 = vshrl.u32 %v850, 16
      %v1038 = vrot.slane %v1036, 7
      %v1039 = vshll.u32 %v850, 16
      %v1041 = vor.u32 %v1038, %v1039
      %v1042 = vrot.slane %v1038, 4
      %v1044 = vshrl.u32 %v851, 16
      %v1046 = vrot.slane %v1044, 7
      %v1047 = vshll.u32 %v851, 16
      %v1049 = vor.u32 %v1046, %v1047
      %v1050 = vsel %vm864, %v1042, %v1049
      %v1051 = vrot.slane %v1046, 4
      %v1053 = vshrl.u32 %v852, 16
      %v1055 = vrot.slane %v1053, 7
      %v1056 = vshll.u32 %v852, 16
      %v1058 = vor.u32 %v1055, %v1056
      %v1059 = vrot.slane %v1055, 4
      %v1061 = vshrl.u32 %v853, 16
      %v1063 = vrot.slane %v1061, 7
      %v1064 = vshll.u32 %v853, 16
      %v1066 = vor.u32 %v1063, %v1064
      %v1067 = vsel %vm864, %v1059, %v1066
      %v1068 = vrot.slane %v1063, 4
      %v1070 = vshrl.u32 %v854, 16
      %v1072 = vrot.slane %v1070, 7
      %v1073 = vshll.u32 %v854, 16
      %v1075 = vor.u32 %v1072, %v1073
      %v1076 = vrot.slane %v1072, 4
      %v1078 = vshrl.u32 %v855, 16
      %v1080 = vrot.slane %v1078, 7
      %v1081 = vshll.u32 %v855, 16
      %v1083 = vor.u32 %v1080, %v1081
      %v1084 = vsel %vm864, %v1076, %v1083
      %v1085 = vrot.slane %v1080, 4
      %v1087 = vshrl.u32 %v856, 16
      %v1089 = vrot.slane %v1087, 7
      %v1090 = vshll.u32 %v856, 16
      %v1092 = vor.u32 %v1089, %v1090
      %v1093 = vrot.slane %v1089, 4
      %v1095 = vshrl.u32 %v857, 16
      %v1097 = vrot.slane %v1095, 7
      %v1098 = vshll.u32 %v857, 16
      %v1100 = vor.u32 %v1097, %v1098
      %v1101 = vsel %vm864, %v1093, %v1100
      %v1102 = vrot.slane %v1097, 4
      %v1104 = vshrl.u32 %v858, 16
      %v1106 = vrot.slane %v1104, 7
      %v1107 = vshll.u32 %v858, 16
      %v1109 = vor.u32 %v1106, %v1107
      %v1110 = vrot.slane %v1106, 4
      %v1112 = vshrl.u32 %v859, 16
      %v1114 = vrot.slane %v1112, 7
      %v1115 = vshll.u32 %v859, 16
      %v1117 = vor.u32 %v1114, %v1115
      %v1118 = vsel %vm864, %v1110, %v1117
      %v1119 = vrot.slane %v1114, 4
      %v1121 = vshrl.u32 %v860, 16
      %v1123 = vrot.slane %v1121, 7
      %v1124 = vshll.u32 %v860, 16
      %v1126 = vor.u32 %v1123, %v1124
      %v1127 = vrot.slane %v1123, 4
      %v1129 = vshrl.u32 %v861, 16
      %v1131 = vrot.slane %v1129, 7
      %v1132 = vshll.u32 %v861, 16
      %v1134 = vor.u32 %v1131, %v1132
      %v1135 = vsel %vm864, %v1127, %v1134
      %v1136 = vrot.slane %v1131, 4
      %s1185 = scalar_lea.vmem [#allocation2], 12
      %vm1186 = vcmask 11264
      %vm1187 = vsmask.f32 7938
      %vm1188 = vmand %vm1186, %vm1187
      %v1189 = vld [vmem:[%s1185] sm:$0xf]
      %v1190 = vsel %vm1188, %v871, %v1189
      %1191 = vst [vmem:[%s1185] sm:$0xf] %v1190
      %vm1192 = vcmask 11264
      %1193 = vst.msk [vmem:[%s1185 + $0x4] sm:$0xf] %vm1192, %v880
      %vm1194 = vcmask 8192
      %vm1195 = vmand %vm1194, %vm862
      %v1196 = vld [vmem:[%s1185 + $0x8] sm:$0x1]
      %v1197 = vsel %vm1195, %v881, %v1196
      %1198 = vst [vmem:[%s1185 + $0x8] sm:$0x1] %v1197
      %v1199 = vld [vmem:[%s1185 + $0xc] sm:$0xf]
      %v1200 = vsel %vm1188, %v888, %v1199
      %1201 = vst [vmem:[%s1185 + $0xc] sm:$0xf] %v1200
      %1202 = vst.msk [vmem:[%s1185 + $0x10] sm:$0xf] %vm1192, %v897
      %v1203 = vld [vmem:[%s1185 + $0x14] sm:$0x1]
      %v1204 = vsel %vm1195, %v898, %v1203
      %1205 = vst [vmem:[%s1185 + $0x14] sm:$0x1] %v1204
      %v1206 = vld [vmem:[%s1185 + $0x18] sm:$0xf]
      %v1207 = vsel %vm1188, %v905, %v1206
      %1208 = vst [vmem:[%s1185 + $0x18] sm:$0xf] %v1207
      %1209 = vst.msk [vmem:[%s1185 + $0x1c] sm:$0xf] %vm1192, %v914
      %v1210 = vld [vmem:[%s1185 + $0x20] sm:$0x1]
      %v1211 = vsel %vm1195, %v915, %v1210
      %1212 = vst [vmem:[%s1185 + $0x20] sm:$0x1] %v1211
      %v1213 = vld [vmem:[%s1185 + $0x24] sm:$0xf]
      %v1214 = vsel %vm1188, %v922, %v1213
      %1215 = vst [vmem:[%s1185 + $0x24] sm:$0xf] %v1214
      %1216 = vst.msk [vmem:[%s1185 + $0x28] sm:$0xf] %vm1192, %v931
      %v1217 = vld [vmem:[%s1185 + $0x2c] sm:$0x1]
      %v1218 = vsel %vm1195, %v932, %v1217
      %1219 = vst [vmem:[%s1185 + $0x2c] sm:$0x1] %v1218
      %v1220 = vld [vmem:[%s1185 + $0x30] sm:$0xf]
      %v1221 = vsel %vm1188, %v939, %v1220
      %1222 = vst [vmem:[%s1185 + $0x30] sm:$0xf] %v1221
      %1223 = vst.msk [vmem:[%s1185 + $0x34] sm:$0xf] %vm1192, %v948
      %v1224 = vld [vmem:[%s1185 + $0x38] sm:$0x1]
      %v1225 = vsel %vm1195, %v949, %v1224
      %1226 = vst [vmem:[%s1185 + $0x38] sm:$0x1] %v1225
      %v1227 = vld [vmem:[%s1185 + $0x3c] sm:$0xf]
      %v1228 = vsel %vm1188, %v956, %v1227
      %1229 = vst [vmem:[%s1185 + $0x3c] sm:$0xf] %v1228
      %1230 = vst.msk [vmem:[%s1185 + $0x40] sm:$0xf] %vm1192, %v965
      %v1231 = vld [vmem:[%s1185 + $0x44] sm:$0x1]
      %v1232 = vsel %vm1195, %v966, %v1231
      %1233 = vst [vmem:[%s1185 + $0x44] sm:$0x1] %v1232
      %v1234 = vld [vmem:[%s1185 + $0x48] sm:$0xf]
      %v1235 = vsel %vm1188, %v973, %v1234
      %1236 = vst [vmem:[%s1185 + $0x48] sm:$0xf] %v1235
      %1237 = vst.msk [vmem:[%s1185 + $0x4c] sm:$0xf] %vm1192, %v982
      %v1238 = vld [vmem:[%s1185 + $0x50] sm:$0x1]
      %v1239 = vsel %vm1195, %v983, %v1238
      %1240 = vst [vmem:[%s1185 + $0x50] sm:$0x1] %v1239
      %v1241 = vld [vmem:[%s1185 + $0x54] sm:$0xf]
      %v1242 = vsel %vm1188, %v990, %v1241
      %1243 = vst [vmem:[%s1185 + $0x54] sm:$0xf] %v1242
      %1244 = vst.msk [vmem:[%s1185 + $0x58] sm:$0xf] %vm1192, %v999
      %v1245 = vld [vmem:[%s1185 + $0x5c] sm:$0x1]
      %v1246 = vsel %vm1195, %v1000, %v1245
      %1247 = vst [vmem:[%s1185 + $0x5c] sm:$0x1] %v1246
      %v1248 = vld [vmem:[%s1185 + $0x60] sm:$0xf]
      %v1249 = vsel %vm1188, %v1007, %v1248
      %1250 = vst [vmem:[%s1185 + $0x60] sm:$0xf] %v1249
      %1251 = vst.msk [vmem:[%s1185 + $0x64] sm:$0xf] %vm1192, %v1016
      %v1252 = vld [vmem:[%s1185 + $0x68] sm:$0x1]
      %v1253 = vsel %vm1195, %v1017, %v1252
      %1254 = vst [vmem:[%s1185 + $0x68] sm:$0x1] %v1253
      %v1255 = vld [vmem:[%s1185 + $0x6c] sm:$0xf]
      %v1256 = vsel %vm1188, %v1024, %v1255
      %1257 = vst [vmem:[%s1185 + $0x6c] sm:$0xf] %v1256
      %1258 = vst.msk [vmem:[%s1185 + $0x70] sm:$0xf] %vm1192, %v1033
      %v1259 = vld [vmem:[%s1185 + $0x74] sm:$0x1]
      %v1260 = vsel %vm1195, %v1034, %v1259
      %1261 = vst [vmem:[%s1185 + $0x74] sm:$0x1] %v1260
      %v1262 = vld [vmem:[%s1185 + $0x78] sm:$0xf]
      %v1263 = vsel %vm1188, %v1041, %v1262
      %1264 = vst [vmem:[%s1185 + $0x78] sm:$0xf] %v1263
      %1265 = vst.msk [vmem:[%s1185 + $0x7c] sm:$0xf] %vm1192, %v1050
      %v1266 = vld [vmem:[%s1185 + $0x80] sm:$0x1]
      %v1267 = vsel %vm1195, %v1051, %v1266
      %1268 = vst [vmem:[%s1185 + $0x80] sm:$0x1] %v1267
      %v1269 = vld [vmem:[%s1185 + $0x84] sm:$0xf]
      %v1270 = vsel %vm1188, %v1058, %v1269
      %1271 = vst [vmem:[%s1185 + $0x84] sm:$0xf] %v1270
      %1272 = vst.msk [vmem:[%s1185 + $0x88] sm:$0xf] %vm1192, %v1067
      %v1273 = vld [vmem:[%s1185 + $0x8c] sm:$0x1]
      %v1274 = vsel %vm1195, %v1068, %v1273
      %1275 = vst [vmem:[%s1185 + $0x8c] sm:$0x1] %v1274
      %v1276 = vld [vmem:[%s1185 + $0x90] sm:$0xf]
      %v1277 = vsel %vm1188, %v1075, %v1276
      %1278 = vst [vmem:[%s1185 + $0x90] sm:$0xf] %v1277
      %1279 = vst.msk [vmem:[%s1185 + $0x94] sm:$0xf] %vm1192, %v1084
      %v1280 = vld [vmem:[%s1185 + $0x98] sm:$0x1]
      %v1281 = vsel %vm1195, %v1085, %v1280
      %1282 = vst [vmem:[%s1185 + $0x98] sm:$0x1] %v1281
      %v1283 = vld [vmem:[%s1185 + $0x9c] sm:$0xf]
      %v1284 = vsel %vm1188, %v1092, %v1283
      %1285 = vst [vmem:[%s1185 + $0x9c] sm:$0xf] %v1284
      %1286 = vst.msk [vmem:[%s1185 + $0xa0] sm:$0xf] %vm1192, %v1101
      %v1287 = vld [vmem:[%s1185 + $0xa4] sm:$0x1]
      %v1288 = vsel %vm1195, %v1102, %v1287
      %1289 = vst [vmem:[%s1185 + $0xa4] sm:$0x1] %v1288
      %v1290 = vld [vmem:[%s1185 + $0xa8] sm:$0xf]
      %v1291 = vsel %vm1188, %v1109, %v1290
      %1292 = vst [vmem:[%s1185 + $0xa8] sm:$0xf] %v1291
      %1293 = vst.msk [vmem:[%s1185 + $0xac] sm:$0xf] %vm1192, %v1118
      %v1294 = vld [vmem:[%s1185 + $0xb0] sm:$0x1]
      %v1295 = vsel %vm1195, %v1119, %v1294
      %1296 = vst [vmem:[%s1185 + $0xb0] sm:$0x1] %v1295
      %v1297 = vld [vmem:[%s1185 + $0xb4] sm:$0xf]
      %v1298 = vsel %vm1188, %v1126, %v1297
      %1299 = vst [vmem:[%s1185 + $0xb4] sm:$0xf] %v1298
      %1300 = vst.msk [vmem:[%s1185 + $0xb8] sm:$0xf] %vm1192, %v1135
      %v1301 = vld [vmem:[%s1185 + $0xbc] sm:$0x1]
      %v1302 = vsel %vm1195, %v1136, %v1301
      %1303 = vst [vmem:[%s1185 + $0xbc] sm:$0x1] %v1302
      %v1304 = vld [vmem:[#allocation2] sm:$0xf]
      %v1305 = vld [vmem:[#allocation2 + $0x4] sm:$0xf]
      %v1306 = vld [vmem:[#allocation2 + $0xc] sm:$0xf]
      %v1307 = vld [vmem:[#allocation2 + $0x10] sm:$0xf]
      %v1308 = vld [vmem:[#allocation2 + $0x18] sm:$0xf]
      %v1309 = vld [vmem:[#allocation2 + $0x1c] sm:$0xf]
      %v1310 = vld [vmem:[#allocation2 + $0x24] sm:$0xf]
      %v1311 = vld [vmem:[#allocation2 + $0x28] sm:$0xf]
      %v1312 = vld [vmem:[#allocation2 + $0x30] sm:$0xf]
      %v1313 = vld [vmem:[#allocation2 + $0x34] sm:$0xf]
      %v1314 = vld [vmem:[#allocation2 + $0x3c] sm:$0xf]
      %v1315 = vld [vmem:[#allocation2 + $0x40] sm:$0xf]
      %v1316 = vld [vmem:[#allocation2 + $0x48] sm:$0xf]
      %v1317 = vld [vmem:[#allocation2 + $0x4c] sm:$0xf]
      %v1318 = vld [vmem:[#allocation2 + $0x54] sm:$0xf]
      %v1319 = vld [vmem:[#allocation2 + $0x58] sm:$0xf]
      %v1320 = vld [vmem:[#allocation2 + $0x60] sm:$0xf]
      %v1321 = vld [vmem:[#allocation2 + $0x64] sm:$0xf]
      %v1322 = vld [vmem:[#allocation2 + $0x6c] sm:$0xf]
      %v1323 = vld [vmem:[#allocation2 + $0x70] sm:$0xf]
      %v1324 = vld [vmem:[#allocation2 + $0x78] sm:$0xf]
      %v1325 = vld [vmem:[#allocation2 + $0x7c] sm:$0xf]
      %v1326 = vld [vmem:[#allocation2 + $0x84] sm:$0xf]
      %v1327 = vld [vmem:[#allocation2 + $0x88] sm:$0xf]
      %v1328 = vld [vmem:[#allocation2 + $0x90] sm:$0xf]
      %v1329 = vld [vmem:[#allocation2 + $0x94] sm:$0xf]
      %v1330 = vld [vmem:[#allocation2 + $0x9c] sm:$0xf]
      %v1331 = vld [vmem:[#allocation2 + $0xa0] sm:$0xf]
      %v1332 = vld [vmem:[#allocation2 + $0xa8] sm:$0xf]
      %v1333 = vld [vmem:[#allocation2 + $0xac] sm:$0xf]
      %v1334 = vld [vmem:[#allocation2 + $0xb4] sm:$0xf]
      %v1335 = vld [vmem:[#allocation2 + $0xb8] sm:$0xf]
      %1336 = vst.msk [vmem:[#allocation3] sm:$0xf] %vm1192, %v1304
      %1337 = vst.msk [vmem:[#allocation3 + $0x4] sm:$0xf] %vm1192, %v1305
      %1338 = vst.msk [vmem:[#allocation3 + $0x8] sm:$0xf] %vm1192, %v1306
      %1339 = vst.msk [vmem:[#allocation3 + $0xc] sm:$0xf] %vm1192, %v1307
      %1340 = vst.msk [vmem:[#allocation3 + $0x10] sm:$0xf] %vm1192, %v1308
      %1341 = vst.msk [vmem:[#allocation3 + $0x14] sm:$0xf] %vm1192, %v1309
      %1342 = vst.msk [vmem:[#allocation3 + $0x18] sm:$0xf] %vm1192, %v1310
      %1343 = vst.msk [vmem:[#allocation3 + $0x1c] sm:$0xf] %vm1192, %v1311
      %1344 = vst.msk [vmem:[#allocation3 + $0x20] sm:$0xf] %vm1192, %v1312
      %1345 = vst.msk [vmem:[#allocation3 + $0x24] sm:$0xf] %vm1192, %v1313
      %1346 = vst.msk [vmem:[#allocation3 + $0x28] sm:$0xf] %vm1192, %v1314
      %1347 = vst.msk [vmem:[#allocation3 + $0x2c] sm:$0xf] %vm1192, %v1315
      %1348 = vst.msk [vmem:[#allocation3 + $0x30] sm:$0xf] %vm1192, %v1316
      %1349 = vst.msk [vmem:[#allocation3 + $0x34] sm:$0xf] %vm1192, %v1317
      %1350 = vst.msk [vmem:[#allocation3 + $0x38] sm:$0xf] %vm1192, %v1318
      %1351 = vst.msk [vmem:[#allocation3 + $0x3c] sm:$0xf] %vm1192, %v1319
      %1352 = vst.msk [vmem:[#allocation3 + $0x40] sm:$0xf] %vm1192, %v1320
      %1353 = vst.msk [vmem:[#allocation3 + $0x44] sm:$0xf] %vm1192, %v1321
      %1354 = vst.msk [vmem:[#allocation3 + $0x48] sm:$0xf] %vm1192, %v1322
      %1355 = vst.msk [vmem:[#allocation3 + $0x4c] sm:$0xf] %vm1192, %v1323
      %1356 = vst.msk [vmem:[#allocation3 + $0x50] sm:$0xf] %vm1192, %v1324
      %1357 = vst.msk [vmem:[#allocation3 + $0x54] sm:$0xf] %vm1192, %v1325
      %1358 = vst.msk [vmem:[#allocation3 + $0x58] sm:$0xf] %vm1192, %v1326
      %1359 = vst.msk [vmem:[#allocation3 + $0x5c] sm:$0xf] %vm1192, %v1327
      %1360 = vst.msk [vmem:[#allocation3 + $0x60] sm:$0xf] %vm1192, %v1328
      %1361 = vst.msk [vmem:[#allocation3 + $0x64] sm:$0xf] %vm1192, %v1329
      %1362 = vst.msk [vmem:[#allocation3 + $0x68] sm:$0xf] %vm1192, %v1330
      %1363 = vst.msk [vmem:[#allocation3 + $0x6c] sm:$0xf] %vm1192, %v1331
      %1364 = vst.msk [vmem:[#allocation3 + $0x70] sm:$0xf] %vm1192, %v1332
      %1365 = vst.msk [vmem:[#allocation3 + $0x74] sm:$0xf] %vm1192, %v1333
      %1366 = vst.msk [vmem:[#allocation3 + $0x78] sm:$0xf] %vm1192, %v1334
      %1367 = vst.msk [vmem:[#allocation3 + $0x7c] sm:$0xf] %vm1192, %v1335
      %v1368 = vld [vmem:[#allocation2] sm:$0xf]
      %v1369 = vld [vmem:[#allocation2 + $0x4] sm:$0xf]
      %v1370 = vld [vmem:[#allocation2 + $0x8] sm:$0x1]
      %v1371 = vld [vmem:[#allocation2 + $0xc] sm:$0xf]
      %v1372 = vld [vmem:[#allocation2 + $0x10] sm:$0xf]
      %v1373 = vld [vmem:[#allocation2 + $0x14] sm:$0x1]
      %v1374 = vld [vmem:[#allocation2 + $0x18] sm:$0xf]
      %v1375 = vld [vmem:[#allocation2 + $0x1c] sm:$0xf]
      %v1376 = vld [vmem:[#allocation2 + $0x20] sm:$0x1]
      %v1377 = vld [vmem:[#allocation2 + $0x24] sm:$0xf]
      %v1378 = vld [vmem:[#allocation2 + $0x28] sm:$0xf]
      %v1379 = vld [vmem:[#allocation2 + $0x2c] sm:$0x1]
      %v1380 = vld [vmem:[#allocation2 + $0x30] sm:$0xf]
      %v1381 = vld [vmem:[#allocation2 + $0x34] sm:$0xf]
      %v1382 = vld [vmem:[#allocation2 + $0x38] sm:$0x1]
      %v1383 = vld [vmem:[#allocation2 + $0x3c] sm:$0xf]
      %v1384 = vld [vmem:[#allocation2 + $0x40] sm:$0xf]
      %v1385 = vld [vmem:[#allocation2 + $0x44] sm:$0x1]
      %v1386 = vld [vmem:[#allocation2 + $0x48] sm:$0xf]
      %v1387 = vld [vmem:[#allocation2 + $0x4c] sm:$0xf]
      %v1388 = vld [vmem:[#allocation2 + $0x50] sm:$0x1]
      %v1389 = vld [vmem:[#allocation2 + $0x54] sm:$0xf]
      %v1390 = vld [vmem:[#allocation2 + $0x58] sm:$0xf]
      %v1391 = vld [vmem:[#allocation2 + $0x5c] sm:$0x1]
      %v1392 = vld [vmem:[#allocation2 + $0x60] sm:$0xf]
      %v1393 = vld [vmem:[#allocation2 + $0x64] sm:$0xf]
      %v1394 = vld [vmem:[#allocation2 + $0x68] sm:$0x1]
      %v1395 = vld [vmem:[#allocation2 + $0x6c] sm:$0xf]
      %v1396 = vld [vmem:[#allocation2 + $0x70] sm:$0xf]
      %v1397 = vld [vmem:[#allocation2 + $0x74] sm:$0x1]
      %v1398 = vld [vmem:[#allocation2 + $0x78] sm:$0xf]
      %v1399 = vld [vmem:[#allocation2 + $0x7c] sm:$0xf]
      %v1400 = vld [vmem:[#allocation2 + $0x80] sm:$0x1]
      %v1401 = vld [vmem:[#allocation2 + $0x84] sm:$0xf]
      %v1402 = vld [vmem:[#allocation2 + $0x88] sm:$0xf]
      %v1403 = vld [vmem:[#allocation2 + $0x8c] sm:$0x1]
      %v1404 = vld [vmem:[#allocation2 + $0x90] sm:$0xf]
      %v1405 = vld [vmem:[#allocation2 + $0x94] sm:$0xf]
      %v1406 = vld [vmem:[#allocation2 + $0x98] sm:$0x1]
      %v1407 = vld [vmem:[#allocation2 + $0x9c] sm:$0xf]
      %v1408 = vld [vmem:[#allocation2 + $0xa0] sm:$0xf]
      %v1409 = vld [vmem:[#allocation2 + $0xa4] sm:$0x1]
      %v1410 = vld [vmem:[#allocation2 + $0xa8] sm:$0xf]
      %v1411 = vld [vmem:[#allocation2 + $0xac] sm:$0xf]
      %v1412 = vld [vmem:[#allocation2 + $0xb0] sm:$0x1]
      %v1413 = vld [vmem:[#allocation2 + $0xb4] sm:$0xf]
      %v1414 = vld [vmem:[#allocation2 + $0xb8] sm:$0xf]
      %v1415 = vld [vmem:[#allocation2 + $0xbc] sm:$0x1]
      %vm1416 = vsmask.f32 3328
      %vm1417 = vsmask.f32 7440
      %vm1418 = vmor %vm1416, %vm1417
      %v1420 = vshrl.u32 %v1368, 16
      %v1422 = vrot.slane %v1420, 4
      %v1423 = vshll.u32 %v1368, 16
      %v1425 = vrot.slane %v1423, 5
      %v1426 = vor.u32 %v1422, %v1425
      %v1427 = vrot.slane %v1426, 4
      %v1429 = vshll.u32 %v1369, 16
      %v1431 = vrot.slane %v1429, 5
      %v1432 = vsel %vm1418, %v1427, %v1431
      %v1433 = vshrl.u32 %v1369, 16
      %v1435 = vrot.slane %v1433, 4
      %v1436 = vor.u32 %v1435, %v1431
      %v1437 = vrot.slane %v1436, 4
      %v1439 = vshll.u32 %v1370, 16
      %v1441 = vrot.slane %v1439, 5
      %v1442 = vsel %vm1418, %v1437, %v1441
      %v1444 = vshrl.u32 %v1371, 16
      %v1446 = vrot.slane %v1444, 4
      %v1447 = vshll.u32 %v1371, 16
      %v1449 = vrot.slane %v1447, 5
      %v1450 = vor.u32 %v1446, %v1449
      %v1451 = vrot.slane %v1450, 4
      %v1453 = vshll.u32 %v1372, 16
      %v1455 = vrot.slane %v1453, 5
      %v1456 = vsel %vm1418, %v1451, %v1455
      %v1457 = vshrl.u32 %v1372, 16
      %v1459 = vrot.slane %v1457, 4
      %v1460 = vor.u32 %v1459, %v1455
      %v1461 = vrot.slane %v1460, 4
      %v1463 = vshll.u32 %v1373, 16
      %v1465 = vrot.slane %v1463, 5
      %v1466 = vsel %vm1418, %v1461, %v1465
      %v1468 = vshrl.u32 %v1374, 16
      %v1470 = vrot.slane %v1468, 4
      %v1471 = vshll.u32 %v1374, 16
      %v1473 = vrot.slane %v1471, 5
      %v1474 = vor.u32 %v1470, %v1473
      %v1475 = vrot.slane %v1474, 4
      %v1477 = vshll.u32 %v1375, 16
      %v1479 = vrot.slane %v1477, 5
      %v1480 = vsel %vm1418, %v1475, %v1479
      %v1481 = vshrl.u32 %v1375, 16
      %v1483 = vrot.slane %v1481, 4
      %v1484 = vor.u32 %v1483, %v1479
      %v1485 = vrot.slane %v1484, 4
      %v1487 = vshll.u32 %v1376, 16
      %v1489 = vrot.slane %v1487, 5
      %v1490 = vsel %vm1418, %v1485, %v1489
      %v1492 = vshrl.u32 %v1377, 16
      %v1494 = vrot.slane %v1492, 4
      %v1495 = vshll.u32 %v1377, 16
      %v1497 = vrot.slane %v1495, 5
      %v1498 = vor.u32 %v1494, %v1497
      %v1499 = vrot.slane %v1498, 4
      %v1501 = vshll.u32 %v1378, 16
      %v1503 = vrot.slane %v1501, 5
      %v1504 = vsel %vm1418, %v1499, %v1503
      %v1505 = vshrl.u32 %v1378, 16
      %v1507 = vrot.slane %v1505, 4
      %v1508 = vor.u32 %v1507, %v1503
      %v1509 = vrot.slane %v1508, 4
      %v1511 = vshll.u32 %v1379, 16
      %v1513 = vrot.slane %v1511, 5
      %v1514 = vsel %vm1418, %v1509, %v1513
      %v1516 = vshrl.u32 %v1380, 16
      %v1518 = vrot.slane %v1516, 4
      %v1519 = vshll.u32 %v1380, 16
      %v1521 = vrot.slane %v1519, 5
      %v1522 = vor.u32 %v1518, %v1521
      %v1523 = vrot.slane %v1522, 4
      %v1525 = vshll.u32 %v1381, 16
      %v1527 = vrot.slane %v1525, 5
      %v1528 = vsel %vm1418, %v1523, %v1527
      %v1529 = vshrl.u32 %v1381, 16
      %v1531 = vrot.slane %v1529, 4
      %v1532 = vor.u32 %v1531, %v1527
      %v1533 = vrot.slane %v1532, 4
      %v1535 = vshll.u32 %v1382, 16
      %v1537 = vrot.slane %v1535, 5
      %v1538 = vsel %vm1418, %v1533, %v1537
      %v1540 = vshrl.u32 %v1383, 16
      %v1542 = vrot.slane %v1540, 4
      %v1543 = vshll.u32 %v1383, 16
      %v1545 = vrot.slane %v1543, 5
      %v1546 = vor.u32 %v1542, %v1545
      %v1547 = vrot.slane %v1546, 4
      %v1549 = vshll.u32 %v1384, 16
      %v1551 = vrot.slane %v1549, 5
      %v1552 = vsel %vm1418, %v1547, %v1551
      %v1553 = vshrl.u32 %v1384, 16
      %v1555 = vrot.slane %v1553, 4
      %v1556 = vor.u32 %v1555, %v1551
      %v1557 = vrot.slane %v1556, 4
      %v1559 = vshll.u32 %v1385, 16
      %v1561 = vrot.slane %v1559, 5
      %v1562 = vsel %vm1418, %v1557, %v1561
      %v1564 = vshrl.u32 %v1386, 16
      %v1566 = vrot.slane %v1564, 4
      %v1567 = vshll.u32 %v1386, 16
      %v1569 = vrot.slane %v1567, 5
      %v1570 = vor.u32 %v1566, %v1569
      %v1571 = vrot.slane %v1570, 4
      %v1573 = vshll.u32 %v1387, 16
      %v1575 = vrot.slane %v1573, 5
      %v1576 = vsel %vm1418, %v1571, %v1575
      %v1577 = vshrl.u32 %v1387, 16
      %v1579 = vrot.slane %v1577, 4
      %v1580 = vor.u32 %v1579, %v1575
      %v1581 = vrot.slane %v1580, 4
      %v1583 = vshll.u32 %v1388, 16
      %v1585 = vrot.slane %v1583, 5
      %v1586 = vsel %vm1418, %v1581, %v1585
      %v1588 = vshrl.u32 %v1389, 16
      %v1590 = vrot.slane %v1588, 4
      %v1591 = vshll.u32 %v1389, 16
      %v1593 = vrot.slane %v1591, 5
      %v1594 = vor.u32 %v1590, %v1593
      %v1595 = vrot.slane %v1594, 4
      %v1597 = vshll.u32 %v1390, 16
      %v1599 = vrot.slane %v1597, 5
      %v1600 = vsel %vm1418, %v1595, %v1599
      %v1601 = vshrl.u32 %v1390, 16
      %v1603 = vrot.slane %v1601, 4
      %v1604 = vor.u32 %v1603, %v1599
      %v1605 = vrot.slane %v1604, 4
      %v1607 = vshll.u32 %v1391, 16
      %v1609 = vrot.slane %v1607, 5
      %v1610 = vsel %vm1418, %v1605, %v1609
      %v1612 = vshrl.u32 %v1392, 16
      %v1614 = vrot.slane %v1612, 4
      %v1615 = vshll.u32 %v1392, 16
      %v1617 = vrot.slane %v1615, 5
      %v1618 = vor.u32 %v1614, %v1617
      %v1619 = vrot.slane %v1618, 4
      %v1621 = vshll.u32 %v1393, 16
      %v1623 = vrot.slane %v1621, 5
      %v1624 = vsel %vm1418, %v1619, %v1623
      %v1625 = vshrl.u32 %v1393, 16
      %v1627 = vrot.slane %v1625, 4
      %v1628 = vor.u32 %v1627, %v1623
      %v1629 = vrot.slane %v1628, 4
      %v1631 = vshll.u32 %v1394, 16
      %v1633 = vrot.slane %v1631, 5
      %v1634 = vsel %vm1418, %v1629, %v1633
      %v1636 = vshrl.u32 %v1395, 16
      %v1638 = vrot.slane %v1636, 4
      %v1639 = vshll.u32 %v1395, 16
      %v1641 = vrot.slane %v1639, 5
      %v1642 = vor.u32 %v1638, %v1641
      %v1643 = vrot.slane %v1642, 4
      %v1645 = vshll.u32 %v1396, 16
      %v1647 = vrot.slane %v1645, 5
      %v1648 = vsel %vm1418, %v1643, %v1647
      %v1649 = vshrl.u32 %v1396, 16
      %v1651 = vrot.slane %v1649, 4
      %v1652 = vor.u32 %v1651, %v1647
      %v1653 = vrot.slane %v1652, 4
      %v1655 = vshll.u32 %v1397, 16
      %v1657 = vrot.slane %v1655, 5
      %v1658 = vsel %vm1418, %v1653, %v1657
      %v1660 = vshrl.u32 %v1398, 16
      %v1662 = vrot.slane %v1660, 4
      %v1663 = vshll.u32 %v1398, 16
      %v1665 = vrot.slane %v1663, 5
      %v1666 = vor.u32 %v1662, %v1665
      %v1667 = vrot.slane %v1666, 4
      %v1669 = vshll.u32 %v1399, 16
      %v1671 = vrot.slane %v1669, 5
      %v1672 = vsel %vm1418, %v1667, %v1671
      %v1673 = vshrl.u32 %v1399, 16
      %v1675 = vrot.slane %v1673, 4
      %v1676 = vor.u32 %v1675, %v1671
      %v1677 = vrot.slane %v1676, 4
      %v1679 = vshll.u32 %v1400, 16
      %v1681 = vrot.slane %v1679, 5
      %v1682 = vsel %vm1418, %v1677, %v1681
      %v1684 = vshrl.u32 %v1401, 16
      %v1686 = vrot.slane %v1684, 4
      %v1687 = vshll.u32 %v1401, 16
      %v1689 = vrot.slane %v1687, 5
      %v1690 = vor.u32 %v1686, %v1689
      %v1691 = vrot.slane %v1690, 4
      %v1693 = vshll.u32 %v1402, 16
      %v1695 = vrot.slane %v1693, 5
      %v1696 = vsel %vm1418, %v1691, %v1695
      %v1697 = vshrl.u32 %v1402, 16
      %v1699 = vrot.slane %v1697, 4
      %v1700 = vor.u32 %v1699, %v1695
      %v1701 = vrot.slane %v1700, 4
      %v1703 = vshll.u32 %v1403, 16
      %v1705 = vrot.slane %v1703, 5
      %v1706 = vsel %vm1418, %v1701, %v1705
      %v1708 = vshrl.u32 %v1404, 16
      %v1710 = vrot.slane %v1708, 4
      %v1711 = vshll.u32 %v1404, 16
      %v1713 = vrot.slane %v1711, 5
      %v1714 = vor.u32 %v1710, %v1713
      %v1715 = vrot.slane %v1714, 4
      %v1717 = vshll.u32 %v1405, 16
      %v1719 = vrot.slane %v1717, 5
      %v1720 = vsel %vm1418, %v1715, %v1719
      %v1721 = vshrl.u32 %v1405, 16
      %v1723 = vrot.slane %v1721, 4
      %v1724 = vor.u32 %v1723, %v1719
      %v1725 = vrot.slane %v1724, 4
      %v1727 = vshll.u32 %v1406, 16
      %v1729 = vrot.slane %v1727, 5
      %v1730 = vsel %vm1418, %v1725, %v1729
      %v1732 = vshrl.u32 %v1407, 16
      %v1734 = vrot.slane %v1732, 4
      %v1735 = vshll.u32 %v1407, 16
      %v1737 = vrot.slane %v1735, 5
      %v1738 = vor.u32 %v1734, %v1737
      %v1739 = vrot.slane %v1738, 4
      %v1741 = vshll.u32 %v1408, 16
      %v1743 = vrot.slane %v1741, 5
      %v1744 = vsel %vm1418, %v1739, %v1743
      %v1745 = vshrl.u32 %v1408, 16
      %v1747 = vrot.slane %v1745, 4
      %v1748 = vor.u32 %v1747, %v1743
      %v1749 = vrot.slane %v1748, 4
      %v1751 = vshll.u32 %v1409, 16
      %v1753 = vrot.slane %v1751, 5
      %v1754 = vsel %vm1418, %v1749, %v1753
      %v1756 = vshrl.u32 %v1410, 16
      %v1758 = vrot.slane %v1756, 4
      %v1759 = vshll.u32 %v1410, 16
      %v1761 = vrot.slane %v1759, 5
      %v1762 = vor.u32 %v1758, %v1761
      %v1763 = vrot.slane %v1762, 4
      %v1765 = vshll.u32 %v1411, 16
      %v1767 = vrot.slane %v1765, 5
      %v1768 = vsel %vm1418, %v1763, %v1767
      %v1769 = vshrl.u32 %v1411, 16
      %v1771 = vrot.slane %v1769, 4
      %v1772 = vor.u32 %v1771, %v1767
      %v1773 = vrot.slane %v1772, 4
      %v1775 = vshll.u32 %v1412, 16
      %v1777 = vrot.slane %v1775, 5
      %v1778 = vsel %vm1418, %v1773, %v1777
      %v1780 = vshrl.u32 %v1413, 16
      %v1782 = vrot.slane %v1780, 4
      %v1783 = vshll.u32 %v1413, 16
      %v1785 = vrot.slane %v1783, 5
      %v1786 = vor.u32 %v1782, %v1785
      %v1787 = vrot.slane %v1786, 4
      %v1789 = vshll.u32 %v1414, 16
      %v1791 = vrot.slane %v1789, 5
      %v1792 = vsel %vm1418, %v1787, %v1791
      %v1793 = vshrl.u32 %v1414, 16
      %v1795 = vrot.slane %v1793, 4
      %v1796 = vor.u32 %v1795, %v1791
      %v1797 = vrot.slane %v1796, 4
      %v1799 = vshll.u32 %v1415, 16
      %v1801 = vrot.slane %v1799, 5
      %v1802 = vsel %vm1418, %v1797, %v1801
      %1803 = vrot.lane.b32.xlu0 %v1432, 2
      %v1804 = vpop.permute.xlu0 %1803
      %1805 = vrot.lane.b32.xlu0 %v1442, 2
      %v1806 = vpop.permute.xlu0 %1805
      %1807 = vrot.lane.b32.xlu0 %v1456, 2
      %v1808 = vpop.permute.xlu0 %1807
      %1809 = vrot.lane.b32.xlu0 %v1466, 2
      %v1810 = vpop.permute.xlu0 %1809
      %1811 = vrot.lane.b32.xlu0 %v1480, 2
      %v1812 = vpop.permute.xlu0 %1811
      %1813 = vrot.lane.b32.xlu0 %v1490, 2
      %v1814 = vpop.permute.xlu0 %1813
      %1815 = vrot.lane.b32.xlu0 %v1504, 2
      %v1816 = vpop.permute.xlu0 %1815
      %1817 = vrot.lane.b32.xlu0 %v1514, 2
      %v1818 = vpop.permute.xlu0 %1817
      %1819 = vrot.lane.b32.xlu0 %v1528, 2
      %v1820 = vpop.permute.xlu0 %1819
      %1821 = vrot.lane.b32.xlu0 %v1538, 2
      %v1822 = vpop.permute.xlu0 %1821
      %1823 = vrot.lane.b32.xlu0 %v1552, 2
      %v1824 = vpop.permute.xlu0 %1823
      %1825 = vrot.lane.b32.xlu0 %v1562, 2
      %v1826 = vpop.permute.xlu0 %1825
      %1827 = vrot.lane.b32.xlu0 %v1576, 2
      %v1828 = vpop.permute.xlu0 %1827
      %1829 = vrot.lane.b32.xlu0 %v1586, 2
      %v1830 = vpop.permute.xlu0 %1829
      %1831 = vrot.lane.b32.xlu0 %v1600, 2
      %v1832 = vpop.permute.xlu0 %1831
      %1833 = vrot.lane.b32.xlu0 %v1610, 2
      %v1834 = vpop.permute.xlu0 %1833
      %1835 = vrot.lane.b32.xlu0 %v1624, 2
      %v1836 = vpop.permute.xlu0 %1835
      %1837 = vrot.lane.b32.xlu0 %v1634, 2
      %v1838 = vpop.permute.xlu0 %1837
      %1839 = vrot.lane.b32.xlu0 %v1648, 2
      %v1840 = vpop.permute.xlu0 %1839
      %1841 = vrot.lane.b32.xlu0 %v1658, 2
      %v1842 = vpop.permute.xlu0 %1841
      %1843 = vrot.lane.b32.xlu0 %v1672, 2
      %v1844 = vpop.permute.xlu0 %1843
      %1845 = vrot.lane.b32.xlu0 %v1682, 2
      %v1846 = vpop.permute.xlu0 %1845
      %1847 = vrot.lane.b32.xlu0 %v1696, 2
      %v1848 = vpop.permute.xlu0 %1847
      %1849 = vrot.lane.b32.xlu0 %v1706, 2
      %v1850 = vpop.permute.xlu0 %1849
      %1851 = vrot.lane.b32.xlu0 %v1720, 2
      %v1852 = vpop.permute.xlu0 %1851
      %1853 = vrot.lane.b32.xlu0 %v1730, 2
      %v1854 = vpop.permute.xlu0 %1853
      %1855 = vrot.lane.b32.xlu0 %v1744, 2
      %v1856 = vpop.permute.xlu0 %1855
      %1857 = vrot.lane.b32.xlu0 %v1754, 2
      %v1858 = vpop.permute.xlu0 %1857
      %1859 = vrot.lane.b32.xlu0 %v1768, 2
      %v1860 = vpop.permute.xlu0 %1859
      %1861 = vrot.lane.b32.xlu0 %v1778, 2
      %v1862 = vpop.permute.xlu0 %1861
      %1863 = vrot.lane.b32.xlu0 %v1792, 2
      %v1864 = vpop.permute.xlu0 %1863
      %1865 = vrot.lane.b32.xlu0 %v1802, 2
      %v1866 = vpop.permute.xlu0 %1865
      %vm1899 = vcmask 27664
      %1900 = vst.msk [vmem:[#allocation3] sm:$0xf] %vm1899, %v1804
      %1901 = vst.msk [vmem:[#allocation3 + $0x4] sm:$0xf] %vm1899, %v1806
      %1902 = vst.msk [vmem:[#allocation3 + $0x8] sm:$0xf] %vm1899, %v1808
      %1903 = vst.msk [vmem:[#allocation3 + $0xc] sm:$0xf] %vm1899, %v1810
      %1904 = vst.msk [vmem:[#allocation3 + $0x10] sm:$0xf] %vm1899, %v1812
      %1905 = vst.msk [vmem:[#allocation3 + $0x14] sm:$0xf] %vm1899, %v1814
      %1906 = vst.msk [vmem:[#allocation3 + $0x18] sm:$0xf] %vm1899, %v1816
      %1907 = vst.msk [vmem:[#allocation3 + $0x1c] sm:$0xf] %vm1899, %v1818
      %1908 = vst.msk [vmem:[#allocation3 + $0x20] sm:$0xf] %vm1899, %v1820
      %1909 = vst.msk [vmem:[#allocation3 + $0x24] sm:$0xf] %vm1899, %v1822
      %1910 = vst.msk [vmem:[#allocation3 + $0x28] sm:$0xf] %vm1899, %v1824
      %1911 = vst.msk [vmem:[#allocation3 + $0x2c] sm:$0xf] %vm1899, %v1826
      %1912 = vst.msk [vmem:[#allocation3 + $0x30] sm:$0xf] %vm1899, %v1828
      %1913 = vst.msk [vmem:[#allocation3 + $0x34] sm:$0xf] %vm1899, %v1830
      %1914 = vst.msk [vmem:[#allocation3 + $0x38] sm:$0xf] %vm1899, %v1832
      %1915 = vst.msk [vmem:[#allocation3 + $0x3c] sm:$0xf] %vm1899, %v1834
      %1916 = vst.msk [vmem:[#allocation3 + $0x40] sm:$0xf] %vm1899, %v1836
      %1917 = vst.msk [vmem:[#allocation3 + $0x44] sm:$0xf] %vm1899, %v1838
      %1918 = vst.msk [vmem:[#allocation3 + $0x48] sm:$0xf] %vm1899, %v1840
      %1919 = vst.msk [vmem:[#allocation3 + $0x4c] sm:$0xf] %vm1899, %v1842
      %1920 = vst.msk [vmem:[#allocation3 + $0x50] sm:$0xf] %vm1899, %v1844
      %1921 = vst.msk [vmem:[#allocation3 + $0x54] sm:$0xf] %vm1899, %v1846
      %1922 = vst.msk [vmem:[#allocation3 + $0x58] sm:$0xf] %vm1899, %v1848
      %1923 = vst.msk [vmem:[#allocation3 + $0x5c] sm:$0xf] %vm1899, %v1850
      %1924 = vst.msk [vmem:[#allocation3 + $0x60] sm:$0xf] %vm1899, %v1852
      %1925 = vst.msk [vmem:[#allocation3 + $0x64] sm:$0xf] %vm1899, %v1854
      %1926 = vst.msk [vmem:[#allocation3 + $0x68] sm:$0xf] %vm1899, %v1856
      %1927 = vst.msk [vmem:[#allocation3 + $0x6c] sm:$0xf] %vm1899, %v1858
      %1928 = vst.msk [vmem:[#allocation3 + $0x70] sm:$0xf] %vm1899, %v1860
      %1929 = vst.msk [vmem:[#allocation3 + $0x74] sm:$0xf] %vm1899, %v1862
      %1930 = vst.msk [vmem:[#allocation3 + $0x78] sm:$0xf] %vm1899, %v1864
      %1931 = vst.msk [vmem:[#allocation3 + $0x7c] sm:$0xf] %vm1899, %v1866
      %v1932 = vld [vmem:[#allocation2] sm:$0xe]
      %v1933 = vld [vmem:[#allocation2 + $0x4] sm:$0xf]
      %v1934 = vld [vmem:[#allocation2 + $0x8] sm:$0x1]
      %v1935 = vld [vmem:[#allocation2 + $0xc] sm:$0xe]
      %v1936 = vld [vmem:[#allocation2 + $0x10] sm:$0xf]
      %v1937 = vld [vmem:[#allocation2 + $0x14] sm:$0x1]
      %v1938 = vld [vmem:[#allocation2 + $0x18] sm:$0xe]
      %v1939 = vld [vmem:[#allocation2 + $0x1c] sm:$0xf]
      %v1940 = vld [vmem:[#allocation2 + $0x20] sm:$0x1]
      %v1941 = vld [vmem:[#allocation2 + $0x24] sm:$0xe]
      %v1942 = vld [vmem:[#allocation2 + $0x28] sm:$0xf]
      %v1943 = vld [vmem:[#allocation2 + $0x2c] sm:$0x1]
      %v1944 = vld [vmem:[#allocation2 + $0x30] sm:$0xe]
      %v1945 = vld [vmem:[#allocation2 + $0x34] sm:$0xf]
      %v1946 = vld [vmem:[#allocation2 + $0x38] sm:$0x1]
      %v1947 = vld [vmem:[#allocation2 + $0x3c] sm:$0xe]
      %v1948 = vld [vmem:[#allocation2 + $0x40] sm:$0xf]
      %v1949 = vld [vmem:[#allocation2 + $0x44] sm:$0x1]
      %v1950 = vld [vmem:[#allocation2 + $0x48] sm:$0xe]
      %v1951 = vld [vmem:[#allocation2 + $0x4c] sm:$0xf]
      %v1952 = vld [vmem:[#allocation2 + $0x50] sm:$0x1]
      %v1953 = vld [vmem:[#allocation2 + $0x54] sm:$0xe]
      %v1954 = vld [vmem:[#allocation2 + $0x58] sm:$0xf]
      %v1955 = vld [vmem:[#allocation2 + $0x5c] sm:$0x1]
      %v1956 = vld [vmem:[#allocation2 + $0x60] sm:$0xe]
      %v1957 = vld [vmem:[#allocation2 + $0x64] sm:$0xf]
      %v1958 = vld [vmem:[#allocation2 + $0x68] sm:$0x1]
      %v1959 = vld [vmem:[#allocation2 + $0x6c] sm:$0xe]
      %v1960 = vld [vmem:[#allocation2 + $0x70] sm:$0xf]
      %v1961 = vld [vmem:[#allocation2 + $0x74] sm:$0x1]
      %v1962 = vld [vmem:[#allocation2 + $0x78] sm:$0xe]
      %v1963 = vld [vmem:[#allocation2 + $0x7c] sm:$0xf]
      %v1964 = vld [vmem:[#allocation2 + $0x80] sm:$0x1]
      %v1965 = vld [vmem:[#allocation2 + $0x84] sm:$0xe]
      %v1966 = vld [vmem:[#allocation2 + $0x88] sm:$0xf]
      %v1967 = vld [vmem:[#allocation2 + $0x8c] sm:$0x1]
      %v1968 = vld [vmem:[#allocation2 + $0x90] sm:$0xe]
      %v1969 = vld [vmem:[#allocation2 + $0x94] sm:$0xf]
      %v1970 = vld [vmem:[#allocation2 + $0x98] sm:$0x1]
      %v1971 = vld [vmem:[#allocation2 + $0x9c] sm:$0xe]
      %v1972 = vld [vmem:[#allocation2 + $0xa0] sm:$0xf]
      %v1973 = vld [vmem:[#allocation2 + $0xa4] sm:$0x1]
      %v1974 = vld [vmem:[#allocation2 + $0xa8] sm:$0xe]
      %v1975 = vld [vmem:[#allocation2 + $0xac] sm:$0xf]
      %v1976 = vld [vmem:[#allocation2 + $0xb0] sm:$0x1]
      %v1977 = vld [vmem:[#allocation2 + $0xb4] sm:$0xe]
      %v1978 = vld [vmem:[#allocation2 + $0xb8] sm:$0xf]
      %v1979 = vld [vmem:[#allocation2 + $0xbc] sm:$0x1]
      %vm2028 = vcmask 1042432
      %vm2029 = vcmask 1046532
      %vm2030 = vmor %vm2028, %vm2029
      %v2031 = vrot.slane %v1932, 5
      %v2032 = vrot.slane %v2031, 4
      %v2033 = vrot.slane %v1933, 5
      %v2034 = vsel %vm2030, %v2032, %v2033
      %v2035 = vrot.slane %v2033, 4
      %v2036 = vrot.slane %v1934, 5
      %v2037 = vsel %vm2030, %v2035, %v2036
      %v2038 = vrot.slane %v1935, 5
      %v2039 = vrot.slane %v2038, 4
      %v2040 = vrot.slane %v1936, 5
      %v2041 = vsel %vm2030, %v2039, %v2040
      %v2042 = vrot.slane %v2040, 4
      %v2043 = vrot.slane %v1937, 5
      %v2044 = vsel %vm2030, %v2042, %v2043
      %v2045 = vrot.slane %v1938, 5
      %v2046 = vrot.slane %v2045, 4
      %v2047 = vrot.slane %v1939, 5
      %v2048 = vsel %vm2030, %v2046, %v2047
      %v2049 = vrot.slane %v2047, 4
      %v2050 = vrot.slane %v1940, 5
      %v2051 = vsel %vm2030, %v2049, %v2050
      %v2052 = vrot.slane %v1941, 5
      %v2053 = vrot.slane %v2052, 4
      %v2054 = vrot.slane %v1942, 5
      %v2055 = vsel %vm2030, %v2053, %v2054
      %v2056 = vrot.slane %v2054, 4
      %v2057 = vrot.slane %v1943, 5
      %v2058 = vsel %vm2030, %v2056, %v2057
      %v2059 = vrot.slane %v1944, 5
      %v2060 = vrot.slane %v2059, 4
      %v2061 = vrot.slane %v1945, 5
      %v2062 = vsel %vm2030, %v2060, %v2061
      %v2063 = vrot.slane %v2061, 4
      %v2064 = vrot.slane %v1946, 5
      %v2065 = vsel %vm2030, %v2063, %v2064
      %v2066 = vrot.slane %v1947, 5
      %v2067 = vrot.slane %v2066, 4
      %v2068 = vrot.slane %v1948, 5
      %v2069 = vsel %vm2030, %v2067, %v2068
      %v2070 = vrot.slane %v2068, 4
      %v2071 = vrot.slane %v1949, 5
      %v2072 = vsel %vm2030, %v2070, %v2071
      %v2073 = vrot.slane %v1950, 5
      %v2074 = vrot.slane %v2073, 4
      %v2075 = vrot.slane %v1951, 5
      %v2076 = vsel %vm2030, %v2074, %v2075
      %v2077 = vrot.slane %v2075, 4
      %v2078 = vrot.slane %v1952, 5
      %v2079 = vsel %vm2030, %v2077, %v2078
      %v2080 = vrot.slane %v1953, 5
      %v2081 = vrot.slane %v2080, 4
      %v2082 = vrot.slane %v1954, 5
      %v2083 = vsel %vm2030, %v2081, %v2082
      %v2084 = vrot.slane %v2082, 4
      %v2085 = vrot.slane %v1955, 5
      %v2086 = vsel %vm2030, %v2084, %v2085
      %v2087 = vrot.slane %v1956, 5
      %v2088 = vrot.slane %v2087, 4
      %v2089 = vrot.slane %v1957, 5
      %v2090 = vsel %vm2030, %v2088, %v2089
      %v2091 = vrot.slane %v2089, 4
      %v2092 = vrot.slane %v1958, 5
      %v2093 = vsel %vm2030, %v2091, %v2092
      %v2094 = vrot.slane %v1959, 5
      %v2095 = vrot.slane %v2094, 4
      %v2096 = vrot.slane %v1960, 5
      %v2097 = vsel %vm2030, %v2095, %v2096
      %v2098 = vrot.slane %v2096, 4
      %v2099 = vrot.slane %v1961, 5
      %v2100 = vsel %vm2030, %v2098, %v2099
      %v2101 = vrot.slane %v1962, 5
      %v2102 = vrot.slane %v2101, 4
      %v2103 = vrot.slane %v1963, 5
      %v2104 = vsel %vm2030, %v2102, %v2103
      %v2105 = vrot.slane %v2103, 4
      %v2106 = vrot.slane %v1964, 5
      %v2107 = vsel %vm2030, %v2105, %v2106
      %v2108 = vrot.slane %v1965, 5
      %v2109 = vrot.slane %v2108, 4
      %v2110 = vrot.slane %v1966, 5
      %v2111 = vsel %vm2030, %v2109, %v2110
      %v2112 = vrot.slane %v2110, 4
      %v2113 = vrot.slane %v1967, 5
      %v2114 = vsel %vm2030, %v2112, %v2113
      %v2115 = vrot.slane %v1968, 5
      %v2116 = vrot.slane %v2115, 4
      %v2117 = vrot.slane %v1969, 5
      %v2118 = vsel %vm2030, %v2116, %v2117
      %v2119 = vrot.slane %v2117, 4
      %v2120 = vrot.slane %v1970, 5
      %v2121 = vsel %vm2030, %v2119, %v2120
      %v2122 = vrot.slane %v1971, 5
      %v2123 = vrot.slane %v2122, 4
      %v2124 = vrot.slane %v1972, 5
      %v2125 = vsel %vm2030, %v2123, %v2124
      %v2126 = vrot.slane %v2124, 4
      %v2127 = vrot.slane %v1973, 5
      %v2128 = vsel %vm2030, %v2126, %v2127
      %v2129 = vrot.slane %v1974, 5
      %v2130 = vrot.slane %v2129, 4
      %v2131 = vrot.slane %v1975, 5
      %v2132 = vsel %vm2030, %v2130, %v2131
      %v2133 = vrot.slane %v2131, 4
      %v2134 = vrot.slane %v1976, 5
      %v2135 = vsel %vm2030, %v2133, %v2134
      %v2136 = vrot.slane %v1977, 5
      %v2137 = vrot.slane %v2136, 4
      %v2138 = vrot.slane %v1978, 5
      %v2139 = vsel %vm2030, %v2137, %v2138
      %v2140 = vrot.slane %v2138, 4
      %v2141 = vrot.slane %v1979, 5
      %v2142 = vsel %vm2030, %v2140, %v2141
      %2143 = vrot.lane.b32.xlu0 %v2034, 4
      %v2144 = vpop.permute.xlu0 %2143
      %2145 = vrot.lane.b32.xlu0 %v2037, 4
      %v2146 = vpop.permute.xlu0 %2145
      %2147 = vrot.lane.b32.xlu0 %v2041, 4
      %v2148 = vpop.permute.xlu0 %2147
      %2149 = vrot.lane.b32.xlu0 %v2044, 4
      %v2150 = vpop.permute.xlu0 %2149
      %2151 = vrot.lane.b32.xlu0 %v2048, 4
      %v2152 = vpop.permute.xlu0 %2151
      %2153 = vrot.lane.b32.xlu0 %v2051, 4
      %v2154 = vpop.permute.xlu0 %2153
      %2155 = vrot.lane.b32.xlu0 %v2055, 4
      %v2156 = vpop.permute.xlu0 %2155
      %2157 = vrot.lane.b32.xlu0 %v2058, 4
      %v2158 = vpop.permute.xlu0 %2157
      %2159 = vrot.lane.b32.xlu0 %v2062, 4
      %v2160 = vpop.permute.xlu0 %2159
      %2161 = vrot.lane.b32.xlu0 %v2065, 4
      %v2162 = vpop.permute.xlu0 %2161
      %2163 = vrot.lane.b32.xlu0 %v2069, 4
      %v2164 = vpop.permute.xlu0 %2163
      %2165 = vrot.lane.b32.xlu0 %v2072, 4
      %v2166 = vpop.permute.xlu0 %2165
      %2167 = vrot.lane.b32.xlu0 %v2076, 4
      %v2168 = vpop.permute.xlu0 %2167
      %2169 = vrot.lane.b32.xlu0 %v2079, 4
      %v2170 = vpop.permute.xlu0 %2169
      %2171 = vrot.lane.b32.xlu0 %v2083, 4
      %v2172 = vpop.permute.xlu0 %2171
      %2173 = vrot.lane.b32.xlu0 %v2086, 4
      %v2174 = vpop.permute.xlu0 %2173
      %2175 = vrot.lane.b32.xlu0 %v2090, 4
      %v2176 = vpop.permute.xlu0 %2175
      %2177 = vrot.lane.b32.xlu0 %v2093, 4
      %v2178 = vpop.permute.xlu0 %2177
      %2179 = vrot.lane.b32.xlu0 %v2097, 4
      %v2180 = vpop.permute.xlu0 %2179
      %2181 = vrot.lane.b32.xlu0 %v2100, 4
      %v2182 = vpop.permute.xlu0 %2181
      %2183 = vrot.lane.b32.xlu0 %v2104, 4
      %v2184 = vpop.permute.xlu0 %2183
      %2185 = vrot.lane.b32.xlu0 %v2107, 4
      %v2186 = vpop.permute.xlu0 %2185
      %2187 = vrot.lane.b32.xlu0 %v2111, 4
      %v2188 = vpop.permute.xlu0 %2187
      %2189 = vrot.lane.b32.xlu0 %v2114, 4
      %v2190 = vpop.permute.xlu0 %2189
      %2191 = vrot.lane.b32.xlu0 %v2118, 4
      %v2192 = vpop.permute.xlu0 %2191
      %2193 = vrot.lane.b32.xlu0 %v2121, 4
      %v2194 = vpop.permute.xlu0 %2193
      %2195 = vrot.lane.b32.xlu0 %v2125, 4
      %v2196 = vpop.permute.xlu0 %2195
      %2197 = vrot.lane.b32.xlu0 %v2128, 4
      %v2198 = vpop.permute.xlu0 %2197
      %2199 = vrot.lane.b32.xlu0 %v2132, 4
      %v2200 = vpop.permute.xlu0 %2199
      %2201 = vrot.lane.b32.xlu0 %v2135, 4
      %v2202 = vpop.permute.xlu0 %2201
      %2203 = vrot.lane.b32.xlu0 %v2139, 4
      %v2204 = vpop.permute.xlu0 %2203
      %2205 = vrot.lane.b32.xlu0 %v2142, 4
      %v2206 = vpop.permute.xlu0 %2205
      %vm2239 = vcmask 44064
      %2240 = vst.msk [vmem:[#allocation3] sm:$0xf] %vm2239, %v2144
      %2241 = vst.msk [vmem:[#allocation3 + $0x4] sm:$0xf] %vm2239, %v2146
      %2242 = vst.msk [vmem:[#allocation3 + $0x8] sm:$0xf] %vm2239, %v2148
      %2243 = vst.msk [vmem:[#allocation3 + $0xc] sm:$0xf] %vm2239, %v2150
      %2244 = vst.msk [vmem:[#allocation3 + $0x10] sm:$0xf] %vm2239, %v2152
      %2245 = vst.msk [vmem:[#allocation3 + $0x14] sm:$0xf] %vm2239, %v2154
      %2246 = vst.msk [vmem:[#allocation3 + $0x18] sm:$0xf] %vm2239, %v2156
      %2247 = vst.msk [vmem:[#allocation3 + $0x1c] sm:$0xf] %vm2239, %v2158
      %2248 = vst.msk [vmem:[#allocation3 + $0x20] sm:$0xf] %vm2239, %v2160
      %2249 = vst.msk [vmem:[#allocation3 + $0x24] sm:$0xf] %vm2239, %v2162
      %2250 = vst.msk [vmem:[#allocation3 + $0x28] sm:$0xf] %vm2239, %v2164
      %2251 = vst.msk [vmem:[#allocation3 + $0x2c] sm:$0xf] %vm2239, %v2166
      %2252 = vst.msk [vmem:[#allocation3 + $0x30] sm:$0xf] %vm2239, %v2168
      %2253 = vst.msk [vmem:[#allocation3 + $0x34] sm:$0xf] %vm2239, %v2170
      %2254 = vst.msk [vmem:[#allocation3 + $0x38] sm:$0xf] %vm2239, %v2172
      %2255 = vst.msk [vmem:[#allocation3 + $0x3c] sm:$0xf] %vm2239, %v2174
      %2256 = vst.msk [vmem:[#allocation3 + $0x40] sm:$0xf] %vm2239, %v2176
      %2257 = vst.msk [vmem:[#allocation3 + $0x44] sm:$0xf] %vm2239, %v2178
      %2258 = vst.msk [vmem:[#allocation3 + $0x48] sm:$0xf] %vm2239, %v2180
      %2259 = vst.msk [vmem:[#allocation3 + $0x4c] sm:$0xf] %vm2239, %v2182
      %2260 = vst.msk [vmem:[#allocation3 + $0x50] sm:$0xf] %vm2239, %v2184
      %2261 = vst.msk [vmem:[#allocation3 + $0x54] sm:$0xf] %vm2239, %v2186
      %2262 = vst.msk [vmem:[#allocation3 + $0x58] sm:$0xf] %vm2239, %v2188
      %2263 = vst.msk [vmem:[#allocation3 + $0x5c] sm:$0xf] %vm2239, %v2190
      %2264 = vst.msk [vmem:[#allocation3 + $0x60] sm:$0xf] %vm2239, %v2192
      %2265 = vst.msk [vmem:[#allocation3 + $0x64] sm:$0xf] %vm2239, %v2194
      %2266 = vst.msk [vmem:[#allocation3 + $0x68] sm:$0xf] %vm2239, %v2196
      %2267 = vst.msk [vmem:[#allocation3 + $0x6c] sm:$0xf] %vm2239, %v2198
      %2268 = vst.msk [vmem:[#allocation3 + $0x70] sm:$0xf] %vm2239, %v2200
      %2269 = vst.msk [vmem:[#allocation3 + $0x74] sm:$0xf] %vm2239, %v2202
      %2270 = vst.msk [vmem:[#allocation3 + $0x78] sm:$0xf] %vm2239, %v2204
      %2271 = vst.msk [vmem:[#allocation3 + $0x7c] sm:$0xf] %vm2239, %v2206
      %v2272 = vld [vmem:[%s1185] sm:$0xf]
      %v2273 = vld [vmem:[%s1185 + $0x4] sm:$0xf]
      %v2274 = vld [vmem:[%s1185 + $0xc] sm:$0xf]
      %v2275 = vld [vmem:[%s1185 + $0x10] sm:$0xf]
      %v2276 = vld [vmem:[%s1185 + $0x18] sm:$0xf]
      %v2277 = vld [vmem:[%s1185 + $0x1c] sm:$0xf]
      %v2278 = vld [vmem:[%s1185 + $0x24] sm:$0xf]
      %v2279 = vld [vmem:[%s1185 + $0x28] sm:$0xf]
      %v2280 = vld [vmem:[%s1185 + $0x30] sm:$0xf]
      %v2281 = vld [vmem:[%s1185 + $0x34] sm:$0xf]
      %v2282 = vld [vmem:[%s1185 + $0x3c] sm:$0xf]
      %v2283 = vld [vmem:[%s1185 + $0x40] sm:$0xf]
      %v2284 = vld [vmem:[%s1185 + $0x48] sm:$0xf]
      %v2285 = vld [vmem:[%s1185 + $0x4c] sm:$0xf]
      %v2286 = vld [vmem:[%s1185 + $0x54] sm:$0xf]
      %v2287 = vld [vmem:[%s1185 + $0x58] sm:$0xf]
      %v2288 = vld [vmem:[%s1185 + $0x60] sm:$0xf]
      %v2289 = vld [vmem:[%s1185 + $0x64] sm:$0xf]
      %v2290 = vld [vmem:[%s1185 + $0x6c] sm:$0xf]
      %v2291 = vld [vmem:[%s1185 + $0x70] sm:$0xf]
      %v2292 = vld [vmem:[%s1185 + $0x78] sm:$0xf]
      %v2293 = vld [vmem:[%s1185 + $0x7c] sm:$0xf]
      %v2294 = vld [vmem:[%s1185 + $0x84] sm:$0xf]
      %v2295 = vld [vmem:[%s1185 + $0x88] sm:$0xf]
      %v2296 = vld [vmem:[%s1185 + $0x90] sm:$0xf]
      %v2297 = vld [vmem:[%s1185 + $0x94] sm:$0xf]
      %v2298 = vld [vmem:[%s1185 + $0x9c] sm:$0xf]
      %v2299 = vld [vmem:[%s1185 + $0xa0] sm:$0xf]
      %v2300 = vld [vmem:[%s1185 + $0xa8] sm:$0xf]
      %v2301 = vld [vmem:[%s1185 + $0xac] sm:$0xf]
      %v2302 = vld [vmem:[%s1185 + $0xb4] sm:$0xf]
      %v2303 = vld [vmem:[%s1185 + $0xb8] sm:$0xf]
      %2336 = vrot.lane.b32.xlu0 %v2272, 6
      %v2337 = vpop.permute.xlu0 %2336
      %2338 = vrot.lane.b32.xlu0 %v2273, 6
      %v2339 = vpop.permute.xlu0 %2338
      %2340 = vrot.lane.b32.xlu0 %v2274, 6
      %v2341 = vpop.permute.xlu0 %2340
      %2342 = vrot.lane.b32.xlu0 %v2275, 6
      %v2343 = vpop.permute.xlu0 %2342
      %2344 = vrot.lane.b32.xlu0 %v2276, 6
      %v2345 = vpop.permute.xlu0 %2344
      %2346 = vrot.lane.b32.xlu0 %v2277, 6
      %v2347 = vpop.permute.xlu0 %2346
      %2348 = vrot.lane.b32.xlu0 %v2278, 6
      %v2349 = vpop.permute.xlu0 %2348
      %2350 = vrot.lane.b32.xlu0 %v2279, 6
      %v2351 = vpop.permute.xlu0 %2350
      %2352 = vrot.lane.b32.xlu0 %v2280, 6
      %v2353 = vpop.permute.xlu0 %2352
      %2354 = vrot.lane.b32.xlu0 %v2281, 6
      %v2355 = vpop.permute.xlu0 %2354
      %2356 = vrot.lane.b32.xlu0 %v2282, 6
      %v2357 = vpop.permute.xlu0 %2356
      %2358 = vrot.lane.b32.xlu0 %v2283, 6
      %v2359 = vpop.permute.xlu0 %2358
      %2360 = vrot.lane.b32.xlu0 %v2284, 6
      %v2361 = vpop.permute.xlu0 %2360
      %2362 = vrot.lane.b32.xlu0 %v2285, 6
      %v2363 = vpop.permute.xlu0 %2362
      %2364 = vrot.lane.b32.xlu0 %v2286, 6
      %v2365 = vpop.permute.xlu0 %2364
      %2366 = vrot.lane.b32.xlu0 %v2287, 6
      %v2367 = vpop.permute.xlu0 %2366
      %2368 = vrot.lane.b32.xlu0 %v2288, 6
      %v2369 = vpop.permute.xlu0 %2368
      %2370 = vrot.lane.b32.xlu0 %v2289, 6
      %v2371 = vpop.permute.xlu0 %2370
      %2372 = vrot.lane.b32.xlu0 %v2290, 6
      %v2373 = vpop.permute.xlu0 %2372
      %2374 = vrot.lane.b32.xlu0 %v2291, 6
      %v2375 = vpop.permute.xlu0 %2374
      %2376 = vrot.lane.b32.xlu0 %v2292, 6
      %v2377 = vpop.permute.xlu0 %2376
      %2378 = vrot.lane.b32.xlu0 %v2293, 6
      %v2379 = vpop.permute.xlu0 %2378
      %2380 = vrot.lane.b32.xlu0 %v2294, 6
      %v2381 = vpop.permute.xlu0 %2380
      %2382 = vrot.lane.b32.xlu0 %v2295, 6
      %v2383 = vpop.permute.xlu0 %2382
      %2384 = vrot.lane.b32.xlu0 %v2296, 6
      %v2385 = vpop.permute.xlu0 %2384
      %2386 = vrot.lane.b32.xlu0 %v2297, 6
      %v2387 = vpop.permute.xlu0 %2386
      %2388 = vrot.lane.b32.xlu0 %v2298, 6
      %v2389 = vpop.permute.xlu0 %2388
      %2390 = vrot.lane.b32.xlu0 %v2299, 6
      %v2391 = vpop.permute.xlu0 %2390
      %2392 = vrot.lane.b32.xlu0 %v2300, 6
      %v2393 = vpop.permute.xlu0 %2392
      %2394 = vrot.lane.b32.xlu0 %v2301, 6
      %v2395 = vpop.permute.xlu0 %2394
      %2396 = vrot.lane.b32.xlu0 %v2302, 6
      %v2397 = vpop.permute.xlu0 %2396
      %2398 = vrot.lane.b32.xlu0 %v2303, 6
      %v2399 = vpop.permute.xlu0 %2398
      %vm2432 = vcmask 60464
      %2433 = vst.msk [vmem:[#allocation3] sm:$0xf] %vm2432, %v2337
      %2434 = vst.msk [vmem:[#allocation3 + $0x4] sm:$0xf] %vm2432, %v2339
      %2435 = vst.msk [vmem:[#allocation3 + $0x8] sm:$0xf] %vm2432, %v2341
      %2436 = vst.msk [vmem:[#allocation3 + $0xc] sm:$0xf] %vm2432, %v2343
      %2437 = vst.msk [vmem:[#allocation3 + $0x10] sm:$0xf] %vm2432, %v2345
      %2438 = vst.msk [vmem:[#allocation3 + $0x14] sm:$0xf] %vm2432, %v2347
      %2439 = vst.msk [vmem:[#allocation3 + $0x18] sm:$0xf] %vm2432, %v2349
      %2440 = vst.msk [vmem:[#allocation3 + $0x1c] sm:$0xf] %vm2432, %v2351
      %2441 = vst.msk [vmem:[#allocation3 + $0x20] sm:$0xf] %vm2432, %v2353
      %2442 = vst.msk [vmem:[#allocation3 + $0x24] sm:$0xf] %vm2432, %v2355
      %2443 = vst.msk [vmem:[#allocation3 + $0x28] sm:$0xf] %vm2432, %v2357
      %2444 = vst.msk [vmem:[#allocation3 + $0x2c] sm:$0xf] %vm2432, %v2359
      %2445 = vst.msk [vmem:[#allocation3 + $0x30] sm:$0xf] %vm2432, %v2361
      %2446 = vst.msk [vmem:[#allocation3 + $0x34] sm:$0xf] %vm2432, %v2363
      %2447 = vst.msk [vmem:[#allocation3 + $0x38] sm:$0xf] %vm2432, %v2365
      %2448 = vst.msk [vmem:[#allocation3 + $0x3c] sm:$0xf] %vm2432, %v2367
      %2449 = vst.msk [vmem:[#allocation3 + $0x40] sm:$0xf] %vm2432, %v2369
      %2450 = vst.msk [vmem:[#allocation3 + $0x44] sm:$0xf] %vm2432, %v2371
      %2451 = vst.msk [vmem:[#allocation3 + $0x48] sm:$0xf] %vm2432, %v2373
      %2452 = vst.msk [vmem:[#allocation3 + $0x4c] sm:$0xf] %vm2432, %v2375
      %2453 = vst.msk [vmem:[#allocation3 + $0x50] sm:$0xf] %vm2432, %v2377
      %2454 = vst.msk [vmem:[#allocation3 + $0x54] sm:$0xf] %vm2432, %v2379
      %2455 = vst.msk [vmem:[#allocation3 + $0x58] sm:$0xf] %vm2432, %v2381
      %2456 = vst.msk [vmem:[#allocation3 + $0x5c] sm:$0xf] %vm2432, %v2383
      %2457 = vst.msk [vmem:[#allocation3 + $0x60] sm:$0xf] %vm2432, %v2385
      %2458 = vst.msk [vmem:[#allocation3 + $0x64] sm:$0xf] %vm2432, %v2387
      %2459 = vst.msk [vmem:[#allocation3 + $0x68] sm:$0xf] %vm2432, %v2389
      %2460 = vst.msk [vmem:[#allocation3 + $0x6c] sm:$0xf] %vm2432, %v2391
      %2461 = vst.msk [vmem:[#allocation3 + $0x70] sm:$0xf] %vm2432, %v2393
      %2462 = vst.msk [vmem:[#allocation3 + $0x74] sm:$0xf] %vm2432, %v2395
      %2463 = vst.msk [vmem:[#allocation3 + $0x78] sm:$0xf] %vm2432, %v2397
      %2464 = vst.msk [vmem:[#allocation3 + $0x7c] sm:$0xf] %vm2432, %v2399
      %v2465 = vld [vmem:[%s1185] sm:$0xf]
      %v2466 = vld [vmem:[%s1185 + $0x4] sm:$0xf]
      %v2467 = vld [vmem:[%s1185 + $0x8] sm:$0x1]
      %v2468 = vld [vmem:[%s1185 + $0xc] sm:$0xf]
      %v2469 = vld [vmem:[%s1185 + $0x10] sm:$0xf]
      %v2470 = vld [vmem:[%s1185 + $0x14] sm:$0x1]
      %v2471 = vld [vmem:[%s1185 + $0x18] sm:$0xf]
      %v2472 = vld [vmem:[%s1185 + $0x1c] sm:$0xf]
      %v2473 = vld [vmem:[%s1185 + $0x20] sm:$0x1]
      %v2474 = vld [vmem:[%s1185 + $0x24] sm:$0xf]
      %v2475 = vld [vmem:[%s1185 + $0x28] sm:$0xf]
      %v2476 = vld [vmem:[%s1185 + $0x2c] sm:$0x1]
      %v2477 = vld [vmem:[%s1185 + $0x30] sm:$0xf]
      %v2478 = vld [vmem:[%s1185 + $0x34] sm:$0xf]
      %v2479 = vld [vmem:[%s1185 + $0x38] sm:$0x1]
      %v2480 = vld [vmem:[%s1185 + $0x3c] sm:$0xf]
      %v2481 = vld [vmem:[%s1185 + $0x40] sm:$0xf]
      %v2482 = vld [vmem:[%s1185 + $0x44] sm:$0x1]
      %v2483 = vld [vmem:[%s1185 + $0x48] sm:$0xf]
      %v2484 = vld [vmem:[%s1185 + $0x4c] sm:$0xf]
      %v2485 = vld [vmem:[%s1185 + $0x50] sm:$0x1]
      %v2486 = vld [vmem:[%s1185 + $0x54] sm:$0xf]
      %v2487 = vld [vmem:[%s1185 + $0x58] sm:$0xf]
      %v2488 = vld [vmem:[%s1185 + $0x5c] sm:$0x1]
      %v2489 = vld [vmem:[%s1185 + $0x60] sm:$0xf]
      %v2490 = vld [vmem:[%s1185 + $0x64] sm:$0xf]
      %v2491 = vld [vmem:[%s1185 + $0x68] sm:$0x1]
      %v2492 = vld [vmem:[%s1185 + $0x6c] sm:$0xf]
      %v2493 = vld [vmem:[%s1185 + $0x70] sm:$0xf]
      %v2494 = vld [vmem:[%s1185 + $0x74] sm:$0x1]
      %v2495 = vld [vmem:[%s1185 + $0x78] sm:$0xf]
      %v2496 = vld [vmem:[%s1185 + $0x7c] sm:$0xf]
      %v2497 = vld [vmem:[%s1185 + $0x80] sm:$0x1]
      %v2498 = vld [vmem:[%s1185 + $0x84] sm:$0xf]
      %v2499 = vld [vmem:[%s1185 + $0x88] sm:$0xf]
      %v2500 = vld [vmem:[%s1185 + $0x8c] sm:$0x1]
      %v2501 = vld [vmem:[%s1185 + $0x90] sm:$0xf]
      %v2502 = vld [vmem:[%s1185 + $0x94] sm:$0xf]
      %v2503 = vld [vmem:[%s1185 + $0x98] sm:$0x1]
      %v2504 = vld [vmem:[%s1185 + $0x9c] sm:$0xf]
      %v2505 = vld [vmem:[%s1185 + $0xa0] sm:$0xf]
      %v2506 = vld [vmem:[%s1185 + $0xa4] sm:$0x1]
      %v2507 = vld [vmem:[%s1185 + $0xa8] sm:$0xf]
      %v2508 = vld [vmem:[%s1185 + $0xac] sm:$0xf]
      %v2509 = vld [vmem:[%s1185 + $0xb0] sm:$0x1]
      %v2510 = vld [vmem:[%s1185 + $0xb4] sm:$0xf]
      %v2511 = vld [vmem:[%s1185 + $0xb8] sm:$0xf]
      %v2512 = vld [vmem:[%s1185 + $0xbc] sm:$0x1]
      %v2514 = vshrl.u32 %v2465, 16
      %v2516 = vrot.slane %v2514, 4
      %v2517 = vshll.u32 %v2465, 16
      %v2519 = vrot.slane %v2517, 5
      %v2520 = vor.u32 %v2516, %v2519
      %v2521 = vrot.slane %v2520, 4
      %v2523 = vshll.u32 %v2466, 16
      %v2525 = vrot.slane %v2523, 5
      %v2526 = vsel %vm1418, %v2521, %v2525
      %v2527 = vshrl.u32 %v2466, 16
      %v2529 = vrot.slane %v2527, 4
      %v2530 = vor.u32 %v2529, %v2525
      %v2531 = vrot.slane %v2530, 4
      %v2533 = vshll.u32 %v2467, 16
      %v2535 = vrot.slane %v2533, 5
      %v2536 = vsel %vm1418, %v2531, %v2535
      %v2538 = vshrl.u32 %v2468, 16
      %v2540 = vrot.slane %v2538, 4
      %v2541 = vshll.u32 %v2468, 16
      %v2543 = vrot.slane %v2541, 5
      %v2544 = vor.u32 %v2540, %v2543
      %v2545 = vrot.slane %v2544, 4
      %v2547 = vshll.u32 %v2469, 16
      %v2549 = vrot.slane %v2547, 5
      %v2550 = vsel %vm1418, %v2545, %v2549
      %v2551 = vshrl.u32 %v2469, 16
      %v2553 = vrot.slane %v2551, 4
      %v2554 = vor.u32 %v2553, %v2549
      %v2555 = vrot.slane %v2554, 4
      %v2557 = vshll.u32 %v2470, 16
      %v2559 = vrot.slane %v2557, 5
      %v2560 = vsel %vm1418, %v2555, %v2559
      %v2562 = vshrl.u32 %v2471, 16
      %v2564 = vrot.slane %v2562, 4
      %v2565 = vshll.u32 %v2471, 16
      %v2567 = vrot.slane %v2565, 5
      %v2568 = vor.u32 %v2564, %v2567
      %v2569 = vrot.slane %v2568, 4
      %v2571 = vshll.u32 %v2472, 16
      %v2573 = vrot.slane %v2571, 5
      %v2574 = vsel %vm1418, %v2569, %v2573
      %v2575 = vshrl.u32 %v2472, 16
      %v2577 = vrot.slane %v2575, 4
      %v2578 = vor.u32 %v2577, %v2573
      %v2579 = vrot.slane %v2578, 4
      %v2581 = vshll.u32 %v2473, 16
      %v2583 = vrot.slane %v2581, 5
      %v2584 = vsel %vm1418, %v2579, %v2583
      %v2586 = vshrl.u32 %v2474, 16
      %v2588 = vrot.slane %v2586, 4
      %v2589 = vshll.u32 %v2474, 16
      %v2591 = vrot.slane %v2589, 5
      %v2592 = vor.u32 %v2588, %v2591
      %v2593 = vrot.slane %v2592, 4
      %v2595 = vshll.u32 %v2475, 16
      %v2597 = vrot.slane %v2595, 5
      %v2598 = vsel %vm1418, %v2593, %v2597
      %v2599 = vshrl.u32 %v2475, 16
      %v2601 = vrot.slane %v2599, 4
      %v2602 = vor.u32 %v2601, %v2597
      %v2603 = vrot.slane %v2602, 4
      %v2605 = vshll.u32 %v2476, 16
      %v2607 = vrot.slane %v2605, 5
      %v2608 = vsel %vm1418, %v2603, %v2607
      %v2610 = vshrl.u32 %v2477, 16
      %v2612 = vrot.slane %v2610, 4
      %v2613 = vshll.u32 %v2477, 16
      %v2615 = vrot.slane %v2613, 5
      %v2616 = vor.u32 %v2612, %v2615
      %v2617 = vrot.slane %v2616, 4
      %v2619 = vshll.u32 %v2478, 16
      %v2621 = vrot.slane %v2619, 5
      %v2622 = vsel %vm1418, %v2617, %v2621
      %v2623 = vshrl.u32 %v2478, 16
      %v2625 = vrot.slane %v2623, 4
      %v2626 = vor.u32 %v2625, %v2621
      %v2627 = vrot.slane %v2626, 4
      %v2629 = vshll.u32 %v2479, 16
      %v2631 = vrot.slane %v2629, 5
      %v2632 = vsel %vm1418, %v2627, %v2631
      %v2634 = vshrl.u32 %v2480, 16
      %v2636 = vrot.slane %v2634, 4
      %v2637 = vshll.u32 %v2480, 16
      %v2639 = vrot.slane %v2637, 5
      %v2640 = vor.u32 %v2636, %v2639
      %v2641 = vrot.slane %v2640, 4
      %v2643 = vshll.u32 %v2481, 16
      %v2645 = vrot.slane %v2643, 5
      %v2646 = vsel %vm1418, %v2641, %v2645
      %v2647 = vshrl.u32 %v2481, 16
      %v2649 = vrot.slane %v2647, 4
      %v2650 = vor.u32 %v2649, %v2645
      %v2651 = vrot.slane %v2650, 4
      %v2653 = vshll.u32 %v2482, 16
      %v2655 = vrot.slane %v2653, 5
      %v2656 = vsel %vm1418, %v2651, %v2655
      %v2658 = vshrl.u32 %v2483, 16
      %v2660 = vrot.slane %v2658, 4
      %v2661 = vshll.u32 %v2483, 16
      %v2663 = vrot.slane %v2661, 5
      %v2664 = vor.u32 %v2660, %v2663
      %v2665 = vrot.slane %v2664, 4
      %v2667 = vshll.u32 %v2484, 16
      %v2669 = vrot.slane %v2667, 5
      %v2670 = vsel %vm1418, %v2665, %v2669
      %v2671 = vshrl.u32 %v2484, 16
      %v2673 = vrot.slane %v2671, 4
      %v2674 = vor.u32 %v2673, %v2669
      %v2675 = vrot.slane %v2674, 4
      %v2677 = vshll.u32 %v2485, 16
      %v2679 = vrot.slane %v2677, 5
      %v2680 = vsel %vm1418, %v2675, %v2679
      %v2682 = vshrl.u32 %v2486, 16
      %v2684 = vrot.slane %v2682, 4
      %v2685 = vshll.u32 %v2486, 16
      %v2687 = vrot.slane %v2685, 5
      %v2688 = vor.u32 %v2684, %v2687
      %v2689 = vrot.slane %v2688, 4
      %v2691 = vshll.u32 %v2487, 16
      %v2693 = vrot.slane %v2691, 5
      %v2694 = vsel %vm1418, %v2689, %v2693
      %v2695 = vshrl.u32 %v2487, 16
      %v2697 = vrot.slane %v2695, 4
      %v2698 = vor.u32 %v2697, %v2693
      %v2699 = vrot.slane %v2698, 4
      %v2701 = vshll.u32 %v2488, 16
      %v2703 = vrot.slane %v2701, 5
      %v2704 = vsel %vm1418, %v2699, %v2703
      %v2706 = vshrl.u32 %v2489, 16
      %v2708 = vrot.slane %v2706, 4
      %v2709 = vshll.u32 %v2489, 16
      %v2711 = vrot.slane %v2709, 5
      %v2712 = vor.u32 %v2708, %v2711
      %v2713 = vrot.slane %v2712, 4
      %v2715 = vshll.u32 %v2490, 16
      %v2717 = vrot.slane %v2715, 5
      %v2718 = vsel %vm1418, %v2713, %v2717
      %v2719 = vshrl.u32 %v2490, 16
      %v2721 = vrot.slane %v2719, 4
      %v2722 = vor.u32 %v2721, %v2717
      %v2723 = vrot.slane %v2722, 4
      %v2725 = vshll.u32 %v2491, 16
      %v2727 = vrot.slane %v2725, 5
      %v2728 = vsel %vm1418, %v2723, %v2727
      %v2730 = vshrl.u32 %v2492, 16
      %v2732 = vrot.slane %v2730, 4
      %v2733 = vshll.u32 %v2492, 16
      %v2735 = vrot.slane %v2733, 5
      %v2736 = vor.u32 %v2732, %v2735
      %v2737 = vrot.slane %v2736, 4
      %v2739 = vshll.u32 %v2493, 16
      %v2741 = vrot.slane %v2739, 5
      %v2742 = vsel %vm1418, %v2737, %v2741
      %v2743 = vshrl.u32 %v2493, 16
      %v2745 = vrot.slane %v2743, 4
      %v2746 = vor.u32 %v2745, %v2741
      %v2747 = vrot.slane %v2746, 4
      %v2749 = vshll.u32 %v2494, 16
      %v2751 = vrot.slane %v2749, 5
      %v2752 = vsel %vm1418, %v2747, %v2751
      %v2754 = vshrl.u32 %v2495, 16
      %v2756 = vrot.slane %v2754, 4
      %v2757 = vshll.u32 %v2495, 16
      %v2759 = vrot.slane %v2757, 5
      %v2760 = vor.u32 %v2756, %v2759
      %v2761 = vrot.slane %v2760, 4
      %v2763 = vshll.u32 %v2496, 16
      %v2765 = vrot.slane %v2763, 5
      %v2766 = vsel %vm1418, %v2761, %v2765
      %v2767 = vshrl.u32 %v2496, 16
      %v2769 = vrot.slane %v2767, 4
      %v2770 = vor.u32 %v2769, %v2765
      %v2771 = vrot.slane %v2770, 4
      %v2773 = vshll.u32 %v2497, 16
      %v2775 = vrot.slane %v2773, 5
      %v2776 = vsel %vm1418, %v2771, %v2775
      %v2778 = vshrl.u32 %v2498, 16
      %v2780 = vrot.slane %v2778, 4
      %v2781 = vshll.u32 %v2498, 16
      %v2783 = vrot.slane %v2781, 5
      %v2784 = vor.u32 %v2780, %v2783
      %v2785 = vrot.slane %v2784, 4
      %v2787 = vshll.u32 %v2499, 16
      %v2789 = vrot.slane %v2787, 5
      %v2790 = vsel %vm1418, %v2785, %v2789
      %v2791 = vshrl.u32 %v2499, 16
      %v2793 = vrot.slane %v2791, 4
      %v2794 = vor.u32 %v2793, %v2789
      %v2795 = vrot.slane %v2794, 4
      %v2797 = vshll.u32 %v2500, 16
      %v2799 = vrot.slane %v2797, 5
      %v2800 = vsel %vm1418, %v2795, %v2799
      %v2802 = vshrl.u32 %v2501, 16
      %v2804 = vrot.slane %v2802, 4
      %v2805 = vshll.u32 %v2501, 16
      %v2807 = vrot.slane %v2805, 5
      %v2808 = vor.u32 %v2804, %v2807
      %v2809 = vrot.slane %v2808, 4
      %v2811 = vshll.u32 %v2502, 16
      %v2813 = vrot.slane %v2811, 5
      %v2814 = vsel %vm1418, %v2809, %v2813
      %v2815 = vshrl.u32 %v2502, 16
      %v2817 = vrot.slane %v2815, 4
      %v2818 = vor.u32 %v2817, %v2813
      %v2819 = vrot.slane %v2818, 4
      %v2821 = vshll.u32 %v2503, 16
      %v2823 = vrot.slane %v2821, 5
      %v2824 = vsel %vm1418, %v2819, %v2823
      %v2826 = vshrl.u32 %v2504, 16
      %v2828 = vrot.slane %v2826, 4
      %v2829 = vshll.u32 %v2504, 16
      %v2831 = vrot.slane %v2829, 5
      %v2832 = vor.u32 %v2828, %v2831
      %v2833 = vrot.slane %v2832, 4
      %v2835 = vshll.u32 %v2505, 16
      %v2837 = vrot.slane %v2835, 5
      %v2838 = vsel %vm1418, %v2833, %v2837
      %v2839 = vshrl.u32 %v2505, 16
      %v2841 = vrot.slane %v2839, 4
      %v2842 = vor.u32 %v2841, %v2837
      %v2843 = vrot.slane %v2842, 4
      %v2845 = vshll.u32 %v2506, 16
      %v2847 = vrot.slane %v2845, 5
      %v2848 = vsel %vm1418, %v2843, %v2847
      %v2850 = vshrl.u32 %v2507, 16
      %v2852 = vrot.slane %v2850, 4
      %v2853 = vshll.u32 %v2507, 16
      %v2855 = vrot.slane %v2853, 5
      %v2856 = vor.u32 %v2852, %v2855
      %v2857 = vrot.slane %v2856, 4
      %v2859 = vshll.u32 %v2508, 16
      %v2861 = vrot.slane %v2859, 5
      %v2862 = vsel %vm1418, %v2857, %v2861
      %v2863 = vshrl.u32 %v2508, 16
      %v2865 = vrot.slane %v2863, 4
      %v2866 = vor.u32 %v2865, %v2861
      %v2867 = vrot.slane %v2866, 4
      %v2869 = vshll.u32 %v2509, 16
      %v2871 = vrot.slane %v2869, 5
      %v2872 = vsel %vm1418, %v2867, %v2871
      %v2874 = vshrl.u32 %v2510, 16
      %v2876 = vrot.slane %v2874, 4
      %v2877 = vshll.u32 %v2510, 16
      %v2879 = vrot.slane %v2877, 5
      %v2880 = vor.u32 %v2876, %v2879
      %v2881 = vrot.slane %v2880, 4
      %v2883 = vshll.u32 %v2511, 16
      %v2885 = vrot.slane %v2883, 5
      %v2886 = vsel %vm1418, %v2881, %v2885
      %v2887 = vshrl.u32 %v2511, 16
      %v2889 = vrot.slane %v2887, 4
      %v2890 = vor.u32 %v2889, %v2885
      %v2891 = vrot.slane %v2890, 4
      %v2893 = vshll.u32 %v2512, 16
      %v2895 = vrot.slane %v2893, 5
      %v2896 = vsel %vm1418, %v2891, %v2895
      %2897 = vrot.lane.b32.xlu0 %v2526, 8
      %v2898 = vpop.permute.xlu0 %2897
      %2899 = vrot.lane.b32.xlu0 %v2536, 8
      %v2900 = vpop.permute.xlu0 %2899
      %2901 = vrot.lane.b32.xlu0 %v2550, 8
      %v2902 = vpop.permute.xlu0 %2901
      %2903 = vrot.lane.b32.xlu0 %v2560, 8
      %v2904 = vpop.permute.xlu0 %2903
      %2905 = vrot.lane.b32.xlu0 %v2574, 8
      %v2906 = vpop.permute.xlu0 %2905
      %2907 = vrot.lane.b32.xlu0 %v2584, 8
      %v2908 = vpop.permute.xlu0 %2907
      %2909 = vrot.lane.b32.xlu0 %v2598, 8
      %v2910 = vpop.permute.xlu0 %2909
      %2911 = vrot.lane.b32.xlu0 %v2608, 8
      %v2912 = vpop.permute.xlu0 %2911
      %2913 = vrot.lane.b32.xlu0 %v2622, 8
      %v2914 = vpop.permute.xlu0 %2913
      %2915 = vrot.lane.b32.xlu0 %v2632, 8
      %v2916 = vpop.permute.xlu0 %2915
      %2917 = vrot.lane.b32.xlu0 %v2646, 8
      %v2918 = vpop.permute.xlu0 %2917
      %2919 = vrot.lane.b32.xlu0 %v2656, 8
      %v2920 = vpop.permute.xlu0 %2919
      %2921 = vrot.lane.b32.xlu0 %v2670, 8
      %v2922 = vpop.permute.xlu0 %2921
      %2923 = vrot.lane.b32.xlu0 %v2680, 8
      %v2924 = vpop.permute.xlu0 %2923
      %2925 = vrot.lane.b32.xlu0 %v2694, 8
      %v2926 = vpop.permute.xlu0 %2925
      %2927 = vrot.lane.b32.xlu0 %v2704, 8
      %v2928 = vpop.permute.xlu0 %2927
      %2929 = vrot.lane.b32.xlu0 %v2718, 8
      %v2930 = vpop.permute.xlu0 %2929
      %2931 = vrot.lane.b32.xlu0 %v2728, 8
      %v2932 = vpop.permute.xlu0 %2931
      %2933 = vrot.lane.b32.xlu0 %v2742, 8
      %v2934 = vpop.permute.xlu0 %2933
      %2935 = vrot.lane.b32.xlu0 %v2752, 8
      %v2936 = vpop.permute.xlu0 %2935
      %2937 = vrot.lane.b32.xlu0 %v2766, 8
      %v2938 = vpop.permute.xlu0 %2937
      %2939 = vrot.lane.b32.xlu0 %v2776, 8
      %v2940 = vpop.permute.xlu0 %2939
      %2941 = vrot.lane.b32.xlu0 %v2790, 8
      %v2942 = vpop.permute.xlu0 %2941
      %2943 = vrot.lane.b32.xlu0 %v2800, 8
      %v2944 = vpop.permute.xlu0 %2943
      %2945 = vrot.lane.b32.xlu0 %v2814, 8
      %v2946 = vpop.permute.xlu0 %2945
      %2947 = vrot.lane.b32.xlu0 %v2824, 8
      %v2948 = vpop.permute.xlu0 %2947
      %2949 = vrot.lane.b32.xlu0 %v2838, 8
      %v2950 = vpop.permute.xlu0 %2949
      %2951 = vrot.lane.b32.xlu0 %v2848, 8
      %v2952 = vpop.permute.xlu0 %2951
      %2953 = vrot.lane.b32.xlu0 %v2862, 8
      %v2954 = vpop.permute.xlu0 %2953
      %2955 = vrot.lane.b32.xlu0 %v2872, 8
      %v2956 = vpop.permute.xlu0 %2955
      %2957 = vrot.lane.b32.xlu0 %v2886, 8
      %v2958 = vpop.permute.xlu0 %2957
      %2959 = vrot.lane.b32.xlu0 %v2896, 8
      %v2960 = vpop.permute.xlu0 %2959
      %vm2993 = vcmask 76864
      %2994 = vst.msk [vmem:[#allocation3] sm:$0xf] %vm2993, %v2898
      %2995 = vst.msk [vmem:[#allocation3 + $0x4] sm:$0xf] %vm2993, %v2900
      %2996 = vst.msk [vmem:[#allocation3 + $0x8] sm:$0xf] %vm2993, %v2902
      %2997 = vst.msk [vmem:[#allocation3 + $0xc] sm:$0xf] %vm2993, %v2904
      %2998 = vst.msk [vmem:[#allocation3 + $0x10] sm:$0xf] %vm2993, %v2906
      %2999 = vst.msk [vmem:[#allocation3 + $0x14] sm:$0xf] %vm2993, %v2908
      %3000 = vst.msk [vmem:[#allocation3 + $0x18] sm:$0xf] %vm2993, %v2910
      %3001 = vst.msk [vmem:[#allocation3 + $0x1c] sm:$0xf] %vm2993, %v2912
      %3002 = vst.msk [vmem:[#allocation3 + $0x20] sm:$0xf] %vm2993, %v2914
      %3003 = vst.msk [vmem:[#allocation3 + $0x24] sm:$0xf] %vm2993, %v2916
      %3004 = vst.msk [vmem:[#allocation3 + $0x28] sm:$0xf] %vm2993, %v2918
      %3005 = vst.msk [vmem:[#allocation3 + $0x2c] sm:$0xf] %vm2993, %v2920
      %3006 = vst.msk [vmem:[#allocation3 + $0x30] sm:$0xf] %vm2993, %v2922
      %3007 = vst.msk [vmem:[#allocation3 + $0x34] sm:$0xf] %vm2993, %v2924
      %3008 = vst.msk [vmem:[#allocation3 + $0x38] sm:$0xf] %vm2993, %v2926
      %3009 = vst.msk [vmem:[#allocation3 + $0x3c] sm:$0xf] %vm2993, %v2928
      %3010 = vst.msk [vmem:[#allocation3 + $0x40] sm:$0xf] %vm2993, %v2930
      %3011 = vst.msk [vmem:[#allocation3 + $0x44] sm:$0xf] %vm2993, %v2932
      %3012 = vst.msk [vmem:[#allocation3 + $0x48] sm:$0xf] %vm2993, %v2934
      %3013 = vst.msk [vmem:[#allocation3 + $0x4c] sm:$0xf] %vm2993, %v2936
      %3014 = vst.msk [vmem:[#allocation3 + $0x50] sm:$0xf] %vm2993, %v2938
      %3015 = vst.msk [vmem:[#allocation3 + $0x54] sm:$0xf] %vm2993, %v2940
      %3016 = vst.msk [vmem:[#allocation3 + $0x58] sm:$0xf] %vm2993, %v2942
      %3017 = vst.msk [vmem:[#allocation3 + $0x5c] sm:$0xf] %vm2993, %v2944
      %3018 = vst.msk [vmem:[#allocation3 + $0x60] sm:$0xf] %vm2993, %v2946
      %3019 = vst.msk [vmem:[#allocation3 + $0x64] sm:$0xf] %vm2993, %v2948
      %3020 = vst.msk [vmem:[#allocation3 + $0x68] sm:$0xf] %vm2993, %v2950
      %3021 = vst.msk [vmem:[#allocation3 + $0x6c] sm:$0xf] %vm2993, %v2952
      %3022 = vst.msk [vmem:[#allocation3 + $0x70] sm:$0xf] %vm2993, %v2954
      %3023 = vst.msk [vmem:[#allocation3 + $0x74] sm:$0xf] %vm2993, %v2956
      %3024 = vst.msk [vmem:[#allocation3 + $0x78] sm:$0xf] %vm2993, %v2958
      %3025 = vst.msk [vmem:[#allocation3 + $0x7c] sm:$0xf] %vm2993, %v2960
      %v3026 = vld [vmem:[%s1185] sm:$0xe]
      %v3027 = vld [vmem:[%s1185 + $0x4] sm:$0xf]
      %v3028 = vld [vmem:[%s1185 + $0x8] sm:$0x1]
      %v3029 = vld [vmem:[%s1185 + $0xc] sm:$0xe]
      %v3030 = vld [vmem:[%s1185 + $0x10] sm:$0xf]
      %v3031 = vld [vmem:[%s1185 + $0x14] sm:$0x1]
      %v3032 = vld [vmem:[%s1185 + $0x18] sm:$0xe]
      %v3033 = vld [vmem:[%s1185 + $0x1c] sm:$0xf]
      %v3034 = vld [vmem:[%s1185 + $0x20] sm:$0x1]
      %v3035 = vld [vmem:[%s1185 + $0x24] sm:$0xe]
      %v3036 = vld [vmem:[%s1185 + $0x28] sm:$0xf]
      %v3037 = vld [vmem:[%s1185 + $0x2c] sm:$0x1]
      %v3038 = vld [vmem:[%s1185 + $0x30] sm:$0xe]
      %v3039 = vld [vmem:[%s1185 + $0x34] sm:$0xf]
      %v3040 = vld [vmem:[%s1185 + $0x38] sm:$0x1]
      %v3041 = vld [vmem:[%s1185 + $0x3c] sm:$0xe]
      %v3042 = vld [vmem:[%s1185 + $0x40] sm:$0xf]
      %v3043 = vld [vmem:[%s1185 + $0x44] sm:$0x1]
      %v3044 = vld [vmem:[%s1185 + $0x48] sm:$0xe]
      %v3045 = vld [vmem:[%s1185 + $0x4c] sm:$0xf]
      %v3046 = vld [vmem:[%s1185 + $0x50] sm:$0x1]
      %v3047 = vld [vmem:[%s1185 + $0x54] sm:$0xe]
      %v3048 = vld [vmem:[%s1185 + $0x58] sm:$0xf]
      %v3049 = vld [vmem:[%s1185 + $0x5c] sm:$0x1]
      %v3050 = vld [vmem:[%s1185 + $0x60] sm:$0xe]
      %v3051 = vld [vmem:[%s1185 + $0x64] sm:$0xf]
      %v3052 = vld [vmem:[%s1185 + $0x68] sm:$0x1]
      %v3053 = vld [vmem:[%s1185 + $0x6c] sm:$0xe]
      %v3054 = vld [vmem:[%s1185 + $0x70] sm:$0xf]
      %v3055 = vld [vmem:[%s1185 + $0x74] sm:$0x1]
      %v3056 = vld [vmem:[%s1185 + $0x78] sm:$0xe]
      %v3057 = vld [vmem:[%s1185 + $0x7c] sm:$0xf]
      %v3058 = vld [vmem:[%s1185 + $0x80] sm:$0x1]
      %v3059 = vld [vmem:[%s1185 + $0x84] sm:$0xe]
      %v3060 = vld [vmem:[%s1185 + $0x88] sm:$0xf]
      %v3061 = vld [vmem:[%s1185 + $0x8c] sm:$0x1]
      %v3062 = vld [vmem:[%s1185 + $0x90] sm:$0xe]
      %v3063 = vld [vmem:[%s1185 + $0x94] sm:$0xf]
      %v3064 = vld [vmem:[%s1185 + $0x98] sm:$0x1]
      %v3065 = vld [vmem:[%s1185 + $0x9c] sm:$0xe]
      %v3066 = vld [vmem:[%s1185 + $0xa0] sm:$0xf]
      %v3067 = vld [vmem:[%s1185 + $0xa4] sm:$0x1]
      %v3068 = vld [vmem:[%s1185 + $0xa8] sm:$0xe]
      %v3069 = vld [vmem:[%s1185 + $0xac] sm:$0xf]
      %v3070 = vld [vmem:[%s1185 + $0xb0] sm:$0x1]
      %v3071 = vld [vmem:[%s1185 + $0xb4] sm:$0xe]
      %v3072 = vld [vmem:[%s1185 + $0xb8] sm:$0xf]
      %v3073 = vld [vmem:[%s1185 + $0xbc] sm:$0x1]
      %v3122 = vrot.slane %v3026, 5
      %v3123 = vrot.slane %v3122, 4
      %v3124 = vrot.slane %v3027, 5
      %v3125 = vsel %vm2030, %v3123, %v3124
      %v3126 = vrot.slane %v3124, 4
      %v3127 = vrot.slane %v3028, 5
      %v3128 = vsel %vm2030, %v3126, %v3127
      %v3129 = vrot.slane %v3029, 5
      %v3130 = vrot.slane %v3129, 4
      %v3131 = vrot.slane %v3030, 5
      %v3132 = vsel %vm2030, %v3130, %v3131
      %v3133 = vrot.slane %v3131, 4
      %v3134 = vrot.slane %v3031, 5
      %v3135 = vsel %vm2030, %v3133, %v3134
      %v3136 = vrot.slane %v3032, 5
      %v3137 = vrot.slane %v3136, 4
      %v3138 = vrot.slane %v3033, 5
      %v3139 = vsel %vm2030, %v3137, %v3138
      %v3140 = vrot.slane %v3138, 4
      %v3141 = vrot.slane %v3034, 5
      %v3142 = vsel %vm2030, %v3140, %v3141
      %v3143 = vrot.slane %v3035, 5
      %v3144 = vrot.slane %v3143, 4
      %v3145 = vrot.slane %v3036, 5
      %v3146 = vsel %vm2030, %v3144, %v3145
      %v3147 = vrot.slane %v3145, 4
      %v3148 = vrot.slane %v3037, 5
      %v3149 = vsel %vm2030, %v3147, %v3148
      %v3150 = vrot.slane %v3038, 5
      %v3151 = vrot.slane %v3150, 4
      %v3152 = vrot.slane %v3039, 5
      %v3153 = vsel %vm2030, %v3151, %v3152
      %v3154 = vrot.slane %v3152, 4
      %v3155 = vrot.slane %v3040, 5
      %v3156 = vsel %vm2030, %v3154, %v3155
      %v3157 = vrot.slane %v3041, 5
      %v3158 = vrot.slane %v3157, 4
      %v3159 = vrot.slane %v3042, 5
      %v3160 = vsel %vm2030, %v3158, %v3159
      %v3161 = vrot.slane %v3159, 4
      %v3162 = vrot.slane %v3043, 5
      %v3163 = vsel %vm2030, %v3161, %v3162
      %v3164 = vrot.slane %v3044, 5
      %v3165 = vrot.slane %v3164, 4
      %v3166 = vrot.slane %v3045, 5
      %v3167 = vsel %vm2030, %v3165, %v3166
      %v3168 = vrot.slane %v3166, 4
      %v3169 = vrot.slane %v3046, 5
      %v3170 = vsel %vm2030, %v3168, %v3169
      %v3171 = vrot.slane %v3047, 5
      %v3172 = vrot.slane %v3171, 4
      %v3173 = vrot.slane %v3048, 5
      %v3174 = vsel %vm2030, %v3172, %v3173
      %v3175 = vrot.slane %v3173, 4
      %v3176 = vrot.slane %v3049, 5
      %v3177 = vsel %vm2030, %v3175, %v3176
      %v3178 = vrot.slane %v3050, 5
      %v3179 = vrot.slane %v3178, 4
      %v3180 = vrot.slane %v3051, 5
      %v3181 = vsel %vm2030, %v3179, %v3180
      %v3182 = vrot.slane %v3180, 4
      %v3183 = vrot.slane %v3052, 5
      %v3184 = vsel %vm2030, %v3182, %v3183
      %v3185 = vrot.slane %v3053, 5
      %v3186 = vrot.slane %v3185, 4
      %v3187 = vrot.slane %v3054, 5
      %v3188 = vsel %vm2030, %v3186, %v3187
      %v3189 = vrot.slane %v3187, 4
      %v3190 = vrot.slane %v3055, 5
      %v3191 = vsel %vm2030, %v3189, %v3190
      %v3192 = vrot.slane %v3056, 5
      %v3193 = vrot.slane %v3192, 4
      %v3194 = vrot.slane %v3057, 5
      %v3195 = vsel %vm2030, %v3193, %v3194
      %v3196 = vrot.slane %v3194, 4
      %v3197 = vrot.slane %v3058, 5
      %v3198 = vsel %vm2030, %v3196, %v3197
      %v3199 = vrot.slane %v3059, 5
      %v3200 = vrot.slane %v3199, 4
      %v3201 = vrot.slane %v3060, 5
      %v3202 = vsel %vm2030, %v3200, %v3201
      %v3203 = vrot.slane %v3201, 4
      %v3204 = vrot.slane %v3061, 5
      %v3205 = vsel %vm2030, %v3203, %v3204
      %v3206 = vrot.slane %v3062, 5
      %v3207 = vrot.slane %v3206, 4
      %v3208 = vrot.slane %v3063, 5
      %v3209 = vsel %vm2030, %v3207, %v3208
      %v3210 = vrot.slane %v3208, 4
      %v3211 = vrot.slane %v3064, 5
      %v3212 = vsel %vm2030, %v3210, %v3211
      %v3213 = vrot.slane %v3065, 5
      %v3214 = vrot.slane %v3213, 4
      %v3215 = vrot.slane %v3066, 5
      %v3216 = vsel %vm2030, %v3214, %v3215
      %v3217 = vrot.slane %v3215, 4
      %v3218 = vrot.slane %v3067, 5
      %v3219 = vsel %vm2030, %v3217, %v3218
      %v3220 = vrot.slane %v3068, 5
      %v3221 = vrot.slane %v3220, 4
      %v3222 = vrot.slane %v3069, 5
      %v3223 = vsel %vm2030, %v3221, %v3222
      %v3224 = vrot.slane %v3222, 4
      %v3225 = vrot.slane %v3070, 5
      %v3226 = vsel %vm2030, %v3224, %v3225
      %v3227 = vrot.slane %v3071, 5
      %v3228 = vrot.slane %v3227, 4
      %v3229 = vrot.slane %v3072, 5
      %v3230 = vsel %vm2030, %v3228, %v3229
      %v3231 = vrot.slane %v3229, 4
      %v3232 = vrot.slane %v3073, 5
      %v3233 = vsel %vm2030, %v3231, %v3232
      %3234 = vrot.lane.b32.xlu0 %v3125, 10
      %v3235 = vpop.permute.xlu0 %3234
      %3236 = vrot.lane.b32.xlu0 %v3128, 10
      %v3237 = vpop.permute.xlu0 %3236
      %3238 = vrot.lane.b32.xlu0 %v3132, 10
      %v3239 = vpop.permute.xlu0 %3238
      %3240 = vrot.lane.b32.xlu0 %v3135, 10
      %v3241 = vpop.permute.xlu0 %3240
      %3242 = vrot.lane.b32.xlu0 %v3139, 10
      %v3243 = vpop.permute.xlu0 %3242
      %3244 = vrot.lane.b32.xlu0 %v3142, 10
      %v3245 = vpop.permute.xlu0 %3244
      %3246 = vrot.lane.b32.xlu0 %v3146, 10
      %v3247 = vpop.permute.xlu0 %3246
      %3248 = vrot.lane.b32.xlu0 %v3149, 10
      %v3249 = vpop.permute.xlu0 %3248
      %3250 = vrot.lane.b32.xlu0 %v3153, 10
      %v3251 = vpop.permute.xlu0 %3250
      %3252 = vrot.lane.b32.xlu0 %v3156, 10
      %v3253 = vpop.permute.xlu0 %3252
      %3254 = vrot.lane.b32.xlu0 %v3160, 10
      %v3255 = vpop.permute.xlu0 %3254
      %3256 = vrot.lane.b32.xlu0 %v3163, 10
      %v3257 = vpop.permute.xlu0 %3256
      %3258 = vrot.lane.b32.xlu0 %v3167, 10
      %v3259 = vpop.permute.xlu0 %3258
      %3260 = vrot.lane.b32.xlu0 %v3170, 10
      %v3261 = vpop.permute.xlu0 %3260
      %3262 = vrot.lane.b32.xlu0 %v3174, 10
      %v3263 = vpop.permute.xlu0 %3262
      %3264 = vrot.lane.b32.xlu0 %v3177, 10
      %v3265 = vpop.permute.xlu0 %3264
      %3266 = vrot.lane.b32.xlu0 %v3181, 10
      %v3267 = vpop.permute.xlu0 %3266
      %3268 = vrot.lane.b32.xlu0 %v3184, 10
      %v3269 = vpop.permute.xlu0 %3268
      %3270 = vrot.lane.b32.xlu0 %v3188, 10
      %v3271 = vpop.permute.xlu0 %3270
      %3272 = vrot.lane.b32.xlu0 %v3191, 10
      %v3273 = vpop.permute.xlu0 %3272
      %3274 = vrot.lane.b32.xlu0 %v3195, 10
      %v3275 = vpop.permute.xlu0 %3274
      %3276 = vrot.lane.b32.xlu0 %v3198, 10
      %v3277 = vpop.permute.xlu0 %3276
      %3278 = vrot.lane.b32.xlu0 %v3202, 10
      %v3279 = vpop.permute.xlu0 %3278
      %3280 = vrot.lane.b32.xlu0 %v3205, 10
      %v3281 = vpop.permute.xlu0 %3280
      %3282 = vrot.lane.b32.xlu0 %v3209, 10
      %v3283 = vpop.permute.xlu0 %3282
      %3284 = vrot.lane.b32.xlu0 %v3212, 10
      %v3285 = vpop.permute.xlu0 %3284
      %3286 = vrot.lane.b32.xlu0 %v3216, 10
      %v3287 = vpop.permute.xlu0 %3286
      %3288 = vrot.lane.b32.xlu0 %v3219, 10
      %v3289 = vpop.permute.xlu0 %3288
      %3290 = vrot.lane.b32.xlu0 %v3223, 10
      %v3291 = vpop.permute.xlu0 %3290
      %3292 = vrot.lane.b32.xlu0 %v3226, 10
      %v3293 = vpop.permute.xlu0 %3292
      %3294 = vrot.lane.b32.xlu0 %v3230, 10
      %v3295 = vpop.permute.xlu0 %3294
      %3296 = vrot.lane.b32.xlu0 %v3233, 10
      %v3297 = vpop.permute.xlu0 %3296
      %vm3330 = vcmask 93264
      %3331 = vst.msk [vmem:[#allocation3] sm:$0xf] %vm3330, %v3235
      %3332 = vst.msk [vmem:[#allocation3 + $0x4] sm:$0xf] %vm3330, %v3237
      %3333 = vst.msk [vmem:[#allocation3 + $0x8] sm:$0xf] %vm3330, %v3239
      %3334 = vst.msk [vmem:[#allocation3 + $0xc] sm:$0xf] %vm3330, %v3241
      %3335 = vst.msk [vmem:[#allocation3 + $0x10] sm:$0xf] %vm3330, %v3243
      %3336 = vst.msk [vmem:[#allocation3 + $0x14] sm:$0xf] %vm3330, %v3245
      %3337 = vst.msk [vmem:[#allocation3 + $0x18] sm:$0xf] %vm3330, %v3247
      %3338 = vst.msk [vmem:[#allocation3 + $0x1c] sm:$0xf] %vm3330, %v3249
      %3339 = vst.msk [vmem:[#allocation3 + $0x20] sm:$0xf] %vm3330, %v3251
      %3340 = vst.msk [vmem:[#allocation3 + $0x24] sm:$0xf] %vm3330, %v3253
      %3341 = vst.msk [vmem:[#allocation3 + $0x28] sm:$0xf] %vm3330, %v3255
      %3342 = vst.msk [vmem:[#allocation3 + $0x2c] sm:$0xf] %vm3330, %v3257
      %3343 = vst.msk [vmem:[#allocation3 + $0x30] sm:$0xf] %vm3330, %v3259
      %3344 = vst.msk [vmem:[#allocation3 + $0x34] sm:$0xf] %vm3330, %v3261
      %3345 = vst.msk [vmem:[#allocation3 + $0x38] sm:$0xf] %vm3330, %v3263
      %3346 = vst.msk [vmem:[#allocation3 + $0x3c] sm:$0xf] %vm3330, %v3265
      %3347 = vst.msk [vmem:[#allocation3 + $0x40] sm:$0xf] %vm3330, %v3267
      %3348 = vst.msk [vmem:[#allocation3 + $0x44] sm:$0xf] %vm3330, %v3269
      %3349 = vst.msk [vmem:[#allocation3 + $0x48] sm:$0xf] %vm3330, %v3271
      %3350 = vst.msk [vmem:[#allocation3 + $0x4c] sm:$0xf] %vm3330, %v3273
      %3351 = vst.msk [vmem:[#allocation3 + $0x50] sm:$0xf] %vm3330, %v3275
      %3352 = vst.msk [vmem:[#allocation3 + $0x54] sm:$0xf] %vm3330, %v3277
      %3353 = vst.msk [vmem:[#allocation3 + $0x58] sm:$0xf] %vm3330, %v3279
      %3354 = vst.msk [vmem:[#allocation3 + $0x5c] sm:$0xf] %vm3330, %v3281
      %3355 = vst.msk [vmem:[#allocation3 + $0x60] sm:$0xf] %vm3330, %v3283
      %3356 = vst.msk [vmem:[#allocation3 + $0x64] sm:$0xf] %vm3330, %v3285
      %3357 = vst.msk [vmem:[#allocation3 + $0x68] sm:$0xf] %vm3330, %v3287
      %3358 = vst.msk [vmem:[#allocation3 + $0x6c] sm:$0xf] %vm3330, %v3289
      %3359 = vst.msk [vmem:[#allocation3 + $0x70] sm:$0xf] %vm3330, %v3291
      %3360 = vst.msk [vmem:[#allocation3 + $0x74] sm:$0xf] %vm3330, %v3293
      %3361 = vst.msk [vmem:[#allocation3 + $0x78] sm:$0xf] %vm3330, %v3295
      %3362 = vst.msk [vmem:[#allocation3 + $0x7c] sm:$0xf] %vm3330, %v3297
      %s3363 = scalar_lea.vmem [#allocation2], 24
      %v3364 = vld [vmem:[%s3363] sm:$0xf]
      %v3365 = vld [vmem:[%s3363 + $0x4] sm:$0xf]
      %v3366 = vld [vmem:[%s3363 + $0xc] sm:$0xf]
      %v3367 = vld [vmem:[%s3363 + $0x10] sm:$0xf]
      %v3368 = vld [vmem:[%s3363 + $0x18] sm:$0xf]
      %v3369 = vld [vmem:[%s3363 + $0x1c] sm:$0xf]
      %v3370 = vld [vmem:[%s3363 + $0x24] sm:$0xf]
      %v3371 = vld [vmem:[%s3363 + $0x28] sm:$0xf]
      %v3372 = vld [vmem:[%s3363 + $0x30] sm:$0xf]
      %v3373 = vld [vmem:[%s3363 + $0x34] sm:$0xf]
      %v3374 = vld [vmem:[%s3363 + $0x3c] sm:$0xf]
      %v3375 = vld [vmem:[%s3363 + $0x40] sm:$0xf]
      %v3376 = vld [vmem:[%s3363 + $0x48] sm:$0xf]
      %v3377 = vld [vmem:[%s3363 + $0x4c] sm:$0xf]
      %v3378 = vld [vmem:[%s3363 + $0x54] sm:$0xf]
      %v3379 = vld [vmem:[%s3363 + $0x58] sm:$0xf]
      %v3380 = vld [vmem:[%s3363 + $0x60] sm:$0xf]
      %v3381 = vld [vmem:[%s3363 + $0x64] sm:$0xf]
      %v3382 = vld [vmem:[%s3363 + $0x6c] sm:$0xf]
      %v3383 = vld [vmem:[%s3363 + $0x70] sm:$0xf]
      %v3384 = vld [vmem:[%s3363 + $0x78] sm:$0xf]
      %v3385 = vld [vmem:[%s3363 + $0x7c] sm:$0xf]
      %v3386 = vld [vmem:[%s3363 + $0x84] sm:$0xf]
      %v3387 = vld [vmem:[%s3363 + $0x88] sm:$0xf]
      %v3388 = vld [vmem:[%s3363 + $0x90] sm:$0xf]
      %v3389 = vld [vmem:[%s3363 + $0x94] sm:$0xf]
      %v3390 = vld [vmem:[%s3363 + $0x9c] sm:$0xf]
      %v3391 = vld [vmem:[%s3363 + $0xa0] sm:$0xf]
      %v3392 = vld [vmem:[%s3363 + $0xa8] sm:$0xf]
      %v3393 = vld [vmem:[%s3363 + $0xac] sm:$0xf]
      %v3394 = vld [vmem:[%s3363 + $0xb4] sm:$0xf]
      %v3395 = vld [vmem:[%s3363 + $0xb8] sm:$0xf]
      %3428 = vrot.lane.b32.xlu0 %v3364, 12
      %v3429 = vpop.permute.xlu0 %3428
      %3430 = vrot.lane.b32.xlu0 %v3365, 12
      %v3431 = vpop.permute.xlu0 %3430
      %3432 = vrot.lane.b32.xlu0 %v3366, 12
      %v3433 = vpop.permute.xlu0 %3432
      %3434 = vrot.lane.b32.xlu0 %v3367, 12
      %v3435 = vpop.permute.xlu0 %3434
      %3436 = vrot.lane.b32.xlu0 %v3368, 12
      %v3437 = vpop.permute.xlu0 %3436
      %3438 = vrot.lane.b32.xlu0 %v3369, 12
      %v3439 = vpop.permute.xlu0 %3438
      %3440 = vrot.lane.b32.xlu0 %v3370, 12
      %v3441 = vpop.permute.xlu0 %3440
      %3442 = vrot.lane.b32.xlu0 %v3371, 12
      %v3443 = vpop.permute.xlu0 %3442
      %3444 = vrot.lane.b32.xlu0 %v3372, 12
      %v3445 = vpop.permute.xlu0 %3444
      %3446 = vrot.lane.b32.xlu0 %v3373, 12
      %v3447 = vpop.permute.xlu0 %3446
      %3448 = vrot.lane.b32.xlu0 %v3374, 12
      %v3449 = vpop.permute.xlu0 %3448
      %3450 = vrot.lane.b32.xlu0 %v3375, 12
      %v3451 = vpop.permute.xlu0 %3450
      %3452 = vrot.lane.b32.xlu0 %v3376, 12
      %v3453 = vpop.permute.xlu0 %3452
      %3454 = vrot.lane.b32.xlu0 %v3377, 12
      %v3455 = vpop.permute.xlu0 %3454
      %3456 = vrot.lane.b32.xlu0 %v3378, 12
      %v3457 = vpop.permute.xlu0 %3456
      %3458 = vrot.lane.b32.xlu0 %v3379, 12
      %v3459 = vpop.permute.xlu0 %3458
      %3460 = vrot.lane.b32.xlu0 %v3380, 12
      %v3461 = vpop.permute.xlu0 %3460
      %3462 = vrot.lane.b32.xlu0 %v3381, 12
      %v3463 = vpop.permute.xlu0 %3462
      %3464 = vrot.lane.b32.xlu0 %v3382, 12
      %v3465 = vpop.permute.xlu0 %3464
      %3466 = vrot.lane.b32.xlu0 %v3383, 12
      %v3467 = vpop.permute.xlu0 %3466
      %3468 = vrot.lane.b32.xlu0 %v3384, 12
      %v3469 = vpop.permute.xlu0 %3468
      %3470 = vrot.lane.b32.xlu0 %v3385, 12
      %v3471 = vpop.permute.xlu0 %3470
      %3472 = vrot.lane.b32.xlu0 %v3386, 12
      %v3473 = vpop.permute.xlu0 %3472
      %3474 = vrot.lane.b32.xlu0 %v3387, 12
      %v3475 = vpop.permute.xlu0 %3474
      %3476 = vrot.lane.b32.xlu0 %v3388, 12
      %v3477 = vpop.permute.xlu0 %3476
      %3478 = vrot.lane.b32.xlu0 %v3389, 12
      %v3479 = vpop.permute.xlu0 %3478
      %3480 = vrot.lane.b32.xlu0 %v3390, 12
      %v3481 = vpop.permute.xlu0 %3480
      %3482 = vrot.lane.b32.xlu0 %v3391, 12
      %v3483 = vpop.permute.xlu0 %3482
      %3484 = vrot.lane.b32.xlu0 %v3392, 12
      %v3485 = vpop.permute.xlu0 %3484
      %3486 = vrot.lane.b32.xlu0 %v3393, 12
      %v3487 = vpop.permute.xlu0 %3486
      %3488 = vrot.lane.b32.xlu0 %v3394, 12
      %v3489 = vpop.permute.xlu0 %3488
      %3490 = vrot.lane.b32.xlu0 %v3395, 12
      %v3491 = vpop.permute.xlu0 %3490
      %vm3524 = vcmask 109664
      %3525 = vst.msk [vmem:[#allocation3] sm:$0xf] %vm3524, %v3429
      %3526 = vst.msk [vmem:[#allocation3 + $0x4] sm:$0xf] %vm3524, %v3431
      %3527 = vst.msk [vmem:[#allocation3 + $0x8] sm:$0xf] %vm3524, %v3433
      %3528 = vst.msk [vmem:[#allocation3 + $0xc] sm:$0xf] %vm3524, %v3435
      %3529 = vst.msk [vmem:[#allocation3 + $0x10] sm:$0xf] %vm3524, %v3437
      %3530 = vst.msk [vmem:[#allocation3 + $0x14] sm:$0xf] %vm3524, %v3439
      %3531 = vst.msk [vmem:[#allocation3 + $0x18] sm:$0xf] %vm3524, %v3441
      %3532 = vst.msk [vmem:[#allocation3 + $0x1c] sm:$0xf] %vm3524, %v3443
      %3533 = vst.msk [vmem:[#allocation3 + $0x20] sm:$0xf] %vm3524, %v3445
      %3534 = vst.msk [vmem:[#allocation3 + $0x24] sm:$0xf] %vm3524, %v3447
      %3535 = vst.msk [vmem:[#allocation3 + $0x28] sm:$0xf] %vm3524, %v3449
      %3536 = vst.msk [vmem:[#allocation3 + $0x2c] sm:$0xf] %vm3524, %v3451
      %3537 = vst.msk [vmem:[#allocation3 + $0x30] sm:$0xf] %vm3524, %v3453
      %3538 = vst.msk [vmem:[#allocation3 + $0x34] sm:$0xf] %vm3524, %v3455
      %3539 = vst.msk [vmem:[#allocation3 + $0x38] sm:$0xf] %vm3524, %v3457
      %3540 = vst.msk [vmem:[#allocation3 + $0x3c] sm:$0xf] %vm3524, %v3459
      %3541 = vst.msk [vmem:[#allocation3 + $0x40] sm:$0xf] %vm3524, %v3461
      %3542 = vst.msk [vmem:[#allocation3 + $0x44] sm:$0xf] %vm3524, %v3463
      %3543 = vst.msk [vmem:[#allocation3 + $0x48] sm:$0xf] %vm3524, %v3465
      %3544 = vst.msk [vmem:[#allocation3 + $0x4c] sm:$0xf] %vm3524, %v3467
      %3545 = vst.msk [vmem:[#allocation3 + $0x50] sm:$0xf] %vm3524, %v3469
      %3546 = vst.msk [vmem:[#allocation3 + $0x54] sm:$0xf] %vm3524, %v3471
      %3547 = vst.msk [vmem:[#allocation3 + $0x58] sm:$0xf] %vm3524, %v3473
      %3548 = vst.msk [vmem:[#allocation3 + $0x5c] sm:$0xf] %vm3524, %v3475
      %3549 = vst.msk [vmem:[#allocation3 + $0x60] sm:$0xf] %vm3524, %v3477
      %3550 = vst.msk [vmem:[#allocation3 + $0x64] sm:$0xf] %vm3524, %v3479
      %3551 = vst.msk [vmem:[#allocation3 + $0x68] sm:$0xf] %vm3524, %v3481
      %3552 = vst.msk [vmem:[#allocation3 + $0x6c] sm:$0xf] %vm3524, %v3483
      %3553 = vst.msk [vmem:[#allocation3 + $0x70] sm:$0xf] %vm3524, %v3485
      %3554 = vst.msk [vmem:[#allocation3 + $0x74] sm:$0xf] %vm3524, %v3487
      %3555 = vst.msk [vmem:[#allocation3 + $0x78] sm:$0xf] %vm3524, %v3489
      %3556 = vst.msk [vmem:[#allocation3 + $0x7c] sm:$0xf] %vm3524, %v3491
      %v3557 = vld [vmem:[%s3363] sm:$0xf]
      %v3558 = vld [vmem:[%s3363 + $0x4] sm:$0xf]
      %v3559 = vld [vmem:[%s3363 + $0x8] sm:$0x1]
      %v3560 = vld [vmem:[%s3363 + $0xc] sm:$0xf]
      %v3561 = vld [vmem:[%s3363 + $0x10] sm:$0xf]
      %v3562 = vld [vmem:[%s3363 + $0x14] sm:$0x1]
      %v3563 = vld [vmem:[%s3363 + $0x18] sm:$0xf]
      %v3564 = vld [vmem:[%s3363 + $0x1c] sm:$0xf]
      %v3565 = vld [vmem:[%s3363 + $0x20] sm:$0x1]
      %v3566 = vld [vmem:[%s3363 + $0x24] sm:$0xf]
      %v3567 = vld [vmem:[%s3363 + $0x28] sm:$0xf]
      %v3568 = vld [vmem:[%s3363 + $0x2c] sm:$0x1]
      %v3569 = vld [vmem:[%s3363 + $0x30] sm:$0xf]
      %v3570 = vld [vmem:[%s3363 + $0x34] sm:$0xf]
      %v3571 = vld [vmem:[%s3363 + $0x38] sm:$0x1]
      %v3572 = vld [vmem:[%s3363 + $0x3c] sm:$0xf]
      %v3573 = vld [vmem:[%s3363 + $0x40] sm:$0xf]
      %v3574 = vld [vmem:[%s3363 + $0x44] sm:$0x1]
      %v3575 = vld [vmem:[%s3363 + $0x48] sm:$0xf]
      %v3576 = vld [vmem:[%s3363 + $0x4c] sm:$0xf]
      %v3577 = vld [vmem:[%s3363 + $0x50] sm:$0x1]
      %v3578 = vld [vmem:[%s3363 + $0x54] sm:$0xf]
      %v3579 = vld [vmem:[%s3363 + $0x58] sm:$0xf]
      %v3580 = vld [vmem:[%s3363 + $0x5c] sm:$0x1]
      %v3581 = vld [vmem:[%s3363 + $0x60] sm:$0xf]
      %v3582 = vld [vmem:[%s3363 + $0x64] sm:$0xf]
      %v3583 = vld [vmem:[%s3363 + $0x68] sm:$0x1]
      %v3584 = vld [vmem:[%s3363 + $0x6c] sm:$0xf]
      %v3585 = vld [vmem:[%s3363 + $0x70] sm:$0xf]
      %v3586 = vld [vmem:[%s3363 + $0x74] sm:$0x1]
      %v3587 = vld [vmem:[%s3363 + $0x78] sm:$0xf]
      %v3588 = vld [vmem:[%s3363 + $0x7c] sm:$0xf]
      %v3589 = vld [vmem:[%s3363 + $0x80] sm:$0x1]
      %v3590 = vld [vmem:[%s3363 + $0x84] sm:$0xf]
      %v3591 = vld [vmem:[%s3363 + $0x88] sm:$0xf]
      %v3592 = vld [vmem:[%s3363 + $0x8c] sm:$0x1]
      %v3593 = vld [vmem:[%s3363 + $0x90] sm:$0xf]
      %v3594 = vld [vmem:[%s3363 + $0x94] sm:$0xf]
      %v3595 = vld [vmem:[%s3363 + $0x98] sm:$0x1]
      %v3596 = vld [vmem:[%s3363 + $0x9c] sm:$0xf]
      %v3597 = vld [vmem:[%s3363 + $0xa0] sm:$0xf]
      %v3598 = vld [vmem:[%s3363 + $0xa4] sm:$0x1]
      %v3599 = vld [vmem:[%s3363 + $0xa8] sm:$0xf]
      %v3600 = vld [vmem:[%s3363 + $0xac] sm:$0xf]
      %v3601 = vld [vmem:[%s3363 + $0xb0] sm:$0x1]
      %v3602 = vld [vmem:[%s3363 + $0xb4] sm:$0xf]
      %v3603 = vld [vmem:[%s3363 + $0xb8] sm:$0xf]
      %v3604 = vld [vmem:[%s3363 + $0xbc] sm:$0x1]
      %v3606 = vshrl.u32 %v3557, 16
      %v3608 = vrot.slane %v3606, 4
      %v3609 = vshll.u32 %v3557, 16
      %v3611 = vrot.slane %v3609, 5
      %v3612 = vor.u32 %v3608, %v3611
      %v3613 = vrot.slane %v3612, 4
      %v3615 = vshll.u32 %v3558, 16
      %v3617 = vrot.slane %v3615, 5
      %v3618 = vsel %vm1418, %v3613, %v3617
      %v3619 = vshrl.u32 %v3558, 16
      %v3621 = vrot.slane %v3619, 4
      %v3622 = vor.u32 %v3621, %v3617
      %v3623 = vrot.slane %v3622, 4
      %v3625 = vshll.u32 %v3559, 16
      %v3627 = vrot.slane %v3625, 5
      %v3628 = vsel %vm1418, %v3623, %v3627
      %v3630 = vshrl.u32 %v3560, 16
      %v3632 = vrot.slane %v3630, 4
      %v3633 = vshll.u32 %v3560, 16
      %v3635 = vrot.slane %v3633, 5
      %v3636 = vor.u32 %v3632, %v3635
      %v3637 = vrot.slane %v3636, 4
      %v3639 = vshll.u32 %v3561, 16
      %v3641 = vrot.slane %v3639, 5
      %v3642 = vsel %vm1418, %v3637, %v3641
      %v3643 = vshrl.u32 %v3561, 16
      %v3645 = vrot.slane %v3643, 4
      %v3646 = vor.u32 %v3645, %v3641
      %v3647 = vrot.slane %v3646, 4
      %v3649 = vshll.u32 %v3562, 16
      %v3651 = vrot.slane %v3649, 5
      %v3652 = vsel %vm1418, %v3647, %v3651
      %v3654 = vshrl.u32 %v3563, 16
      %v3656 = vrot.slane %v3654, 4
      %v3657 = vshll.u32 %v3563, 16
      %v3659 = vrot.slane %v3657, 5
      %v3660 = vor.u32 %v3656, %v3659
      %v3661 = vrot.slane %v3660, 4
      %v3663 = vshll.u32 %v3564, 16
      %v3665 = vrot.slane %v3663, 5
      %v3666 = vsel %vm1418, %v3661, %v3665
      %v3667 = vshrl.u32 %v3564, 16
      %v3669 = vrot.slane %v3667, 4
      %v3670 = vor.u32 %v3669, %v3665
      %v3671 = vrot.slane %v3670, 4
      %v3673 = vshll.u32 %v3565, 16
      %v3675 = vrot.slane %v3673, 5
      %v3676 = vsel %vm1418, %v3671, %v3675
      %v3678 = vshrl.u32 %v3566, 16
      %v3680 = vrot.slane %v3678, 4
      %v3681 = vshll.u32 %v3566, 16
      %v3683 = vrot.slane %v3681, 5
      %v3684 = vor.u32 %v3680, %v3683
      %v3685 = vrot.slane %v3684, 4
      %v3687 = vshll.u32 %v3567, 16
      %v3689 = vrot.slane %v3687, 5
      %v3690 = vsel %vm1418, %v3685, %v3689
      %v3691 = vshrl.u32 %v3567, 16
      %v3693 = vrot.slane %v3691, 4
      %v3694 = vor.u32 %v3693, %v3689
      %v3695 = vrot.slane %v3694, 4
      %v3697 = vshll.u32 %v3568, 16
      %v3699 = vrot.slane %v3697, 5
      %v3700 = vsel %vm1418, %v3695, %v3699
      %v3702 = vshrl.u32 %v3569, 16
      %v3704 = vrot.slane %v3702, 4
      %v3705 = vshll.u32 %v3569, 16
      %v3707 = vrot.slane %v3705, 5
      %v3708 = vor.u32 %v3704, %v3707
      %v3709 = vrot.slane %v3708, 4
      %v3711 = vshll.u32 %v3570, 16
      %v3713 = vrot.slane %v3711, 5
      %v3714 = vsel %vm1418, %v3709, %v3713
      %v3715 = vshrl.u32 %v3570, 16
      %v3717 = vrot.slane %v3715, 4
      %v3718 = vor.u32 %v3717, %v3713
      %v3719 = vrot.slane %v3718, 4
      %v3721 = vshll.u32 %v3571, 16
      %v3723 = vrot.slane %v3721, 5
      %v3724 = vsel %vm1418, %v3719, %v3723
      %v3726 = vshrl.u32 %v3572, 16
      %v3728 = vrot.slane %v3726, 4
      %v3729 = vshll.u32 %v3572, 16
      %v3731 = vrot.slane %v3729, 5
      %v3732 = vor.u32 %v3728, %v3731
      %v3733 = vrot.slane %v3732, 4
      %v3735 = vshll.u32 %v3573, 16
      %v3737 = vrot.slane %v3735, 5
      %v3738 = vsel %vm1418, %v3733, %v3737
      %v3739 = vshrl.u32 %v3573, 16
      %v3741 = vrot.slane %v3739, 4
      %v3742 = vor.u32 %v3741, %v3737
      %v3743 = vrot.slane %v3742, 4
      %v3745 = vshll.u32 %v3574, 16
      %v3747 = vrot.slane %v3745, 5
      %v3748 = vsel %vm1418, %v3743, %v3747
      %v3750 = vshrl.u32 %v3575, 16
      %v3752 = vrot.slane %v3750, 4
      %v3753 = vshll.u32 %v3575, 16
      %v3755 = vrot.slane %v3753, 5
      %v3756 = vor.u32 %v3752, %v3755
      %v3757 = vrot.slane %v3756, 4
      %v3759 = vshll.u32 %v3576, 16
      %v3761 = vrot.slane %v3759, 5
      %v3762 = vsel %vm1418, %v3757, %v3761
      %v3763 = vshrl.u32 %v3576, 16
      %v3765 = vrot.slane %v3763, 4
      %v3766 = vor.u32 %v3765, %v3761
      %v3767 = vrot.slane %v3766, 4
      %v3769 = vshll.u32 %v3577, 16
      %v3771 = vrot.slane %v3769, 5
      %v3772 = vsel %vm1418, %v3767, %v3771
      %v3774 = vshrl.u32 %v3578, 16
      %v3776 = vrot.slane %v3774, 4
      %v3777 = vshll.u32 %v3578, 16
      %v3779 = vrot.slane %v3777, 5
      %v3780 = vor.u32 %v3776, %v3779
      %v3781 = vrot.slane %v3780, 4
      %v3783 = vshll.u32 %v3579, 16
      %v3785 = vrot.slane %v3783, 5
      %v3786 = vsel %vm1418, %v3781, %v3785
      %v3787 = vshrl.u32 %v3579, 16
      %v3789 = vrot.slane %v3787, 4
      %v3790 = vor.u32 %v3789, %v3785
      %v3791 = vrot.slane %v3790, 4
      %v3793 = vshll.u32 %v3580, 16
      %v3795 = vrot.slane %v3793, 5
      %v3796 = vsel %vm1418, %v3791, %v3795
      %v3798 = vshrl.u32 %v3581, 16
      %v3800 = vrot.slane %v3798, 4
      %v3801 = vshll.u32 %v3581, 16
      %v3803 = vrot.slane %v3801, 5
      %v3804 = vor.u32 %v3800, %v3803
      %v3805 = vrot.slane %v3804, 4
      %v3807 = vshll.u32 %v3582, 16
      %v3809 = vrot.slane %v3807, 5
      %v3810 = vsel %vm1418, %v3805, %v3809
      %v3811 = vshrl.u32 %v3582, 16
      %v3813 = vrot.slane %v3811, 4
      %v3814 = vor.u32 %v3813, %v3809
      %v3815 = vrot.slane %v3814, 4
      %v3817 = vshll.u32 %v3583, 16
      %v3819 = vrot.slane %v3817, 5
      %v3820 = vsel %vm1418, %v3815, %v3819
      %v3822 = vshrl.u32 %v3584, 16
      %v3824 = vrot.slane %v3822, 4
      %v3825 = vshll.u32 %v3584, 16
      %v3827 = vrot.slane %v3825, 5
      %v3828 = vor.u32 %v3824, %v3827
      %v3829 = vrot.slane %v3828, 4
      %v3831 = vshll.u32 %v3585, 16
      %v3833 = vrot.slane %v3831, 5
      %v3834 = vsel %vm1418, %v3829, %v3833
      %v3835 = vshrl.u32 %v3585, 16
      %v3837 = vrot.slane %v3835, 4
      %v3838 = vor.u32 %v3837, %v3833
      %v3839 = vrot.slane %v3838, 4
      %v3841 = vshll.u32 %v3586, 16
      %v3843 = vrot.slane %v3841, 5
      %v3844 = vsel %vm1418, %v3839, %v3843
      %v3846 = vshrl.u32 %v3587, 16
      %v3848 = vrot.slane %v3846, 4
      %v3849 = vshll.u32 %v3587, 16
      %v3851 = vrot.slane %v3849, 5
      %v3852 = vor.u32 %v3848, %v3851
      %v3853 = vrot.slane %v3852, 4
      %v3855 = vshll.u32 %v3588, 16
      %v3857 = vrot.slane %v3855, 5
      %v3858 = vsel %vm1418, %v3853, %v3857
      %v3859 = vshrl.u32 %v3588, 16
      %v3861 = vrot.slane %v3859, 4
      %v3862 = vor.u32 %v3861, %v3857
      %v3863 = vrot.slane %v3862, 4
      %v3865 = vshll.u32 %v3589, 16
      %v3867 = vrot.slane %v3865, 5
      %v3868 = vsel %vm1418, %v3863, %v3867
      %v3870 = vshrl.u32 %v3590, 16
      %v3872 = vrot.slane %v3870, 4
      %v3873 = vshll.u32 %v3590, 16
      %v3875 = vrot.slane %v3873, 5
      %v3876 = vor.u32 %v3872, %v3875
      %v3877 = vrot.slane %v3876, 4
      %v3879 = vshll.u32 %v3591, 16
      %v3881 = vrot.slane %v3879, 5
      %v3882 = vsel %vm1418, %v3877, %v3881
      %v3883 = vshrl.u32 %v3591, 16
      %v3885 = vrot.slane %v3883, 4
      %v3886 = vor.u32 %v3885, %v3881
      %v3887 = vrot.slane %v3886, 4
      %v3889 = vshll.u32 %v3592, 16
      %v3891 = vrot.slane %v3889, 5
      %v3892 = vsel %vm1418, %v3887, %v3891
      %v3894 = vshrl.u32 %v3593, 16
      %v3896 = vrot.slane %v3894, 4
      %v3897 = vshll.u32 %v3593, 16
      %v3899 = vrot.slane %v3897, 5
      %v3900 = vor.u32 %v3896, %v3899
      %v3901 = vrot.slane %v3900, 4
      %v3903 = vshll.u32 %v3594, 16
      %v3905 = vrot.slane %v3903, 5
      %v3906 = vsel %vm1418, %v3901, %v3905
      %v3907 = vshrl.u32 %v3594, 16
      %v3909 = vrot.slane %v3907, 4
      %v3910 = vor.u32 %v3909, %v3905
      %v3911 = vrot.slane %v3910, 4
      %v3913 = vshll.u32 %v3595, 16
      %v3915 = vrot.slane %v3913, 5
      %v3916 = vsel %vm1418, %v3911, %v3915
      %v3918 = vshrl.u32 %v3596, 16
      %v3920 = vrot.slane %v3918, 4
      %v3921 = vshll.u32 %v3596, 16
      %v3923 = vrot.slane %v3921, 5
      %v3924 = vor.u32 %v3920, %v3923
      %v3925 = vrot.slane %v3924, 4
      %v3927 = vshll.u32 %v3597, 16
      %v3929 = vrot.slane %v3927, 5
      %v3930 = vsel %vm1418, %v3925, %v3929
      %v3931 = vshrl.u32 %v3597, 16
      %v3933 = vrot.slane %v3931, 4
      %v3934 = vor.u32 %v3933, %v3929
      %v3935 = vrot.slane %v3934, 4
      %v3937 = vshll.u32 %v3598, 16
      %v3939 = vrot.slane %v3937, 5
      %v3940 = vsel %vm1418, %v3935, %v3939
      %v3942 = vshrl.u32 %v3599, 16
      %v3944 = vrot.slane %v3942, 4
      %v3945 = vshll.u32 %v3599, 16
      %v3947 = vrot.slane %v3945, 5
      %v3948 = vor.u32 %v3944, %v3947
      %v3949 = vrot.slane %v3948, 4
      %v3951 = vshll.u32 %v3600, 16
      %v3953 = vrot.slane %v3951, 5
      %v3954 = vsel %vm1418, %v3949, %v3953
      %v3955 = vshrl.u32 %v3600, 16
      %v3957 = vrot.slane %v3955, 4
      %v3958 = vor.u32 %v3957, %v3953
      %v3959 = vrot.slane %v3958, 4
      %v3961 = vshll.u32 %v3601, 16
      %v3963 = vrot.slane %v3961, 5
      %v3964 = vsel %vm1418, %v3959, %v3963
      %v3966 = vshrl.u32 %v3602, 16
      %v3968 = vrot.slane %v3966, 4
      %v3969 = vshll.u32 %v3602, 16
      %v3971 = vrot.slane %v3969, 5
      %v3972 = vor.u32 %v3968, %v3971
      %v3973 = vrot.slane %v3972, 4
      %v3975 = vshll.u32 %v3603, 16
      %v3977 = vrot.slane %v3975, 5
      %v3978 = vsel %vm1418, %v3973, %v3977
      %v3979 = vshrl.u32 %v3603, 16
      %v3981 = vrot.slane %v3979, 4
      %v3982 = vor.u32 %v3981, %v3977
      %v3983 = vrot.slane %v3982, 4
      %v3985 = vshll.u32 %v3604, 16
      %v3987 = vrot.slane %v3985, 5
      %v3988 = vsel %vm1418, %v3983, %v3987
      %3989 = vrot.lane.b32.xlu0 %v3618, 14
      %v3990 = vpop.permute.xlu0 %3989
      %3991 = vrot.lane.b32.xlu0 %v3628, 14
      %v3992 = vpop.permute.xlu0 %3991
      %3993 = vrot.lane.b32.xlu0 %v3642, 14
      %v3994 = vpop.permute.xlu0 %3993
      %3995 = vrot.lane.b32.xlu0 %v3652, 14
      %v3996 = vpop.permute.xlu0 %3995
      %3997 = vrot.lane.b32.xlu0 %v3666, 14
      %v3998 = vpop.permute.xlu0 %3997
      %3999 = vrot.lane.b32.xlu0 %v3676, 14
      %v4000 = vpop.permute.xlu0 %3999
      %4001 = vrot.lane.b32.xlu0 %v3690, 14
      %v4002 = vpop.permute.xlu0 %4001
      %4003 = vrot.lane.b32.xlu0 %v3700, 14
      %v4004 = vpop.permute.xlu0 %4003
      %4005 = vrot.lane.b32.xlu0 %v3714, 14
      %v4006 = vpop.permute.xlu0 %4005
      %4007 = vrot.lane.b32.xlu0 %v3724, 14
      %v4008 = vpop.permute.xlu0 %4007
      %4009 = vrot.lane.b32.xlu0 %v3738, 14
      %v4010 = vpop.permute.xlu0 %4009
      %4011 = vrot.lane.b32.xlu0 %v3748, 14
      %v4012 = vpop.permute.xlu0 %4011
      %4013 = vrot.lane.b32.xlu0 %v3762, 14
      %v4014 = vpop.permute.xlu0 %4013
      %4015 = vrot.lane.b32.xlu0 %v3772, 14
      %v4016 = vpop.permute.xlu0 %4015
      %4017 = vrot.lane.b32.xlu0 %v3786, 14
      %v4018 = vpop.permute.xlu0 %4017
      %4019 = vrot.lane.b32.xlu0 %v3796, 14
      %v4020 = vpop.permute.xlu0 %4019
      %4021 = vrot.lane.b32.xlu0 %v3810, 14
      %v4022 = vpop.permute.xlu0 %4021
      %4023 = vrot.lane.b32.xlu0 %v3820, 14
      %v4024 = vpop.permute.xlu0 %4023
      %4025 = vrot.lane.b32.xlu0 %v3834, 14
      %v4026 = vpop.permute.xlu0 %4025
      %4027 = vrot.lane.b32.xlu0 %v3844, 14
      %v4028 = vpop.permute.xlu0 %4027
      %4029 = vrot.lane.b32.xlu0 %v3858, 14
      %v4030 = vpop.permute.xlu0 %4029
      %4031 = vrot.lane.b32.xlu0 %v3868, 14
      %v4032 = vpop.permute.xlu0 %4031
      %4033 = vrot.lane.b32.xlu0 %v3882, 14
      %v4034 = vpop.permute.xlu0 %4033
      %4035 = vrot.lane.b32.xlu0 %v3892, 14
      %v4036 = vpop.permute.xlu0 %4035
      %4037 = vrot.lane.b32.xlu0 %v3906, 14
      %v4038 = vpop.permute.xlu0 %4037
      %4039 = vrot.lane.b32.xlu0 %v3916, 14
      %v4040 = vpop.permute.xlu0 %4039
      %4041 = vrot.lane.b32.xlu0 %v3930, 14
      %v4042 = vpop.permute.xlu0 %4041
      %4043 = vrot.lane.b32.xlu0 %v3940, 14
      %v4044 = vpop.permute.xlu0 %4043
      %4045 = vrot.lane.b32.xlu0 %v3954, 14
      %v4046 = vpop.permute.xlu0 %4045
      %4047 = vrot.lane.b32.xlu0 %v3964, 14
      %v4048 = vpop.permute.xlu0 %4047
      %4049 = vrot.lane.b32.xlu0 %v3978, 14
      %v4050 = vpop.permute.xlu0 %4049
      %4051 = vrot.lane.b32.xlu0 %v3988, 14
      %v4052 = vpop.permute.xlu0 %4051
      %vm4085 = vcmask 126064
      %4086 = vst.msk [vmem:[#allocation3] sm:$0xf] %vm4085, %v3990
      %4087 = vst.msk [vmem:[#allocation3 + $0x4] sm:$0xf] %vm4085, %v3992
      %4088 = vst.msk [vmem:[#allocation3 + $0x8] sm:$0xf] %vm4085, %v3994
      %4089 = vst.msk [vmem:[#allocation3 + $0xc] sm:$0xf] %vm4085, %v3996
      %4090 = vst.msk [vmem:[#allocation3 + $0x10] sm:$0xf] %vm4085, %v3998
      %4091 = vst.msk [vmem:[#allocation3 + $0x14] sm:$0xf] %vm4085, %v4000
      %4092 = vst.msk [vmem:[#allocation3 + $0x18] sm:$0xf] %vm4085, %v4002
      %4093 = vst.msk [vmem:[#allocation3 + $0x1c] sm:$0xf] %vm4085, %v4004
      %4094 = vst.msk [vmem:[#allocation3 + $0x20] sm:$0xf] %vm4085, %v4006
      %4095 = vst.msk [vmem:[#allocation3 + $0x24] sm:$0xf] %vm4085, %v4008
      %4096 = vst.msk [vmem:[#allocation3 + $0x28] sm:$0xf] %vm4085, %v4010
      %4097 = vst.msk [vmem:[#allocation3 + $0x2c] sm:$0xf] %vm4085, %v4012
      %4098 = vst.msk [vmem:[#allocation3 + $0x30] sm:$0xf] %vm4085, %v4014
      %4099 = vst.msk [vmem:[#allocation3 + $0x34] sm:$0xf] %vm4085, %v4016
      %4100 = vst.msk [vmem:[#allocation3 + $0x38] sm:$0xf] %vm4085, %v4018
      %4101 = vst.msk [vmem:[#allocation3 + $0x3c] sm:$0xf] %vm4085, %v4020
      %4102 = vst.msk [vmem:[#allocation3 + $0x40] sm:$0xf] %vm4085, %v4022
      %4103 = vst.msk [vmem:[#allocation3 + $0x44] sm:$0xf] %vm4085, %v4024
      %4104 = vst.msk [vmem:[#allocation3 + $0x48] sm:$0xf] %vm4085, %v4026
      %4105 = vst.msk [vmem:[#allocation3 + $0x4c] sm:$0xf] %vm4085, %v4028
      %4106 = vst.msk [vmem:[#allocation3 + $0x50] sm:$0xf] %vm4085, %v4030
      %4107 = vst.msk [vmem:[#allocation3 + $0x54] sm:$0xf] %vm4085, %v4032
      %4108 = vst.msk [vmem:[#allocation3 + $0x58] sm:$0xf] %vm4085, %v4034
      %4109 = vst.msk [vmem:[#allocation3 + $0x5c] sm:$0xf] %vm4085, %v4036
      %4110 = vst.msk [vmem:[#allocation3 + $0x60] sm:$0xf] %vm4085, %v4038
      %4111 = vst.msk [vmem:[#allocation3 + $0x64] sm:$0xf] %vm4085, %v4040
      %4112 = vst.msk [vmem:[#allocation3 + $0x68] sm:$0xf] %vm4085, %v4042
      %4113 = vst.msk [vmem:[#allocation3 + $0x6c] sm:$0xf] %vm4085, %v4044
      %4114 = vst.msk [vmem:[#allocation3 + $0x70] sm:$0xf] %vm4085, %v4046
      %4115 = vst.msk [vmem:[#allocation3 + $0x74] sm:$0xf] %vm4085, %v4048
      %4116 = vst.msk [vmem:[#allocation3 + $0x78] sm:$0xf] %vm4085, %v4050
      %4117 = vst.msk [vmem:[#allocation3 + $0x7c] sm:$0xf] %vm4085, %v4052
      %v4118 = vld [vmem:[%s3363] sm:$0xe]
      %v4119 = vld [vmem:[%s3363 + $0x4] sm:$0xf]
      %v4120 = vld [vmem:[%s3363 + $0x8] sm:$0x1]
      %v4121 = vld [vmem:[%s3363 + $0xc] sm:$0xe]
      %v4122 = vld [vmem:[%s3363 + $0x10] sm:$0xf]
      %v4123 = vld [vmem:[%s3363 + $0x14] sm:$0x1]
      %v4124 = vld [vmem:[%s3363 + $0x18] sm:$0xe]
      %v4125 = vld [vmem:[%s3363 + $0x1c] sm:$0xf]
      %v4126 = vld [vmem:[%s3363 + $0x20] sm:$0x1]
      %v4127 = vld [vmem:[%s3363 + $0x24] sm:$0xe]
      %v4128 = vld [vmem:[%s3363 + $0x28] sm:$0xf]
      %v4129 = vld [vmem:[%s3363 + $0x2c] sm:$0x1]
      %v4130 = vld [vmem:[%s3363 + $0x30] sm:$0xe]
      %v4131 = vld [vmem:[%s3363 + $0x34] sm:$0xf]
      %v4132 = vld [vmem:[%s3363 + $0x38] sm:$0x1]
      %v4133 = vld [vmem:[%s3363 + $0x3c] sm:$0xe]
      %v4134 = vld [vmem:[%s3363 + $0x40] sm:$0xf]
      %v4135 = vld [vmem:[%s3363 + $0x44] sm:$0x1]
      %v4136 = vld [vmem:[%s3363 + $0x48] sm:$0xe]
      %v4137 = vld [vmem:[%s3363 + $0x4c] sm:$0xf]
      %v4138 = vld [vmem:[%s3363 + $0x50] sm:$0x1]
      %v4139 = vld [vmem:[%s3363 + $0x54] sm:$0xe]
      %v4140 = vld [vmem:[%s3363 + $0x58] sm:$0xf]
      %v4141 = vld [vmem:[%s3363 + $0x5c] sm:$0x1]
      %v4142 = vld [vmem:[%s3363 + $0x60] sm:$0xe]
      %v4143 = vld [vmem:[%s3363 + $0x64] sm:$0xf]
      %v4144 = vld [vmem:[%s3363 + $0x68] sm:$0x1]
      %v4145 = vld [vmem:[%s3363 + $0x6c] sm:$0xe]
      %v4146 = vld [vmem:[%s3363 + $0x70] sm:$0xf]
      %v4147 = vld [vmem:[%s3363 + $0x74] sm:$0x1]
      %v4148 = vld [vmem:[%s3363 + $0x78] sm:$0xe]
      %v4149 = vld [vmem:[%s3363 + $0x7c] sm:$0xf]
      %v4150 = vld [vmem:[%s3363 + $0x80] sm:$0x1]
      %v4151 = vld [vmem:[%s3363 + $0x84] sm:$0xe]
      %v4152 = vld [vmem:[%s3363 + $0x88] sm:$0xf]
      %v4153 = vld [vmem:[%s3363 + $0x8c] sm:$0x1]
      %v4154 = vld [vmem:[%s3363 + $0x90] sm:$0xe]
      %v4155 = vld [vmem:[%s3363 + $0x94] sm:$0xf]
      %v4156 = vld [vmem:[%s3363 + $0x98] sm:$0x1]
      %v4157 = vld [vmem:[%s3363 + $0x9c] sm:$0xe]
      %v4158 = vld [vmem:[%s3363 + $0xa0] sm:$0xf]
      %v4159 = vld [vmem:[%s3363 + $0xa4] sm:$0x1]
      %v4160 = vld [vmem:[%s3363 + $0xa8] sm:$0xe]
      %v4161 = vld [vmem:[%s3363 + $0xac] sm:$0xf]
      %v4162 = vld [vmem:[%s3363 + $0xb0] sm:$0x1]
      %v4163 = vld [vmem:[%s3363 + $0xb4] sm:$0xe]
      %v4164 = vld [vmem:[%s3363 + $0xb8] sm:$0xf]
      %v4165 = vld [vmem:[%s3363 + $0xbc] sm:$0x1]
      %v4214 = vrot.slane %v4118, 5
      %v4215 = vrot.slane %v4214, 4
      %v4216 = vrot.slane %v4119, 5
      %v4217 = vsel %vm2030, %v4215, %v4216
      %v4218 = vrot.slane %v4216, 4
      %v4219 = vrot.slane %v4120, 5
      %v4220 = vsel %vm2030, %v4218, %v4219
      %v4221 = vrot.slane %v4121, 5
      %v4222 = vrot.slane %v4221, 4
      %v4223 = vrot.slane %v4122, 5
      %v4224 = vsel %vm2030, %v4222, %v4223
      %v4225 = vrot.slane %v4223, 4
      %v4226 = vrot.slane %v4123, 5
      %v4227 = vsel %vm2030, %v4225, %v4226
      %v4228 = vrot.slane %v4124, 5
      %v4229 = vrot.slane %v4228, 4
      %v4230 = vrot.slane %v4125, 5
      %v4231 = vsel %vm2030, %v4229, %v4230
      %v4232 = vrot.slane %v4230, 4
      %v4233 = vrot.slane %v4126, 5
      %v4234 = vsel %vm2030, %v4232, %v4233
      %v4235 = vrot.slane %v4127, 5
      %v4236 = vrot.slane %v4235, 4
      %v4237 = vrot.slane %v4128, 5
      %v4238 = vsel %vm2030, %v4236, %v4237
      %v4239 = vrot.slane %v4237, 4
      %v4240 = vrot.slane %v4129, 5
      %v4241 = vsel %vm2030, %v4239, %v4240
      %v4242 = vrot.slane %v4130, 5
      %v4243 = vrot.slane %v4242, 4
      %v4244 = vrot.slane %v4131, 5
      %v4245 = vsel %vm2030, %v4243, %v4244
      %v4246 = vrot.slane %v4244, 4
      %v4247 = vrot.slane %v4132, 5
      %v4248 = vsel %vm2030, %v4246, %v4247
      %v4249 = vrot.slane %v4133, 5
      %v4250 = vrot.slane %v4249, 4
      %v4251 = vrot.slane %v4134, 5
      %v4252 = vsel %vm2030, %v4250, %v4251
      %v4253 = vrot.slane %v4251, 4
      %v4254 = vrot.slane %v4135, 5
      %v4255 = vsel %vm2030, %v4253, %v4254
      %v4256 = vrot.slane %v4136, 5
      %v4257 = vrot.slane %v4256, 4
      %v4258 = vrot.slane %v4137, 5
      %v4259 = vsel %vm2030, %v4257, %v4258
      %v4260 = vrot.slane %v4258, 4
      %v4261 = vrot.slane %v4138, 5
      %v4262 = vsel %vm2030, %v4260, %v4261
      %v4263 = vrot.slane %v4139, 5
      %v4264 = vrot.slane %v4263, 4
      %v4265 = vrot.slane %v4140, 5
      %v4266 = vsel %vm2030, %v4264, %v4265
      %v4267 = vrot.slane %v4265, 4
      %v4268 = vrot.slane %v4141, 5
      %v4269 = vsel %vm2030, %v4267, %v4268
      %v4270 = vrot.slane %v4142, 5
      %v4271 = vrot.slane %v4270, 4
      %v4272 = vrot.slane %v4143, 5
      %v4273 = vsel %vm2030, %v4271, %v4272
      %v4274 = vrot.slane %v4272, 4
      %v4275 = vrot.slane %v4144, 5
      %v4276 = vsel %vm2030, %v4274, %v4275
      %v4277 = vrot.slane %v4145, 5
      %v4278 = vrot.slane %v4277, 4
      %v4279 = vrot.slane %v4146, 5
      %v4280 = vsel %vm2030, %v4278, %v4279
      %v4281 = vrot.slane %v4279, 4
      %v4282 = vrot.slane %v4147, 5
      %v4283 = vsel %vm2030, %v4281, %v4282
      %v4284 = vrot.slane %v4148, 5
      %v4285 = vrot.slane %v4284, 4
      %v4286 = vrot.slane %v4149, 5
      %v4287 = vsel %vm2030, %v4285, %v4286
      %v4288 = vrot.slane %v4286, 4
      %v4289 = vrot.slane %v4150, 5
      %v4290 = vsel %vm2030, %v4288, %v4289
      %v4291 = vrot.slane %v4151, 5
      %v4292 = vrot.slane %v4291, 4
      %v4293 = vrot.slane %v4152, 5
      %v4294 = vsel %vm2030, %v4292, %v4293
      %v4295 = vrot.slane %v4293, 4
      %v4296 = vrot.slane %v4153, 5
      %v4297 = vsel %vm2030, %v4295, %v4296
      %v4298 = vrot.slane %v4154, 5
      %v4299 = vrot.slane %v4298, 4
      %v4300 = vrot.slane %v4155, 5
      %v4301 = vsel %vm2030, %v4299, %v4300
      %v4302 = vrot.slane %v4300, 4
      %v4303 = vrot.slane %v4156, 5
      %v4304 = vsel %vm2030, %v4302, %v4303
      %v4305 = vrot.slane %v4157, 5
      %v4306 = vrot.slane %v4305, 4
      %v4307 = vrot.slane %v4158, 5
      %v4308 = vsel %vm2030, %v4306, %v4307
      %v4309 = vrot.slane %v4307, 4
      %v4310 = vrot.slane %v4159, 5
      %v4311 = vsel %vm2030, %v4309, %v4310
      %v4312 = vrot.slane %v4160, 5
      %v4313 = vrot.slane %v4312, 4
      %v4314 = vrot.slane %v4161, 5
      %v4315 = vsel %vm2030, %v4313, %v4314
      %v4316 = vrot.slane %v4314, 4
      %v4317 = vrot.slane %v4162, 5
      %v4318 = vsel %vm2030, %v4316, %v4317
      %v4319 = vrot.slane %v4163, 5
      %v4320 = vrot.slane %v4319, 4
      %v4321 = vrot.slane %v4164, 5
      %v4322 = vsel %vm2030, %v4320, %v4321
      %v4323 = vrot.slane %v4321, 4
      %v4324 = vrot.slane %v4165, 5
      %v4325 = vsel %vm2030, %v4323, %v4324
      %4326 = vrot.lane.b32.xlu0 %v4217, 16
      %v4327 = vpop.permute.xlu0 %4326
      %4328 = vrot.lane.b32.xlu0 %v4220, 16
      %v4329 = vpop.permute.xlu0 %4328
      %4330 = vrot.lane.b32.xlu0 %v4224, 16
      %v4331 = vpop.permute.xlu0 %4330
      %4332 = vrot.lane.b32.xlu0 %v4227, 16
      %v4333 = vpop.permute.xlu0 %4332
      %4334 = vrot.lane.b32.xlu0 %v4231, 16
      %v4335 = vpop.permute.xlu0 %4334
      %4336 = vrot.lane.b32.xlu0 %v4234, 16
      %v4337 = vpop.permute.xlu0 %4336
      %4338 = vrot.lane.b32.xlu0 %v4238, 16
      %v4339 = vpop.permute.xlu0 %4338
      %4340 = vrot.lane.b32.xlu0 %v4241, 16
      %v4341 = vpop.permute.xlu0 %4340
      %4342 = vrot.lane.b32.xlu0 %v4245, 16
      %v4343 = vpop.permute.xlu0 %4342
      %4344 = vrot.lane.b32.xlu0 %v4248, 16
      %v4345 = vpop.permute.xlu0 %4344
      %4346 = vrot.lane.b32.xlu0 %v4252, 16
      %v4347 = vpop.permute.xlu0 %4346
      %4348 = vrot.lane.b32.xlu0 %v4255, 16
      %v4349 = vpop.permute.xlu0 %4348
      %4350 = vrot.lane.b32.xlu0 %v4259, 16
      %v4351 = vpop.permute.xlu0 %4350
      %4352 = vrot.lane.b32.xlu0 %v4262, 16
      %v4353 = vpop.permute.xlu0 %4352
      %4354 = vrot.lane.b32.xlu0 %v4266, 16
      %v4355 = vpop.permute.xlu0 %4354
      %4356 = vrot.lane.b32.xlu0 %v4269, 16
      %v4357 = vpop.permute.xlu0 %4356
      %4358 = vrot.lane.b32.xlu0 %v4273, 16
      %v4359 = vpop.permute.xlu0 %4358
      %4360 = vrot.lane.b32.xlu0 %v4276, 16
      %v4361 = vpop.permute.xlu0 %4360
      %4362 = vrot.lane.b32.xlu0 %v4280, 16
      %v4363 = vpop.permute.xlu0 %4362
      %4364 = vrot.lane.b32.xlu0 %v4283, 16
      %v4365 = vpop.permute.xlu0 %4364
      %4366 = vrot.lane.b32.xlu0 %v4287, 16
      %v4367 = vpop.permute.xlu0 %4366
      %4368 = vrot.lane.b32.xlu0 %v4290, 16
      %v4369 = vpop.permute.xlu0 %4368
      %4370 = vrot.lane.b32.xlu0 %v4294, 16
      %v4371 = vpop.permute.xlu0 %4370
      %4372 = vrot.lane.b32.xlu0 %v4297, 16
      %v4373 = vpop.permute.xlu0 %4372
      %4374 = vrot.lane.b32.xlu0 %v4301, 16
      %v4375 = vpop.permute.xlu0 %4374
      %4376 = vrot.lane.b32.xlu0 %v4304, 16
      %v4377 = vpop.permute.xlu0 %4376
      %4378 = vrot.lane.b32.xlu0 %v4308, 16
      %v4379 = vpop.permute.xlu0 %4378
      %4380 = vrot.lane.b32.xlu0 %v4311, 16
      %v4381 = vpop.permute.xlu0 %4380
      %4382 = vrot.lane.b32.xlu0 %v4315, 16
      %v4383 = vpop.permute.xlu0 %4382
      %4384 = vrot.lane.b32.xlu0 %v4318, 16
      %v4385 = vpop.permute.xlu0 %4384
      %4386 = vrot.lane.b32.xlu0 %v4322, 16
      %v4387 = vpop.permute.xlu0 %4386
      %4388 = vrot.lane.b32.xlu0 %v4325, 16
      %v4389 = vpop.permute.xlu0 %4388
      %vm4422 = vcmask 142464
      %4423 = vst.msk [vmem:[#allocation3] sm:$0xf] %vm4422, %v4327
      %4424 = vst.msk [vmem:[#allocation3 + $0x4] sm:$0xf] %vm4422, %v4329
      %4425 = vst.msk [vmem:[#allocation3 + $0x8] sm:$0xf] %vm4422, %v4331
      %4426 = vst.msk [vmem:[#allocation3 + $0xc] sm:$0xf] %vm4422, %v4333
      %4427 = vst.msk [vmem:[#allocation3 + $0x10] sm:$0xf] %vm4422, %v4335
      %4428 = vst.msk [vmem:[#allocation3 + $0x14] sm:$0xf] %vm4422, %v4337
      %4429 = vst.msk [vmem:[#allocation3 + $0x18] sm:$0xf] %vm4422, %v4339
      %4430 = vst.msk [vmem:[#allocation3 + $0x1c] sm:$0xf] %vm4422, %v4341
      %4431 = vst.msk [vmem:[#allocation3 + $0x20] sm:$0xf] %vm4422, %v4343
      %4432 = vst.msk [vmem:[#allocation3 + $0x24] sm:$0xf] %vm4422, %v4345
      %4433 = vst.msk [vmem:[#allocation3 + $0x28] sm:$0xf] %vm4422, %v4347
      %4434 = vst.msk [vmem:[#allocation3 + $0x2c] sm:$0xf] %vm4422, %v4349
      %4435 = vst.msk [vmem:[#allocation3 + $0x30] sm:$0xf] %vm4422, %v4351
      %4436 = vst.msk [vmem:[#allocation3 + $0x34] sm:$0xf] %vm4422, %v4353
      %4437 = vst.msk [vmem:[#allocation3 + $0x38] sm:$0xf] %vm4422, %v4355
      %4438 = vst.msk [vmem:[#allocation3 + $0x3c] sm:$0xf] %vm4422, %v4357
      %4439 = vst.msk [vmem:[#allocation3 + $0x40] sm:$0xf] %vm4422, %v4359
      %4440 = vst.msk [vmem:[#allocation3 + $0x44] sm:$0xf] %vm4422, %v4361
      %4441 = vst.msk [vmem:[#allocation3 + $0x48] sm:$0xf] %vm4422, %v4363
      %4442 = vst.msk [vmem:[#allocation3 + $0x4c] sm:$0xf] %vm4422, %v4365
      %4443 = vst.msk [vmem:[#allocation3 + $0x50] sm:$0xf] %vm4422, %v4367
      %4444 = vst.msk [vmem:[#allocation3 + $0x54] sm:$0xf] %vm4422, %v4369
      %4445 = vst.msk [vmem:[#allocation3 + $0x58] sm:$0xf] %vm4422, %v4371
      %4446 = vst.msk [vmem:[#allocation3 + $0x5c] sm:$0xf] %vm4422, %v4373
      %4447 = vst.msk [vmem:[#allocation3 + $0x60] sm:$0xf] %vm4422, %v4375
      %4448 = vst.msk [vmem:[#allocation3 + $0x64] sm:$0xf] %vm4422, %v4377
      %4449 = vst.msk [vmem:[#allocation3 + $0x68] sm:$0xf] %vm4422, %v4379
      %4450 = vst.msk [vmem:[#allocation3 + $0x6c] sm:$0xf] %vm4422, %v4381
      %4451 = vst.msk [vmem:[#allocation3 + $0x70] sm:$0xf] %vm4422, %v4383
      %4452 = vst.msk [vmem:[#allocation3 + $0x74] sm:$0xf] %vm4422, %v4385
      %4453 = vst.msk [vmem:[#allocation3 + $0x78] sm:$0xf] %vm4422, %v4387
      %4454 = vst.msk [vmem:[#allocation3 + $0x7c] sm:$0xf] %vm4422, %v4389
      %v4455 = vld [vmem:[#allocation3] sm:$0xf]
      %v4456 = vld [vmem:[#allocation3 + $0x4] sm:$0xf]
      %v4457 = vld [vmem:[#allocation3 + $0x8] sm:$0xf]
      %v4458 = vld [vmem:[#allocation3 + $0xc] sm:$0xf]
      %v4459 = vld [vmem:[#allocation3 + $0x10] sm:$0xf]
      %v4460 = vld [vmem:[#allocation3 + $0x14] sm:$0xf]
      %v4461 = vld [vmem:[#allocation3 + $0x18] sm:$0xf]
      %v4462 = vld [vmem:[#allocation3 + $0x1c] sm:$0xf]
      %v4463 = vld [vmem:[#allocation3 + $0x20] sm:$0xf]
      %v4464 = vld [vmem:[#allocation3 + $0x24] sm:$0xf]
      %v4465 = vld [vmem:[#allocation3 + $0x28] sm:$0xf]
      %v4466 = vld [vmem:[#allocation3 + $0x2c] sm:$0xf]
      %v4467 = vld [vmem:[#allocation3 + $0x30] sm:$0xf]
      %v4468 = vld [vmem:[#allocation3 + $0x34] sm:$0xf]
      %v4469 = vld [vmem:[#allocation3 + $0x38] sm:$0xf]
      %v4470 = vld [vmem:[#allocation3 + $0x3c] sm:$0xf]
      %v4471 = vld [vmem:[#allocation3 + $0x40] sm:$0xf]
      %v4472 = vld [vmem:[#allocation3 + $0x44] sm:$0xf]
      %v4473 = vld [vmem:[#allocation3 + $0x48] sm:$0xf]
      %v4474 = vld [vmem:[#allocation3 + $0x4c] sm:$0xf]
      %v4475 = vld [vmem:[#allocation3 + $0x50] sm:$0xf]
      %v4476 = vld [vmem:[#allocation3 + $0x54] sm:$0xf]
      %v4477 = vld [vmem:[#allocation3 + $0x58] sm:$0xf]
      %v4478 = vld [vmem:[#allocation3 + $0x5c] sm:$0xf]
      %v4479 = vld [vmem:[#allocation3 + $0x60] sm:$0xf]
      %v4480 = vld [vmem:[#allocation3 + $0x64] sm:$0xf]
      %v4481 = vld [vmem:[#allocation3 + $0x68] sm:$0xf]
      %v4482 = vld [vmem:[#allocation3 + $0x6c] sm:$0xf]
      %v4483 = vld [vmem:[#allocation3 + $0x70] sm:$0xf]
      %v4484 = vld [vmem:[#allocation3 + $0x74] sm:$0xf]
      %v4485 = vld [vmem:[#allocation3 + $0x78] sm:$0xf]
      %v4486 = vld [vmem:[#allocation3 + $0x7c] sm:$0xf]
      %s4487 = smul.u32 %s21, 3
      %s4488 = smul.addr %s4487, 4
      %s4489 = scalar_lea.vmem %s3, %s4488
      %v4490 = vld [vmem:[%s4489] sm:$0xf]
      %v4491 = vld [vmem:[%s4489 + $0x4] sm:$0xf]
      %v4492 = vld [vmem:[%s4489 + $0x8] sm:$0x1]
      %s4493 = scalar_lea.vmem %s4, %s21
      %v4494 = vld [vmem:[%s4493] sm:$0x1]
      %v4496 = vlaneseq
      %v4497 = vshrl.u32 %v4496, 7
      %v4498 = vsub.s32 0, %v4497
      %v4499 = vrot.slane %v4494, %v4498
      %v4533 = vunpack.c.l.b16 %v4455
      %v4534 = vunpack.c.l.b16 %v4456
      %v4535 = vunpack.c.l.b16 %v4457
      %v4536 = vunpack.c.l.b16 %v4458
      %v4537 = vunpack.c.l.b16 %v4459
      %v4538 = vunpack.c.l.b16 %v4460
      %v4539 = vunpack.c.l.b16 %v4461
      %v4540 = vunpack.c.l.b16 %v4462
      %v4541 = vunpack.c.l.b16 %v4463
      %v4542 = vunpack.c.l.b16 %v4464
      %v4543 = vunpack.c.l.b16 %v4465
      %v4544 = vunpack.c.l.b16 %v4466
      %v4545 = vunpack.c.l.b16 %v4467
      %v4546 = vunpack.c.l.b16 %v4468
      %v4547 = vunpack.c.l.b16 %v4469
      %v4548 = vunpack.c.l.b16 %v4470
      %v4549 = vunpack.c.l.b16 %v4471
      %v4550 = vunpack.c.l.b16 %v4472
      %v4551 = vunpack.c.l.b16 %v4473
      %v4552 = vunpack.c.l.b16 %v4474
      %v4553 = vunpack.c.l.b16 %v4475
      %v4554 = vunpack.c.l.b16 %v4476
      %v4555 = vunpack.c.l.b16 %v4477
      %v4556 = vunpack.c.l.b16 %v4478
      %v4557 = vunpack.c.l.b16 %v4479
      %v4558 = vunpack.c.l.b16 %v4480
      %v4559 = vunpack.c.l.b16 %v4481
      %v4560 = vunpack.c.l.b16 %v4482
      %v4561 = vunpack.c.l.b16 %v4483
      %v4562 = vunpack.c.l.b16 %v4484
      %v4563 = vunpack.c.l.b16 %v4485
      %v4564 = vunpack.c.l.b16 %v4486
      %v4565 = vpack.c.b16 %v4534, %v4533
      %v4566 = vpack.c.b16 %v4536, %v4535
      %v4567 = vpack.c.b16 %v4538, %v4537
      %v4568 = vpack.c.b16 %v4540, %v4539
      %v4569 = vpack.c.b16 %v4542, %v4541
      %v4570 = vpack.c.b16 %v4544, %v4543
      %v4571 = vpack.c.b16 %v4546, %v4545
      %v4572 = vpack.c.b16 %v4548, %v4547
      %v4573 = vpack.c.b16 %v4550, %v4549
      %v4574 = vpack.c.b16 %v4552, %v4551
      %v4575 = vpack.c.b16 %v4554, %v4553
      %v4576 = vpack.c.b16 %v4556, %v4555
      %v4577 = vpack.c.b16 %v4558, %v4557
      %v4578 = vpack.c.b16 %v4560, %v4559
      %v4579 = vpack.c.b16 %v4562, %v4561
      %v4580 = vpack.c.b16 %v4564, %v4563
      %v4584 = vunpack.c.l.b16 %v4490
      %v4585 = vunpack.c.l.b16 %v4491
      %v4586 = vunpack.c.l.b16 %v4492
      %v4587 = vpack.c.b16 %v4585, %v4584
      %v4588 = vpack.c.b16 %v4586, %v4586
      %vm4590 = vcmask 146432
      %v4592 = vsel %vm4590, %v4565, 0
      %v4595 = vsel %vm4590, %v4566, 0
      %v4598 = vsel %vm4590, %v4567, 0
      %v4601 = vsel %vm4590, %v4568, 0
      %v4604 = vsel %vm4590, %v4569, 0
      %v4607 = vsel %vm4590, %v4570, 0
      %v4610 = vsel %vm4590, %v4571, 0
      %v4613 = vsel %vm4590, %v4572, 0
      %v4616 = vsel %vm4590, %v4573, 0
      %v4619 = vsel %vm4590, %v4574, 0
      %v4622 = vsel %vm4590, %v4575, 0
      %v4625 = vsel %vm4590, %v4576, 0
      %v4628 = vsel %vm4590, %v4577, 0
      %v4631 = vsel %vm4590, %v4578, 0
      %v4634 = vsel %vm4590, %v4579, 0
      %v4637 = vsel %vm4590, %v4580, 0
      %vm4639 = vcmask 1040384
      %v4641 = vsel %vm4639, %v4588, 0
      %4643 = vmatprep.subr.bf16.mxu0 0
      %4644 = vmatpush1.bf16.msra.mxu0 0
      %4645 = vmatprep.subr.bf16.mxu0 0
      %4646 = vmatpush1.bf16.msra.mxu0 0
      %4647 = vmatprep.subr.bf16.mxu0 0
      %4648 = vmatpush1.bf16.msra.mxu0 0
      %4649 = vmatprep.subr.bf16.mxu0 0
      %4650 = vmatpush1.bf16.msra.mxu0 0
      %4651 = vmatprep.subr.bf16.mxu0 0
      %4652 = vmatpush1.bf16.msra.mxu0 0
      %4653 = vmatprep.subr.bf16.mxu0 0
      %4654 = vmatpush1.bf16.msra.mxu0 0
      %4655 = vmatprep.subr.bf16.mxu0 0
      %4656 = vmatpush1.bf16.msra.mxu0 %v4641
      %4657 = vmatprep.subr.bf16.mxu0 0
      %4658 = vmatpush1.bf16.msra.mxu0 %v4587
      %4659 = vmatprep.subr.bf16.mxu0 0
      %4660 = vmatpush2.bf16.msra.mxu0 0
      %4661 = vmatprep.subr.bf16.mxu0 0
      %4662 = vmatpush2.bf16.msra.mxu0 0
      %4663 = vmatprep.subr.bf16.mxu0 0
      %4664 = vmatpush2.bf16.msra.mxu0 0
      %4665 = vmatprep.subr.bf16.mxu0 0
      %4666 = vmatpush2.bf16.msra.mxu0 0
      %4667 = vmatprep.subr.bf16.mxu0 0
      %4668 = vmatpush2.bf16.msra.mxu0 0
      %4669 = vmatprep.subr.bf16.mxu0 0
      %4670 = vmatpush2.bf16.msra.mxu0 0
      %4671 = vmatprep.subr.bf16.mxu0 0
      %4672 = vmatpush2.bf16.msra.mxu0 0
      %4673 = vmatprep.subr.bf16.mxu0 0
      %4674 = vmatpush2.bf16.msra.mxu0 0
      %4675 = vmatprep.mubr.bf16.mxu0 0
      %4676 = vmatmul.mubr.bf16.gmra.mxu0 %v4592
      %v4677 = vpop.f32.mrf.mxu0
      %v4678 = vadd.f32 %v4499, %v4677
      %v4679 = vpop.f32.mrf.mxu0
      %v4680 = vpop.f32.mrf.mxu0
      %v4681 = vadd.f32 %v4499, %v4680
      %v4682 = vpop.f32.mrf.mxu0
      %4683 = vmatprep.mubr.bf16.mxu0 0
      %4684 = vmatmul.mubr.bf16.gmra.mxu0 %v4595
      %v4685 = vpop.f32.mrf.mxu0
      %v4686 = vadd.f32 %v4499, %v4685
      %v4687 = vpop.f32.mrf.mxu0
      %v4688 = vpop.f32.mrf.mxu0
      %v4689 = vadd.f32 %v4499, %v4688
      %v4690 = vpop.f32.mrf.mxu0
      %4691 = vmatprep.mubr.bf16.mxu0 0
      %4692 = vmatmul.mubr.bf16.gmra.mxu0 %v4598
      %v4693 = vpop.f32.mrf.mxu0
      %v4694 = vadd.f32 %v4499, %v4693
      %v4695 = vpop.f32.mrf.mxu0
      %v4696 = vpop.f32.mrf.mxu0
      %v4697 = vadd.f32 %v4499, %v4696
      %v4698 = vpop.f32.mrf.mxu0
      %4699 = vmatprep.mubr.bf16.mxu0 0
      %4700 = vmatmul.mubr.bf16.gmra.mxu0 %v4601
      %v4701 = vpop.f32.mrf.mxu0
      %v4702 = vadd.f32 %v4499, %v4701
      %v4703 = vpop.f32.mrf.mxu0
      %v4704 = vpop.f32.mrf.mxu0
      %v4705 = vadd.f32 %v4499, %v4704
      %v4706 = vpop.f32.mrf.mxu0
      %4707 = vmatprep.mubr.bf16.mxu0 0
      %4708 = vmatmul.mubr.bf16.gmra.mxu0 %v4604
      %v4709 = vpop.f32.mrf.mxu0
      %v4710 = vadd.f32 %v4499, %v4709
      %v4711 = vpop.f32.mrf.mxu0
      %v4712 = vpop.f32.mrf.mxu0
      %v4713 = vadd.f32 %v4499, %v4712
      %v4714 = vpop.f32.mrf.mxu0
      %4715 = vmatprep.mubr.bf16.mxu0 0
      %4716 = vmatmul.mubr.bf16.gmra.mxu0 %v4607
      %v4717 = vpop.f32.mrf.mxu0
      %v4718 = vadd.f32 %v4499, %v4717
      %v4719 = vpop.f32.mrf.mxu0
      %v4720 = vpop.f32.mrf.mxu0
      %v4721 = vadd.f32 %v4499, %v4720
      %v4722 = vpop.f32.mrf.mxu0
      %4723 = vmatprep.mubr.bf16.mxu0 0
      %4724 = vmatmul.mubr.bf16.gmra.mxu0 %v4610
      %v4725 = vpop.f32.mrf.mxu0
      %v4726 = vadd.f32 %v4499, %v4725
      %v4727 = vpop.f32.mrf.mxu0
      %v4728 = vpop.f32.mrf.mxu0
      %v4729 = vadd.f32 %v4499, %v4728
      %v4730 = vpop.f32.mrf.mxu0
      %4731 = vmatprep.mubr.bf16.mxu0 0
      %4732 = vmatmul.mubr.bf16.gmra.mxu0 %v4613
      %v4733 = vpop.f32.mrf.mxu0
      %v4734 = vadd.f32 %v4499, %v4733
      %v4735 = vpop.f32.mrf.mxu0
      %v4736 = vpop.f32.mrf.mxu0
      %v4737 = vadd.f32 %v4499, %v4736
      %v4738 = vpop.f32.mrf.mxu0
      %4739 = vmatprep.mubr.bf16.mxu0 0
      %4740 = vmatmul.mubr.bf16.gmra.mxu0 %v4616
      %v4741 = vpop.f32.mrf.mxu0
      %v4742 = vadd.f32 %v4499, %v4741
      %v4743 = vpop.f32.mrf.mxu0
      %v4744 = vpop.f32.mrf.mxu0
      %v4745 = vadd.f32 %v4499, %v4744
      %v4746 = vpop.f32.mrf.mxu0
      %4747 = vmatprep.mubr.bf16.mxu0 0
      %4748 = vmatmul.mubr.bf16.gmra.mxu0 %v4619
      %v4749 = vpop.f32.mrf.mxu0
      %v4750 = vadd.f32 %v4499, %v4749
      %v4751 = vpop.f32.mrf.mxu0
      %v4752 = vpop.f32.mrf.mxu0
      %v4753 = vadd.f32 %v4499, %v4752
      %v4754 = vpop.f32.mrf.mxu0
      %4755 = vmatprep.mubr.bf16.mxu0 0
      %4756 = vmatmul.mubr.bf16.gmra.mxu0 %v4622
      %v4757 = vpop.f32.mrf.mxu0
      %v4758 = vadd.f32 %v4499, %v4757
      %v4759 = vpop.f32.mrf.mxu0
      %v4760 = vpop.f32.mrf.mxu0
      %v4761 = vadd.f32 %v4499, %v4760
      %v4762 = vpop.f32.mrf.mxu0
      %4763 = vmatprep.mubr.bf16.mxu0 0
      %4764 = vmatmul.mubr.bf16.gmra.mxu0 %v4625
      %v4765 = vpop.f32.mrf.mxu0
      %v4766 = vadd.f32 %v4499, %v4765
      %v4767 = vpop.f32.mrf.mxu0
      %v4768 = vpop.f32.mrf.mxu0
      %v4769 = vadd.f32 %v4499, %v4768
      %v4770 = vpop.f32.mrf.mxu0
      %4771 = vmatprep.mubr.bf16.mxu0 0
      %4772 = vmatmul.mubr.bf16.gmra.mxu0 %v4628
      %v4773 = vpop.f32.mrf.mxu0
      %v4774 = vadd.f32 %v4499, %v4773
      %v4775 = vpop.f32.mrf.mxu0
      %v4776 = vpop.f32.mrf.mxu0
      %v4777 = vadd.f32 %v4499, %v4776
      %v4778 = vpop.f32.mrf.mxu0
      %4779 = vmatprep.mubr.bf16.mxu0 0
      %4780 = vmatmul.mubr.bf16.gmra.mxu0 %v4631
      %v4781 = vpop.f32.mrf.mxu0
      %v4782 = vadd.f32 %v4499, %v4781
      %v4783 = vpop.f32.mrf.mxu0
      %v4784 = vpop.f32.mrf.mxu0
      %v4785 = vadd.f32 %v4499, %v4784
      %v4786 = vpop.f32.mrf.mxu0
      %4787 = vmatprep.mubr.bf16.mxu0 0
      %4788 = vmatmul.mubr.bf16.gmra.mxu0 %v4634
      %v4789 = vpop.f32.mrf.mxu0
      %v4790 = vadd.f32 %v4499, %v4789
      %v4791 = vpop.f32.mrf.mxu0
      %v4792 = vpop.f32.mrf.mxu0
      %v4793 = vadd.f32 %v4499, %v4792
      %v4794 = vpop.f32.mrf.mxu0
      %4795 = vmatprep.mubr.bf16.mxu0 0
      %4796 = vmatmul.mubr.bf16.gmra.mxu0 %v4637
      %v4797 = vpop.f32.mrf.mxu0
      %v4798 = vadd.f32 %v4499, %v4797
      %v4799 = vpop.f32.mrf.mxu0
      %v4800 = vpop.f32.mrf.mxu0
      %v4801 = vadd.f32 %v4499, %v4800
      %v4802 = vpop.f32.mrf.mxu0
      %4803 = vdwg.mxu0
      %v4804 = vmul.f32 %v4678, 0.1
      %v4805 = vmul.f32 %v4681, 0.1
      %v4806 = vmul.f32 %v4686, 0.1
      %v4807 = vmul.f32 %v4689, 0.1
      %v4808 = vmul.f32 %v4694, 0.1
      %v4809 = vmul.f32 %v4697, 0.1
      %v4810 = vmul.f32 %v4702, 0.1
      %v4811 = vmul.f32 %v4705, 0.1
      %v4812 = vmul.f32 %v4710, 0.1
      %v4813 = vmul.f32 %v4713, 0.1
      %v4814 = vmul.f32 %v4718, 0.1
      %v4815 = vmul.f32 %v4721, 0.1
      %v4816 = vmul.f32 %v4726, 0.1
      %v4817 = vmul.f32 %v4729, 0.1
      %v4818 = vmul.f32 %v4734, 0.1
      %v4819 = vmul.f32 %v4737, 0.1
      %v4820 = vmul.f32 %v4742, 0.1
      %v4821 = vmul.f32 %v4745, 0.1
      %v4822 = vmul.f32 %v4750, 0.1
      %v4823 = vmul.f32 %v4753, 0.1
      %v4824 = vmul.f32 %v4758, 0.1
      %v4825 = vmul.f32 %v4761, 0.1
      %v4826 = vmul.f32 %v4766, 0.1
      %v4827 = vmul.f32 %v4769, 0.1
      %v4828 = vmul.f32 %v4774, 0.1
      %v4829 = vmul.f32 %v4777, 0.1
      %v4830 = vmul.f32 %v4782, 0.1
      %v4831 = vmul.f32 %v4785, 0.1
      %v4832 = vmul.f32 %v4790, 0.1
      %v4833 = vmul.f32 %v4793, 0.1
      %v4834 = vmul.f32 %v4798, 0.1
      %v4835 = vmul.f32 %v4801, 0.1
      %v4836 = vmax.f32 %v4678, %v4804
      %v4837 = vmax.f32 %v4681, %v4805
      %v4838 = vmax.f32 %v4686, %v4806
      %v4839 = vmax.f32 %v4689, %v4807
      %v4840 = vmax.f32 %v4694, %v4808
      %v4841 = vmax.f32 %v4697, %v4809
      %v4842 = vmax.f32 %v4702, %v4810
      %v4843 = vmax.f32 %v4705, %v4811
      %v4844 = vmax.f32 %v4710, %v4812
      %v4845 = vmax.f32 %v4713, %v4813
      %v4846 = vmax.f32 %v4718, %v4814
      %v4847 = vmax.f32 %v4721, %v4815
      %v4848 = vmax.f32 %v4726, %v4816
      %v4849 = vmax.f32 %v4729, %v4817
      %v4850 = vmax.f32 %v4734, %v4818
      %v4851 = vmax.f32 %v4737, %v4819
      %v4852 = vmax.f32 %v4742, %v4820
      %v4853 = vmax.f32 %v4745, %v4821
      %v4854 = vmax.f32 %v4750, %v4822
      %v4855 = vmax.f32 %v4753, %v4823
      %v4856 = vmax.f32 %v4758, %v4824
      %v4857 = vmax.f32 %v4761, %v4825
      %v4858 = vmax.f32 %v4766, %v4826
      %v4859 = vmax.f32 %v4769, %v4827
      %v4860 = vmax.f32 %v4774, %v4828
      %v4861 = vmax.f32 %v4777, %v4829
      %v4862 = vmax.f32 %v4782, %v4830
      %v4863 = vmax.f32 %v4785, %v4831
      %v4864 = vmax.f32 %v4790, %v4832
      %v4865 = vmax.f32 %v4793, %v4833
      %v4866 = vmax.f32 %v4798, %v4834
      %v4867 = vmax.f32 %v4801, %v4835
      %v4868 = vadd.f32 %v429, %v4836
      %v4869 = vadd.f32 %v430, %v4837
      %v4870 = vadd.f32 %v431, %v4838
      %v4871 = vadd.f32 %v432, %v4839
      %v4872 = vadd.f32 %v433, %v4840
      %v4873 = vadd.f32 %v434, %v4841
      %v4874 = vadd.f32 %v435, %v4842
      %v4875 = vadd.f32 %v436, %v4843
      %v4876 = vadd.f32 %v437, %v4844
      %v4877 = vadd.f32 %v438, %v4845
      %v4878 = vadd.f32 %v439, %v4846
      %v4879 = vadd.f32 %v440, %v4847
      %v4880 = vadd.f32 %v441, %v4848
      %v4881 = vadd.f32 %v442, %v4849
      %v4882 = vadd.f32 %v443, %v4850
      %v4883 = vadd.f32 %v444, %v4851
      %v4884 = vadd.f32 %v445, %v4852
      %v4885 = vadd.f32 %v446, %v4853
      %v4886 = vadd.f32 %v447, %v4854
      %v4887 = vadd.f32 %v448, %v4855
      %v4888 = vadd.f32 %v449, %v4856
      %v4889 = vadd.f32 %v450, %v4857
      %v4890 = vadd.f32 %v451, %v4858
      %v4891 = vadd.f32 %v452, %v4859
      %v4892 = vadd.f32 %v453, %v4860
      %v4893 = vadd.f32 %v454, %v4861
      %v4894 = vadd.f32 %v455, %v4862
      %v4895 = vadd.f32 %v456, %v4863
      %v4896 = vadd.f32 %v457, %v4864
      %v4897 = vadd.f32 %v458, %v4865
      %v4898 = vadd.f32 %v459, %v4866
      %v4899 = vadd.f32 %v460, %v4867
      %4900 = vst.msk [vmem:[%s236] sm:$0xff] %vm488, %v4868
      %4901 = vst.msk [vmem:[%s236 + $0x8] sm:$0xff] %vm488, %v4869
      %4902 = vst.msk [vmem:[%s236 + $0x10] sm:$0xff] %vm488, %v4870
      %4903 = vst.msk [vmem:[%s236 + $0x18] sm:$0xff] %vm488, %v4871
      %4904 = vst.msk [vmem:[%s236 + $0x20] sm:$0xff] %vm488, %v4872
      %4905 = vst.msk [vmem:[%s236 + $0x28] sm:$0xff] %vm488, %v4873
      %4906 = vst.msk [vmem:[%s236 + $0x30] sm:$0xff] %vm488, %v4874
      %4907 = vst.msk [vmem:[%s236 + $0x38] sm:$0xff] %vm488, %v4875
      %4908 = vst.msk [vmem:[%s236 + $0x40] sm:$0xff] %vm488, %v4876
      %4909 = vst.msk [vmem:[%s236 + $0x48] sm:$0xff] %vm488, %v4877
      %4910 = vst.msk [vmem:[%s236 + $0x50] sm:$0xff] %vm488, %v4878
      %4911 = vst.msk [vmem:[%s236 + $0x58] sm:$0xff] %vm488, %v4879
      %4912 = vst.msk [vmem:[%s236 + $0x60] sm:$0xff] %vm488, %v4880
      %4913 = vst.msk [vmem:[%s236 + $0x68] sm:$0xff] %vm488, %v4881
      %4914 = vst.msk [vmem:[%s236 + $0x70] sm:$0xff] %vm488, %v4882
      %4915 = vst.msk [vmem:[%s236 + $0x78] sm:$0xff] %vm488, %v4883
      %4916 = vst.msk [vmem:[%s236 + $0x80] sm:$0xff] %vm488, %v4884
      %4917 = vst.msk [vmem:[%s236 + $0x88] sm:$0xff] %vm488, %v4885
      %4918 = vst.msk [vmem:[%s236 + $0x90] sm:$0xff] %vm488, %v4886
      %4919 = vst.msk [vmem:[%s236 + $0x98] sm:$0xff] %vm488, %v4887
      %4920 = vst.msk [vmem:[%s236 + $0xa0] sm:$0xff] %vm488, %v4888
      %4921 = vst.msk [vmem:[%s236 + $0xa8] sm:$0xff] %vm488, %v4889
      %4922 = vst.msk [vmem:[%s236 + $0xb0] sm:$0xff] %vm488, %v4890
      %4923 = vst.msk [vmem:[%s236 + $0xb8] sm:$0xff] %vm488, %v4891
      %4924 = vst.msk [vmem:[%s236 + $0xc0] sm:$0xff] %vm488, %v4892
      %4925 = vst.msk [vmem:[%s236 + $0xc8] sm:$0xff] %vm488, %v4893
      %4926 = vst.msk [vmem:[%s236 + $0xd0] sm:$0xff] %vm488, %v4894
      %4927 = vst.msk [vmem:[%s236 + $0xd8] sm:$0xff] %vm488, %v4895
      %4928 = vst.msk [vmem:[%s236 + $0xe0] sm:$0xff] %vm488, %v4896
      %4929 = vst.msk [vmem:[%s236 + $0xe8] sm:$0xff] %vm488, %v4897
      %4930 = vst.msk [vmem:[%s236 + $0xf0] sm:$0xff] %vm488, %v4898
      %4931 = vst.msk [vmem:[%s236 + $0xf8] sm:$0xff] %vm488, %v4899
      %p4932 = scmp.lt.s32.totalorder %s20, 1
      %s4933 = scalar_select %p4932, %s20, 1
      %s4934 = smul.addr %s4933, 32
      %s4935 = smul.addr %s4934, 8
      %s4936 = scalar_lea.vmem %s5, %s4935
      // Predicated region
      $region45: #{tpu_custom_call.1} parent=39 // pred_check
        %p4937 = pneg %p156
      $region46: #{tpu_custom_call.1} parent=39 // pred_check_branch
        %4939 = sbr.rel (%p4937) target = $region48
      $region47: #{tpu_custom_call.1} parent=39 // pred_region
        _
      $region48: #{tpu_custom_call.1} parent=39 // pred_fallthru
        _
    $region40: #{tpu_custom_call.1} parent=5 // pred_fallthru
      _
    %p4940 = scmp.le.s32.totalorder 2, %s11
    // Predicated region
    $region49: #{tpu_custom_call.1} parent=5 // pred_check
      %p4941 = pneg %p4940
    $region50: #{tpu_custom_call.1} parent=5 // pred_check_branch
      %4943 = sbr.rel (%p4941) target = $region52
    $region51: #{tpu_custom_call.1} parent=5 // pred_region
      %s4944 = ssub.s32 %s11, 2
      // Predicated region
      $region53: #{tpu_custom_call.1} parent=51 // pred_check
        %p4945 = pneg %p162
      $region54: #{tpu_custom_call.1} parent=51 // pred_check_branch
        %4947 = sbr.rel (%p4945) target = $region56
      $region55: #{tpu_custom_call.1} parent=51 // pred_region
        %p4948 = scmp.lt.s32.totalorder %s22, 1
        %s4949 = scalar_select %p4948, %s22, 1
        %s4950 = smul.addr %s4949, 32
        %s4951 = smul.addr %s4950, 8
        %s4952 = scalar_lea.vmem %s5, %s4951
      $region56: #{tpu_custom_call.1} parent=51 // pred_fallthru
        _
    $region52: #{tpu_custom_call.1} parent=5 // pred_fallthru
      _
  $region6: #{tpu_custom_call.1} parent=0 // loop_footer
    %s15 = sadd.s32 1, %s11
  $region7: #{tpu_custom_call.1} parent=0 // loop_footer_branch
    %10 = sbr.rel target = $region3
  $region8: #{tpu_custom_call.1} parent=0 // loop_exit
    _

</llo_original>
